<compile_context>
chip_gen: v6e
topology: v6e:2x2x1
jax: 0.10.0
libtpu: 0.0.40
codegen_flags: <defaults>
</compile_context>

<pallas_src>
import functools
import math

import jax
import jax.numpy as jnp
from jax import lax
from jax.experimental import pallas as pl
from jax.experimental.pallas import tpu as pltpu

VMEM_SPEC = pl.BlockSpec(memory_space=pltpu.MemorySpace.VMEM)
HEAD_PAD = 128          # lane-dense padded width for the two classifier heads
LN_EPS = 1e-12

CFG = dict(vocab=100, max_pos=16, type_vocab=2, hidden=32, heads=2,
           intermediate=64, layers=2, num_primary=3, num_sub=10)


# ---------------------------------------------------------------------------
# In-kernel helpers
# ---------------------------------------------------------------------------
def _layer_norm(x, g, b, eps):
    mu = jnp.mean(x, axis=-1, keepdims=True)
    var = jnp.mean(jnp.square(x - mu), axis=-1, keepdims=True)
    return (x - mu) * lax.rsqrt(var + eps) * g + b


# ---------------------------------------------------------------------------
# ONE fused kernel: embedding LN -> L encoder layers -> masked mean pool ->
# fused classifier heads.  No grid; everything is VMEM-resident.
# ---------------------------------------------------------------------------
def _bert_forward_kernel(emb_ref, bias_ref, mm_ref,
                         emb_g_ref, emb_b_ref,
                         wqkv_ref, bqkv_ref, wo_ref, bo_ref,
                         ln1g_ref, ln1b_ref,
                         w1_ref, b1_ref, w2_ref, b2_ref,
                         ln2g_ref, ln2b_ref,
                         head_w_ref, head_b_ref,
                         logits_ref,
                         *, batch, seq, num_heads, head_dim, num_layers,
                         scale, eps):
    hidden = num_heads * head_dim

    # --- embedding LayerNorm (fused; no standalone call / HBM round trip) ---
    x = _layer_norm(emb_ref[...], emb_g_ref[...], emb_b_ref[...], eps)  # (B*S,H)
    bias = bias_ref[...]                                                 # (B,1,S)

    # --- encoder layers, fully unrolled inside the kernel --------------------
    for l in range(num_layers):
        # fused Q|K|V projection on the flattened (B*S, H) slab
        qkv = jnp.dot(x, wqkv_ref[l], preferred_element_type=jnp.float32)
        qkv = (qkv + bqkv_ref[l]).reshape(batch, seq, 3 * hidden)

        # per-head attention batched over B; head contexts are concatenated on
        # the lane axis so the output projection is ONE (B*S,H)@(H,H) matmul.
        ctx_heads = []
        for hd in range(num_heads):
            lo = hd * head_dim
            q = qkv[:, :, lo:lo + head_dim]                              # (B,S,Dh)
            k = qkv[:, :, hidden + lo:hidden + lo + head_dim]            # (B,S,Dh)
            v = qkv[:, :, 2 * hidden + lo:2 * hidden + lo + head_dim]    # (B,S,Dh)

            s = jnp.einsum('bqd,bkd->bqk', q, k,
                           preferred_element_type=jnp.float32)           # (B,S,S)
            s = s * scale + bias
            s = s - jnp.max(s, axis=-1, keepdims=True)
            p = jnp.exp(s)
            p = p / jnp.sum(p, axis=-1, keepdims=True)   # exact softmax
            ctx_heads.append(jnp.einsum('bqk,bkd->bqd', p, v,
                                        preferred_element_type=jnp.float32))
        ctx = jnp.concatenate(ctx_heads, axis=-1).reshape(batch * seq, hidden)

        attn = jnp.dot(ctx, wo_ref[l], preferred_element_type=jnp.float32)
        attn = attn + bo_ref[l]

        # residual + LN1 (fused)
        x1 = _layer_norm(x + attn, ln1g_ref[l], ln1b_ref[l], eps)

        # FFN: (B*S,H)@(H,I) -> gelu -> (B*S,I)@(I,H)
        # TODO(synk): tanh-approx GELU (HF BERT uses exact erf form; ~1e-3 delta).
        ffn = jnp.dot(x1, w1_ref[l], preferred_element_type=jnp.float32) + b1_ref[l]
        ffn = jax.nn.gelu(ffn, approximate=True)
        ffn = jnp.dot(ffn, w2_ref[l], preferred_element_type=jnp.float32) + b2_ref[l]

        # residual + LN2 (fused)
        x = _layer_norm(x1 + ffn, ln2g_ref[l], ln2b_ref[l], eps)

    # --- masked mean pool + both classifier heads (lane-dense fused matmul) --
    h3 = x.reshape(batch, seq, hidden)
    mm = mm_ref[...]                                        # (B, S) float mask
    summed = jnp.sum(h3 * mm[:, :, jnp.newaxis], axis=1)    # (B, H)
    counts = jnp.sum(mm, axis=1, keepdims=True)
    counts = jnp.where(counts == 0.0, 1.0, counts)          # token_counts[==0] = 1
    pooled = summed / counts
    # TODO(synk): nn.Dropout(p=0.3) is identity here (eval/inference semantics).
    logits_ref[...] = jnp.dot(pooled, head_w_ref[...],
                              preferred_element_type=jnp.float32) + head_b_ref[...]


# ---------------------------------------------------------------------------
# Parameters (deterministic synthetic init; layer weights stacked on a leading
# axis so the fused kernel takes one ref per tensor and indexes statically)
# ---------------------------------------------------------------------------
def init_params(key, cfg):
    h, inter, nl = cfg["hidden"], cfg["intermediate"], cfg["layers"]
    np_, ns_ = cfg["num_primary"], cfg["num_sub"]
    keys = iter(jax.random.split(key, 256))

    def w(shape, scale=0.02):
        return (scale * jax.random.normal(next(keys), shape)).astype(jnp.float32)

    def zeros(*s):
        return jnp.zeros(s, jnp.float32)

    def ones(*s):
        return jnp.ones(s, jnp.float32)

    # two classifier heads fused into one lane-dense zero-padded (H, 128) weight
    wp, bp = w((h, np_)), zeros(np_)
    ws, bs = w((h, ns_)), zeros(ns_)
    head_w = zeros(h, HEAD_PAD).at[:, :np_].set(wp).at[:, np_:np_ + ns_].set(ws)
    head_b = zeros(1, HEAD_PAD).at[0, :np_].set(bp).at[0, np_:np_ + ns_].set(bs)

    layers = dict(wqkv=[], bqkv=[], wo=[], bo=[], ln1_g=[], ln1_b=[],
                  w1=[], b1=[], w2=[], b2=[], ln2_g=[], ln2_b=[])
    for _ in range(nl):
        wq, wk, wv = w((h, h)), w((h, h)), w((h, h))
        layers["wqkv"].append(jnp.concatenate([wq, wk, wv], axis=1))  # (H, 3H)
        layers["bqkv"].append(zeros(1, 3 * h))
        layers["wo"].append(w((h, h)))
        layers["bo"].append(zeros(1, h))
        layers["ln1_g"].append(ones(1, h))
        layers["ln1_b"].append(zeros(1, h))
        layers["w1"].append(w((h, inter)))
        layers["b1"].append(zeros(1, inter))
        layers["w2"].append(w((inter, h)))
        layers["b2"].append(zeros(1, h))
        layers["ln2_g"].append(ones(1, h))
        layers["ln2_b"].append(zeros(1, h))

    params = dict(
        word_emb=w((cfg["vocab"], h)),
        pos_emb=w((cfg["max_pos"], h)),
        type_emb=w((cfg["type_vocab"], h)),
        emb_ln_g=ones(1, h), emb_ln_b=zeros(1, h),
        head_w=head_w, head_b=head_b,
    )
    for name, vals in layers.items():
        params[name] = jnp.stack(vals, axis=0)      # leading layer axis
    return params


# ---------------------------------------------------------------------------
# Forward: embedding gather/adds are XLA glue; everything else is ONE kernel.
# ---------------------------------------------------------------------------
def bert_classification_forward(params, input_ids, attention_mask, manag_mask):
    cfg = CFG
    b, s = input_ids.shape
    h, nh, nl = cfg["hidden"], cfg["heads"], cfg["layers"]

    # TODO(synk): token_type_ids assumed all-zero (single-segment calls only).
    emb = (params["word_emb"][input_ids]
           + params["pos_emb"][jnp.arange(s)][None, :, :]
           + params["type_emb"][0][None, None, :])
    emb2 = emb.reshape(b * s, h)

    # additive key-mask bias, shape (B, 1, S)
    mask_bias = ((1.0 - attention_mask.astype(jnp.float32)) * -10000.0)[:, None, :]

    kernel = functools.partial(
        _bert_forward_kernel, batch=b, seq=s, num_heads=nh, head_dim=h // nh,
        num_layers=nl, scale=1.0 / math.sqrt(h // nh), eps=LN_EPS)

    logits = pl.pallas_call(
        kernel,
        out_shape=jax.ShapeDtypeStruct((b, HEAD_PAD), jnp.float32),
        in_specs=[VMEM_SPEC] * 19,
        out_specs=VMEM_SPEC,
    )(emb2, mask_bias, manag_mask.astype(jnp.float32),
      params["emb_ln_g"], params["emb_ln_b"],
      params["wqkv"], params["bqkv"], params["wo"], params["bo"],
      params["ln1_g"], params["ln1_b"],
      params["w1"], params["b1"], params["w2"], params["b2"],
      params["ln2_g"], params["ln2_b"],
      params["head_w"], params["head_b"])

    np_, ns_ = cfg["num_primary"], cfg["num_sub"]
    primary_logits = logits[:, :np_]
    subcategory_logits = logits[:, np_:np_ + ns_]
    return primary_logits, subcategory_logits


if __name__ == "__main__":
    key = jax.random.PRNGKey(0)
    pk, ik, mk = jax.random.split(key, 3)

    params = init_params(pk, CFG)

    B, S = 2, 8
    input_ids = jax.random.randint(ik, (B, S), 0, CFG["vocab"], dtype=jnp.int32)
    attention_mask = jnp.ones((B, S), dtype=jnp.int32)
    manag_mask = jax.random.bernoulli(mk, 0.5, (B, S)).astype(jnp.int32)

    fwd = jax.jit(bert_classification_forward)
    primary_logits, subcategory_logits = fwd(params, input_ids,
                                             attention_mask, manag_mask)
    jax.block_until_ready((primary_logits, subcategory_logits))

    assert primary_logits.shape == (B, CFG["num_primary"])
    assert subcategory_logits.shape == (B, CFG["num_sub"])
    assert primary_logits.dtype == jnp.float32
    assert subcategory_logits.dtype == jnp.float32
    assert bool(jnp.all(jnp.isfinite(primary_logits)))
    assert bool(jnp.all(jnp.isfinite(subcategory_logits)))
    print("KERNEL_OK")
</pallas_src>

<mosaic_0001>
module attributes {stable_mosaic.version = 11 : i64} {
  func.func @_bert_forward_kernel(%arg0: memref<16x32xf32, #tpu.memory_space<vmem>>, %arg1: memref<2x1x8xf32, #tpu.memory_space<vmem>>, %arg2: memref<2x8xf32, #tpu.memory_space<vmem>>, %arg3: memref<1x32xf32, #tpu.memory_space<vmem>>, %arg4: memref<1x32xf32, #tpu.memory_space<vmem>>, %arg5: memref<2x32x96xf32, #tpu.memory_space<vmem>>, %arg6: memref<2x1x96xf32, #tpu.memory_space<vmem>>, %arg7: memref<2x32x32xf32, #tpu.memory_space<vmem>>, %arg8: memref<2x1x32xf32, #tpu.memory_space<vmem>>, %arg9: memref<2x1x32xf32, #tpu.memory_space<vmem>>, %arg10: memref<2x1x32xf32, #tpu.memory_space<vmem>>, %arg11: memref<2x32x64xf32, #tpu.memory_space<vmem>>, %arg12: memref<2x1x64xf32, #tpu.memory_space<vmem>>, %arg13: memref<2x64x32xf32, #tpu.memory_space<vmem>>, %arg14: memref<2x1x32xf32, #tpu.memory_space<vmem>>, %arg15: memref<2x1x32xf32, #tpu.memory_space<vmem>>, %arg16: memref<2x1x32xf32, #tpu.memory_space<vmem>>, %arg17: memref<32x128xf32, #tpu.memory_space<vmem>>, %arg18: memref<1x128xf32, #tpu.memory_space<vmem>>, %arg19: memref<2x128xf32, #tpu.memory_space<vmem>>) attributes {dimension_semantics = [], scalar_prefetch = 0 : i64, scratch_operands = 0 : i64, tpu.core_type = #tpu.core_type<tc>} {
    %c0 = arith.constant 0 : index
    %c0_0 = arith.constant 0 : index
    %0 = vector.load %arg0[%c0, %c0_0] : memref<16x32xf32, #tpu.memory_space<vmem>>, vector<16x32xf32>
    %c0_1 = arith.constant 0 : index
    %c0_2 = arith.constant 0 : index
    %1 = vector.load %arg3[%c0_1, %c0_2] : memref<1x32xf32, #tpu.memory_space<vmem>>, vector<1x32xf32>
    %c0_3 = arith.constant 0 : index
    %c0_4 = arith.constant 0 : index
    %2 = vector.load %arg4[%c0_3, %c0_4] : memref<1x32xf32, #tpu.memory_space<vmem>>, vector<1x32xf32>
    %cst = arith.constant dense<0.000000e+00> : vector<16xf32>
    %3 = vector.multi_reduction <add>, %0, %cst [1] : vector<16x32xf32> to vector<16xf32>
    %4 = vector.shape_cast %3 : vector<16xf32> to vector<16x1xf32>
    %cst_5 = arith.constant 3.200000e+01 : f32
    %5 = vector.broadcast %cst_5 : f32 to vector<16x1xf32>
    %6 = arith.divf %4, %5 : vector<16x1xf32>
    %7 = vector.broadcast %6 : vector<16x1xf32> to vector<16x32xf32>
    %8 = arith.subf %0, %7 : vector<16x32xf32>
    %9 = arith.mulf %8, %8 : vector<16x32xf32>
    %cst_6 = arith.constant dense<0.000000e+00> : vector<16xf32>
    %10 = vector.multi_reduction <add>, %9, %cst_6 [1] : vector<16x32xf32> to vector<16xf32>
    %11 = vector.shape_cast %10 : vector<16xf32> to vector<16x1xf32>
    %cst_7 = arith.constant 3.200000e+01 : f32
    %12 = vector.broadcast %cst_7 : f32 to vector<16x1xf32>
    %13 = arith.divf %11, %12 : vector<16x1xf32>
    %14 = vector.broadcast %6 : vector<16x1xf32> to vector<16x32xf32>
    %15 = arith.subf %0, %14 : vector<16x32xf32>
    %cst_8 = arith.constant 9.99999996E-13 : f32
    %16 = vector.broadcast %cst_8 : f32 to vector<16x1xf32>
    %17 = arith.addf %13, %16 : vector<16x1xf32>
    %18 = math.rsqrt %17 : vector<16x1xf32>
    %19 = vector.broadcast %18 : vector<16x1xf32> to vector<16x32xf32>
    %20 = arith.mulf %15, %19 : vector<16x32xf32>
    %21 = vector.broadcast %1 : vector<1x32xf32> to vector<16x32xf32>
    %22 = arith.mulf %20, %21 : vector<16x32xf32>
    %23 = vector.broadcast %2 : vector<1x32xf32> to vector<16x32xf32>
    %24 = arith.addf %22, %23 : vector<16x32xf32>
    %c0_9 = arith.constant 0 : index
    %c0_10 = arith.constant 0 : index
    %c0_11 = arith.constant 0 : index
    %25 = vector.load %arg1[%c0_9, %c0_10, %c0_11] : memref<2x1x8xf32, #tpu.memory_space<vmem>>, vector<2x1x8xf32>
    %c0_12 = arith.constant 0 : index
    %c0_13 = arith.constant 0 : index
    %c0_14 = arith.constant 0 : index
    %26 = vector.load %arg5[%c0_12, %c0_13, %c0_14] : memref<2x32x96xf32, #tpu.memory_space<vmem>>, vector<1x32x96xf32>
    %27 = vector.shape_cast %26 : vector<1x32x96xf32> to vector<32x96xf32>
    %cst_15 = arith.constant dense<0.000000e+00> : vector<16x96xf32>
    %28 = tpu.matmul %24, %27, %cst_15 {dimension_numbers = #tpu.dot_dimension_numbers<[1], [0], [0], [1], [0, 0, 1, 1], [], []>} : vector<16x32xf32>, vector<32x96xf32>, vector<16x96xf32> -> vector<16x96xf32>
    %c0_16 = arith.constant 0 : index
    %c0_17 = arith.constant 0 : index
    %c0_18 = arith.constant 0 : index
    %29 = vector.load %arg6[%c0_16, %c0_17, %c0_18] : memref<2x1x96xf32, #tpu.memory_space<vmem>>, vector<1x1x96xf32>
    %30 = vector.shape_cast %29 : vector<1x1x96xf32> to vector<1x96xf32>
    %31 = vector.broadcast %30 : vector<1x96xf32> to vector<16x96xf32>
    %32 = arith.addf %28, %31 : vector<16x96xf32>
    %33 = vector.shape_cast %32 : vector<16x96xf32> to vector<2x8x96xf32>
    %34 = vector.extract_strided_slice %33 {offsets = [0, 0, 0], sizes = [2, 8, 16], strides = [1, 1, 1]} : vector<2x8x96xf32> to vector<2x8x16xf32>
    %35 = vector.extract_strided_slice %33 {offsets = [0, 0, 32], sizes = [2, 8, 16], strides = [1, 1, 1]} : vector<2x8x96xf32> to vector<2x8x16xf32>
    %36 = vector.extract_strided_slice %33 {offsets = [0, 0, 64], sizes = [2, 8, 16], strides = [1, 1, 1]} : vector<2x8x96xf32> to vector<2x8x16xf32>
    "tpu.trace_start"() <{level = 10 : i32, message = "bqd,bkd->bqk"}> : () -> ()
    %cst_19 = arith.constant dense<0.000000e+00> : vector<2x8x8xf32>
    %37 = tpu.matmul %34, %35, %cst_19 {dimension_numbers = #tpu.dot_dimension_numbers<[2], [2], [1], [1], [0, 0, 0, 1, 1, 1], [0], [0]>} : vector<2x8x16xf32>, vector<2x8x16xf32>, vector<2x8x8xf32> -> vector<2x8x8xf32>
    "tpu.trace_stop"() : () -> ()
    %cst_20 = arith.constant 2.500000e-01 : f32
    %38 = vector.broadcast %cst_20 : f32 to vector<2x8x8xf32>
    %39 = arith.mulf %37, %38 : vector<2x8x8xf32>
    %40 = vector.broadcast %25 : vector<2x1x8xf32> to vector<2x8x8xf32>
    %41 = arith.addf %39, %40 : vector<2x8x8xf32>
    %cst_21 = arith.constant dense<0xFF800000> : vector<2x8xf32>
    %42 = vector.multi_reduction <maximumf>, %41, %cst_21 [2] : vector<2x8x8xf32> to vector<2x8xf32>
    %43 = vector.shape_cast %42 : vector<2x8xf32> to vector<2x8x1xf32>
    %44 = vector.broadcast %43 : vector<2x8x1xf32> to vector<2x8x8xf32>
    %45 = arith.subf %41, %44 : vector<2x8x8xf32>
    %46 = math.exp %45 : vector<2x8x8xf32>
    %cst_22 = arith.constant dense<0.000000e+00> : vector<2x8xf32>
    %47 = vector.multi_reduction <add>, %46, %cst_22 [2] : vector<2x8x8xf32> to vector<2x8xf32>
    %48 = vector.shape_cast %47 : vector<2x8xf32> to vector<2x8x1xf32>
    %49 = vector.broadcast %48 : vector<2x8x1xf32> to vector<2x8x8xf32>
    %50 = arith.divf %46, %49 : vector<2x8x8xf32>
    "tpu.trace_start"() <{level = 10 : i32, message = "bqk,bkd->bqd"}> : () -> ()
    %cst_23 = arith.constant dense<0.000000e+00> : vector<2x8x16xf32>
    %51 = tpu.matmul %50, %36, %cst_23 {dimension_numbers = #tpu.dot_dimension_numbers<[2], [1], [1], [2], [0, 0, 0, 1, 1, 2], [0], [0]>} : vector<2x8x8xf32>, vector<2x8x16xf32>, vector<2x8x16xf32> -> vector<2x8x16xf32>
    "tpu.trace_stop"() : () -> ()
    %52 = vector.extract_strided_slice %33 {offsets = [0, 0, 16], sizes = [2, 8, 16], strides = [1, 1, 1]} : vector<2x8x96xf32> to vector<2x8x16xf32>
    %53 = vector.extract_strided_slice %33 {offsets = [0, 0, 48], sizes = [2, 8, 16], strides = [1, 1, 1]} : vector<2x8x96xf32> to vector<2x8x16xf32>
    %54 = vector.extract_strided_slice %33 {offsets = [0, 0, 80], sizes = [2, 8, 16], strides = [1, 1, 1]} : vector<2x8x96xf32> to vector<2x8x16xf32>
    "tpu.trace_start"() <{level = 10 : i32, message = "bqd,bkd->bqk"}> : () -> ()
    %cst_24 = arith.constant dense<0.000000e+00> : vector<2x8x8xf32>
    %55 = tpu.matmul %52, %53, %cst_24 {dimension_numbers = #tpu.dot_dimension_numbers<[2], [2], [1], [1], [0, 0, 0, 1, 1, 1], [0], [0]>} : vector<2x8x16xf32>, vector<2x8x16xf32>, vector<2x8x8xf32> -> vector<2x8x8xf32>
    "tpu.trace_stop"() : () -> ()
    %cst_25 = arith.constant 2.500000e-01 : f32
    %56 = vector.broadcast %cst_25 : f32 to vector<2x8x8xf32>
    %57 = arith.mulf %55, %56 : vector<2x8x8xf32>
    %58 = vector.broadcast %25 : vector<2x1x8xf32> to vector<2x8x8xf32>
    %59 = arith.addf %57, %58 : vector<2x8x8xf32>
    %cst_26 = arith.constant dense<0xFF800000> : vector<2x8xf32>
    %60 = vector.multi_reduction <maximumf>, %59, %cst_26 [2] : vector<2x8x8xf32> to vector<2x8xf32>
    %61 = vector.shape_cast %60 : vector<2x8xf32> to vector<2x8x1xf32>
    %62 = vector.broadcast %61 : vector<2x8x1xf32> to vector<2x8x8xf32>
    %63 = arith.subf %59, %62 : vector<2x8x8xf32>
    %64 = math.exp %63 : vector<2x8x8xf32>
    %cst_27 = arith.constant dense<0.000000e+00> : vector<2x8xf32>
    %65 = vector.multi_reduction <add>, %64, %cst_27 [2] : vector<2x8x8xf32> to vector<2x8xf32>
    %66 = vector.shape_cast %65 : vector<2x8xf32> to vector<2x8x1xf32>
    %67 = vector.broadcast %66 : vector<2x8x1xf32> to vector<2x8x8xf32>
    %68 = arith.divf %64, %67 : vector<2x8x8xf32>
    "tpu.trace_start"() <{level = 10 : i32, message = "bqk,bkd->bqd"}> : () -> ()
    %cst_28 = arith.constant dense<0.000000e+00> : vector<2x8x16xf32>
    %69 = tpu.matmul %68, %54, %cst_28 {dimension_numbers = #tpu.dot_dimension_numbers<[2], [1], [1], [2], [0, 0, 0, 1, 1, 2], [0], [0]>} : vector<2x8x8xf32>, vector<2x8x16xf32>, vector<2x8x16xf32> -> vector<2x8x16xf32>
    "tpu.trace_stop"() : () -> ()
    %70 = tpu.concatenate %51, %69 in 2 : vector<2x8x16xf32>, vector<2x8x16xf32> -> vector<2x8x32xf32>
    %71 = vector.shape_cast %70 : vector<2x8x32xf32> to vector<16x32xf32>
    %c0_29 = arith.constant 0 : index
    %c0_30 = arith.constant 0 : index
    %c0_31 = arith.constant 0 : index
    %72 = vector.load %arg7[%c0_29, %c0_30, %c0_31] : memref<2x32x32xf32, #tpu.memory_space<vmem>>, vector<1x32x32xf32>
    %73 = vector.shape_cast %72 : vector<1x32x32xf32> to vector<32x32xf32>
    %cst_32 = arith.constant dense<0.000000e+00> : vector<16x32xf32>
    %74 = tpu.matmul %71, %73, %cst_32 {dimension_numbers = #tpu.dot_dimension_numbers<[1], [0], [0], [1], [0, 0, 1, 1], [], []>} : vector<16x32xf32>, vector<32x32xf32>, vector<16x32xf32> -> vector<16x32xf32>
    %c0_33 = arith.constant 0 : index
    %c0_34 = arith.constant 0 : index
    %c0_35 = arith.constant 0 : index
    %75 = vector.load %arg8[%c0_33, %c0_34, %c0_35] : memref<2x1x32xf32, #tpu.memory_space<vmem>>, vector<1x1x32xf32>
    %76 = vector.shape_cast %75 : vector<1x1x32xf32> to vector<1x32xf32>
    %77 = vector.broadcast %76 : vector<1x32xf32> to vector<16x32xf32>
    %78 = arith.addf %74, %77 : vector<16x32xf32>
    %79 = arith.addf %24, %78 : vector<16x32xf32>
    %c0_36 = arith.constant 0 : index
    %c0_37 = arith.constant 0 : index
    %c0_38 = arith.constant 0 : index
    %80 = vector.load %arg9[%c0_36, %c0_37, %c0_38] : memref<2x1x32xf32, #tpu.memory_space<vmem>>, vector<1x1x32xf32>
    %81 = vector.shape_cast %80 : vector<1x1x32xf32> to vector<1x32xf32>
    %c0_39 = arith.constant 0 : index
    %c0_40 = arith.constant 0 : index
    %c0_41 = arith.constant 0 : index
    %82 = vector.load %arg10[%c0_39, %c0_40, %c0_41] : memref<2x1x32xf32, #tpu.memory_space<vmem>>, vector<1x1x32xf32>
    %83 = vector.shape_cast %82 : vector<1x1x32xf32> to vector<1x32xf32>
    %cst_42 = arith.constant dense<0.000000e+00> : vector<16xf32>
    %84 = vector.multi_reduction <add>, %79, %cst_42 [1] : vector<16x32xf32> to vector<16xf32>
    %85 = vector.shape_cast %84 : vector<16xf32> to vector<16x1xf32>
    %cst_43 = arith.constant 3.200000e+01 : f32
    %86 = vector.broadcast %cst_43 : f32 to vector<16x1xf32>
    %87 = arith.divf %85, %86 : vector<16x1xf32>
    %88 = vector.broadcast %87 : vector<16x1xf32> to vector<16x32xf32>
    %89 = arith.subf %79, %88 : vector<16x32xf32>
    %90 = arith.mulf %89, %89 : vector<16x32xf32>
    %cst_44 = arith.constant dense<0.000000e+00> : vector<16xf32>
    %91 = vector.multi_reduction <add>, %90, %cst_44 [1] : vector<16x32xf32> to vector<16xf32>
    %92 = vector.shape_cast %91 : vector<16xf32> to vector<16x1xf32>
    %cst_45 = arith.constant 3.200000e+01 : f32
    %93 = vector.broadcast %cst_45 : f32 to vector<16x1xf32>
    %94 = arith.divf %92, %93 : vector<16x1xf32>
    %95 = vector.broadcast %87 : vector<16x1xf32> to vector<16x32xf32>
    %96 = arith.subf %79, %95 : vector<16x32xf32>
    %cst_46 = arith.constant 9.99999996E-13 : f32
    %97 = vector.broadcast %cst_46 : f32 to vector<16x1xf32>
    %98 = arith.addf %94, %97 : vector<16x1xf32>
    %99 = math.rsqrt %98 : vector<16x1xf32>
    %100 = vector.broadcast %99 : vector<16x1xf32> to vector<16x32xf32>
    %101 = arith.mulf %96, %100 : vector<16x32xf32>
    %102 = vector.broadcast %81 : vector<1x32xf32> to vector<16x32xf32>
    %103 = arith.mulf %101, %102 : vector<16x32xf32>
    %104 = vector.broadcast %83 : vector<1x32xf32> to vector<16x32xf32>
    %105 = arith.addf %103, %104 : vector<16x32xf32>
    %c0_47 = arith.constant 0 : index
    %c0_48 = arith.constant 0 : index
    %c0_49 = arith.constant 0 : index
    %106 = vector.load %arg11[%c0_47, %c0_48, %c0_49] : memref<2x32x64xf32, #tpu.memory_space<vmem>>, vector<1x32x64xf32>
    %107 = vector.shape_cast %106 : vector<1x32x64xf32> to vector<32x64xf32>
    %cst_50 = arith.constant dense<0.000000e+00> : vector<16x64xf32>
    %108 = tpu.matmul %105, %107, %cst_50 {dimension_numbers = #tpu.dot_dimension_numbers<[1], [0], [0], [1], [0, 0, 1, 1], [], []>} : vector<16x32xf32>, vector<32x64xf32>, vector<16x64xf32> -> vector<16x64xf32>
    %c0_51 = arith.constant 0 : index
    %c0_52 = arith.constant 0 : index
    %c0_53 = arith.constant 0 : index
    %109 = vector.load %arg12[%c0_51, %c0_52, %c0_53] : memref<2x1x64xf32, #tpu.memory_space<vmem>>, vector<1x1x64xf32>
    %110 = vector.shape_cast %109 : vector<1x1x64xf32> to vector<1x64xf32>
    %111 = vector.broadcast %110 : vector<1x64xf32> to vector<16x64xf32>
    %112 = arith.addf %108, %111 : vector<16x64xf32>
    %113 = arith.mulf %112, %112 : vector<16x64xf32>
    %114 = arith.mulf %112, %113 : vector<16x64xf32>
    %cst_54 = arith.constant 4.471500e-02 : f32
    %115 = vector.broadcast %cst_54 : f32 to vector<16x64xf32>
    %116 = arith.mulf %115, %114 : vector<16x64xf32>
    %117 = arith.addf %112, %116 : vector<16x64xf32>
    %cst_55 = arith.constant 0.797884583 : f32
    %118 = vector.broadcast %cst_55 : f32 to vector<16x64xf32>
    %119 = arith.mulf %118, %117 : vector<16x64xf32>
    %120 = math.tanh %119 : vector<16x64xf32>
    %cst_56 = arith.constant 1.000000e+00 : f32
    %121 = vector.broadcast %cst_56 : f32 to vector<16x64xf32>
    %122 = arith.addf %121, %120 : vector<16x64xf32>
    %cst_57 = arith.constant 5.000000e-01 : f32
    %123 = vector.broadcast %cst_57 : f32 to vector<16x64xf32>
    %124 = arith.mulf %123, %122 : vector<16x64xf32>
    %125 = arith.mulf %112, %124 : vector<16x64xf32>
    %c0_58 = arith.constant 0 : index
    %c0_59 = arith.constant 0 : index
    %c0_60 = arith.constant 0 : index
    %126 = vector.load %arg13[%c0_58, %c0_59, %c0_60] : memref<2x64x32xf32, #tpu.memory_space<vmem>>, vector<1x64x32xf32>
    %127 = vector.shape_cast %126 : vector<1x64x32xf32> to vector<64x32xf32>
    %cst_61 = arith.constant dense<0.000000e+00> : vector<16x32xf32>
    %128 = tpu.matmul %125, %127, %cst_61 {dimension_numbers = #tpu.dot_dimension_numbers<[1], [0], [0], [1], [0, 0, 1, 1], [], []>} : vector<16x64xf32>, vector<64x32xf32>, vector<16x32xf32> -> vector<16x32xf32>
    %c0_62 = arith.constant 0 : index
    %c0_63 = arith.constant 0 : index
    %c0_64 = arith.constant 0 : index
    %129 = vector.load %arg14[%c0_62, %c0_63, %c0_64] : memref<2x1x32xf32, #tpu.memory_space<vmem>>, vector<1x1x32xf32>
    %130 = vector.shape_cast %129 : vector<1x1x32xf32> to vector<1x32xf32>
    %131 = vector.broadcast %130 : vector<1x32xf32> to vector<16x32xf32>
    %132 = arith.addf %128, %131 : vector<16x32xf32>
    %133 = arith.addf %105, %132 : vector<16x32xf32>
    %c0_65 = arith.constant 0 : index
    %c0_66 = arith.constant 0 : index
    %c0_67 = arith.constant 0 : index
    %134 = vector.load %arg15[%c0_65, %c0_66, %c0_67] : memref<2x1x32xf32, #tpu.memory_space<vmem>>, vector<1x1x32xf32>
    %135 = vector.shape_cast %134 : vector<1x1x32xf32> to vector<1x32xf32>
    %c0_68 = arith.constant 0 : index
    %c0_69 = arith.constant 0 : index
    %c0_70 = arith.constant 0 : index
    %136 = vector.load %arg16[%c0_68, %c0_69, %c0_70] : memref<2x1x32xf32, #tpu.memory_space<vmem>>, vector<1x1x32xf32>
    %137 = vector.shape_cast %136 : vector<1x1x32xf32> to vector<1x32xf32>
    %cst_71 = arith.constant dense<0.000000e+00> : vector<16xf32>
    %138 = vector.multi_reduction <add>, %133, %cst_71 [1] : vector<16x32xf32> to vector<16xf32>
    %139 = vector.shape_cast %138 : vector<16xf32> to vector<16x1xf32>
    %cst_72 = arith.constant 3.200000e+01 : f32
    %140 = vector.broadcast %cst_72 : f32 to vector<16x1xf32>
    %141 = arith.divf %139, %140 : vector<16x1xf32>
    %142 = vector.broadcast %141 : vector<16x1xf32> to vector<16x32xf32>
    %143 = arith.subf %133, %142 : vector<16x32xf32>
    %144 = arith.mulf %143, %143 : vector<16x32xf32>
    %cst_73 = arith.constant dense<0.000000e+00> : vector<16xf32>
    %145 = vector.multi_reduction <add>, %144, %cst_73 [1] : vector<16x32xf32> to vector<16xf32>
    %146 = vector.shape_cast %145 : vector<16xf32> to vector<16x1xf32>
    %cst_74 = arith.constant 3.200000e+01 : f32
    %147 = vector.broadcast %cst_74 : f32 to vector<16x1xf32>
    %148 = arith.divf %146, %147 : vector<16x1xf32>
    %149 = vector.broadcast %141 : vector<16x1xf32> to vector<16x32xf32>
    %150 = arith.subf %133, %149 : vector<16x32xf32>
    %cst_75 = arith.constant 9.99999996E-13 : f32
    %151 = vector.broadcast %cst_75 : f32 to vector<16x1xf32>
    %152 = arith.addf %148, %151 : vector<16x1xf32>
    %153 = math.rsqrt %152 : vector<16x1xf32>
    %154 = vector.broadcast %153 : vector<16x1xf32> to vector<16x32xf32>
    %155 = arith.mulf %150, %154 : vector<16x32xf32>
    %156 = vector.broadcast %135 : vector<1x32xf32> to vector<16x32xf32>
    %157 = arith.mulf %155, %156 : vector<16x32xf32>
    %158 = vector.broadcast %137 : vector<1x32xf32> to vector<16x32xf32>
    %159 = arith.addf %157, %158 : vector<16x32xf32>
    %c1 = arith.constant 1 : index
    %c0_76 = arith.constant 0 : index
    %c0_77 = arith.constant 0 : index
    %160 = vector.load %arg5[%c1, %c0_76, %c0_77] : memref<2x32x96xf32, #tpu.memory_space<vmem>>, vector<1x32x96xf32>
    %161 = vector.shape_cast %160 : vector<1x32x96xf32> to vector<32x96xf32>
    %cst_78 = arith.constant dense<0.000000e+00> : vector<16x96xf32>
    %162 = tpu.matmul %159, %161, %cst_78 {dimension_numbers = #tpu.dot_dimension_numbers<[1], [0], [0], [1], [0, 0, 1, 1], [], []>} : vector<16x32xf32>, vector<32x96xf32>, vector<16x96xf32> -> vector<16x96xf32>
    %c1_79 = arith.constant 1 : index
    %c0_80 = arith.constant 0 : index
    %c0_81 = arith.constant 0 : index
    %163 = vector.load %arg6[%c1_79, %c0_80, %c0_81] : memref<2x1x96xf32, #tpu.memory_space<vmem>>, vector<1x1x96xf32>
    %164 = vector.shape_cast %163 : vector<1x1x96xf32> to vector<1x96xf32>
    %165 = vector.broadcast %164 : vector<1x96xf32> to vector<16x96xf32>
    %166 = arith.addf %162, %165 : vector<16x96xf32>
    %167 = vector.shape_cast %166 : vector<16x96xf32> to vector<2x8x96xf32>
    %168 = vector.extract_strided_slice %167 {offsets = [0, 0, 0], sizes = [2, 8, 16], strides = [1, 1, 1]} : vector<2x8x96xf32> to vector<2x8x16xf32>
    %169 = vector.extract_strided_slice %167 {offsets = [0, 0, 32], sizes = [2, 8, 16], strides = [1, 1, 1]} : vector<2x8x96xf32> to vector<2x8x16xf32>
    %170 = vector.extract_strided_slice %167 {offsets = [0, 0, 64], sizes = [2, 8, 16], strides = [1, 1, 1]} : vector<2x8x96xf32> to vector<2x8x16xf32>
    "tpu.trace_start"() <{level = 10 : i32, message = "bqd,bkd->bqk"}> : () -> ()
    %cst_82 = arith.constant dense<0.000000e+00> : vector<2x8x8xf32>
    %171 = tpu.matmul %168, %169, %cst_82 {dimension_numbers = #tpu.dot_dimension_numbers<[2], [2], [1], [1], [0, 0, 0, 1, 1, 1], [0], [0]>} : vector<2x8x16xf32>, vector<2x8x16xf32>, vector<2x8x8xf32> -> vector<2x8x8xf32>
    "tpu.trace_stop"() : () -> ()
    %cst_83 = arith.constant 2.500000e-01 : f32
    %172 = vector.broadcast %cst_83 : f32 to vector<2x8x8xf32>
    %173 = arith.mulf %171, %172 : vector<2x8x8xf32>
    %174 = vector.broadcast %25 : vector<2x1x8xf32> to vector<2x8x8xf32>
    %175 = arith.addf %173, %174 : vector<2x8x8xf32>
    %cst_84 = arith.constant dense<0xFF800000> : vector<2x8xf32>
    %176 = vector.multi_reduction <maximumf>, %175, %cst_84 [2] : vector<2x8x8xf32> to vector<2x8xf32>
    %177 = vector.shape_cast %176 : vector<2x8xf32> to vector<2x8x1xf32>
    %178 = vector.broadcast %177 : vector<2x8x1xf32> to vector<2x8x8xf32>
    %179 = arith.subf %175, %178 : vector<2x8x8xf32>
    %180 = math.exp %179 : vector<2x8x8xf32>
    %cst_85 = arith.constant dense<0.000000e+00> : vector<2x8xf32>
    %181 = vector.multi_reduction <add>, %180, %cst_85 [2] : vector<2x8x8xf32> to vector<2x8xf32>
    %182 = vector.shape_cast %181 : vector<2x8xf32> to vector<2x8x1xf32>
    %183 = vector.broadcast %182 : vector<2x8x1xf32> to vector<2x8x8xf32>
    %184 = arith.divf %180, %183 : vector<2x8x8xf32>
    "tpu.trace_start"() <{level = 10 : i32, message = "bqk,bkd->bqd"}> : () -> ()
    %cst_86 = arith.constant dense<0.000000e+00> : vector<2x8x16xf32>
    %185 = tpu.matmul %184, %170, %cst_86 {dimension_numbers = #tpu.dot_dimension_numbers<[2], [1], [1], [2], [0, 0, 0, 1, 1, 2], [0], [0]>} : vector<2x8x8xf32>, vector<2x8x16xf32>, vector<2x8x16xf32> -> vector<2x8x16xf32>
    "tpu.trace_stop"() : () -> ()
    %186 = vector.extract_strided_slice %167 {offsets = [0, 0, 16], sizes = [2, 8, 16], strides = [1, 1, 1]} : vector<2x8x96xf32> to vector<2x8x16xf32>
    %187 = vector.extract_strided_slice %167 {offsets = [0, 0, 48], sizes = [2, 8, 16], strides = [1, 1, 1]} : vector<2x8x96xf32> to vector<2x8x16xf32>
    %188 = vector.extract_strided_slice %167 {offsets = [0, 0, 80], sizes = [2, 8, 16], strides = [1, 1, 1]} : vector<2x8x96xf32> to vector<2x8x16xf32>
    "tpu.trace_start"() <{level = 10 : i32, message = "bqd,bkd->bqk"}> : () -> ()
    %cst_87 = arith.constant dense<0.000000e+00> : vector<2x8x8xf32>
    %189 = tpu.matmul %186, %187, %cst_87 {dimension_numbers = #tpu.dot_dimension_numbers<[2], [2], [1], [1], [0, 0, 0, 1, 1, 1], [0], [0]>} : vector<2x8x16xf32>, vector<2x8x16xf32>, vector<2x8x8xf32> -> vector<2x8x8xf32>
    "tpu.trace_stop"() : () -> ()
    %cst_88 = arith.constant 2.500000e-01 : f32
    %190 = vector.broadcast %cst_88 : f32 to vector<2x8x8xf32>
    %191 = arith.mulf %189, %190 : vector<2x8x8xf32>
    %192 = vector.broadcast %25 : vector<2x1x8xf32> to vector<2x8x8xf32>
    %193 = arith.addf %191, %192 : vector<2x8x8xf32>
    %cst_89 = arith.constant dense<0xFF800000> : vector<2x8xf32>
    %194 = vector.multi_reduction <maximumf>, %193, %cst_89 [2] : vector<2x8x8xf32> to vector<2x8xf32>
    %195 = vector.shape_cast %194 : vector<2x8xf32> to vector<2x8x1xf32>
    %196 = vector.broadcast %195 : vector<2x8x1xf32> to vector<2x8x8xf32>
    %197 = arith.subf %193, %196 : vector<2x8x8xf32>
    %198 = math.exp %197 : vector<2x8x8xf32>
    %cst_90 = arith.constant dense<0.000000e+00> : vector<2x8xf32>
    %199 = vector.multi_reduction <add>, %198, %cst_90 [2] : vector<2x8x8xf32> to vector<2x8xf32>
    %200 = vector.shape_cast %199 : vector<2x8xf32> to vector<2x8x1xf32>
    %201 = vector.broadcast %200 : vector<2x8x1xf32> to vector<2x8x8xf32>
    %202 = arith.divf %198, %201 : vector<2x8x8xf32>
    "tpu.trace_start"() <{level = 10 : i32, message = "bqk,bkd->bqd"}> : () -> ()
    %cst_91 = arith.constant dense<0.000000e+00> : vector<2x8x16xf32>
    %203 = tpu.matmul %202, %188, %cst_91 {dimension_numbers = #tpu.dot_dimension_numbers<[2], [1], [1], [2], [0, 0, 0, 1, 1, 2], [0], [0]>} : vector<2x8x8xf32>, vector<2x8x16xf32>, vector<2x8x16xf32> -> vector<2x8x16xf32>
    "tpu.trace_stop"() : () -> ()
    %204 = tpu.concatenate %185, %203 in 2 : vector<2x8x16xf32>, vector<2x8x16xf32> -> vector<2x8x32xf32>
    %205 = vector.shape_cast %204 : vector<2x8x32xf32> to vector<16x32xf32>
    %c1_92 = arith.constant 1 : index
    %c0_93 = arith.constant 0 : index
    %c0_94 = arith.constant 0 : index
    %206 = vector.load %arg7[%c1_92, %c0_93, %c0_94] : memref<2x32x32xf32, #tpu.memory_space<vmem>>, vector<1x32x32xf32>
    %207 = vector.shape_cast %206 : vector<1x32x32xf32> to vector<32x32xf32>
    %cst_95 = arith.constant dense<0.000000e+00> : vector<16x32xf32>
    %208 = tpu.matmul %205, %207, %cst_95 {dimension_numbers = #tpu.dot_dimension_numbers<[1], [0], [0], [1], [0, 0, 1, 1], [], []>} : vector<16x32xf32>, vector<32x32xf32>, vector<16x32xf32> -> vector<16x32xf32>
    %c1_96 = arith.constant 1 : index
    %c0_97 = arith.constant 0 : index
    %c0_98 = arith.constant 0 : index
    %209 = vector.load %arg8[%c1_96, %c0_97, %c0_98] : memref<2x1x32xf32, #tpu.memory_space<vmem>>, vector<1x1x32xf32>
    %210 = vector.shape_cast %209 : vector<1x1x32xf32> to vector<1x32xf32>
    %211 = vector.broadcast %210 : vector<1x32xf32> to vector<16x32xf32>
    %212 = arith.addf %208, %211 : vector<16x32xf32>
    %213 = arith.addf %159, %212 : vector<16x32xf32>
    %c1_99 = arith.constant 1 : index
    %c0_100 = arith.constant 0 : index
    %c0_101 = arith.constant 0 : index
    %214 = vector.load %arg9[%c1_99, %c0_100, %c0_101] : memref<2x1x32xf32, #tpu.memory_space<vmem>>, vector<1x1x32xf32>
    %215 = vector.shape_cast %214 : vector<1x1x32xf32> to vector<1x32xf32>
    %c1_102 = arith.constant 1 : index
    %c0_103 = arith.constant 0 : index
    %c0_104 = arith.constant 0 : index
    %216 = vector.load %arg10[%c1_102, %c0_103, %c0_104] : memref<2x1x32xf32, #tpu.memory_space<vmem>>, vector<1x1x32xf32>
    %217 = vector.shape_cast %216 : vector<1x1x32xf32> to vector<1x32xf32>
    %cst_105 = arith.constant dense<0.000000e+00> : vector<16xf32>
    %218 = vector.multi_reduction <add>, %213, %cst_105 [1] : vector<16x32xf32> to vector<16xf32>
    %219 = vector.shape_cast %218 : vector<16xf32> to vector<16x1xf32>
    %cst_106 = arith.constant 3.200000e+01 : f32
    %220 = vector.broadcast %cst_106 : f32 to vector<16x1xf32>
    %221 = arith.divf %219, %220 : vector<16x1xf32>
    %222 = vector.broadcast %221 : vector<16x1xf32> to vector<16x32xf32>
    %223 = arith.subf %213, %222 : vector<16x32xf32>
    %224 = arith.mulf %223, %223 : vector<16x32xf32>
    %cst_107 = arith.constant dense<0.000000e+00> : vector<16xf32>
    %225 = vector.multi_reduction <add>, %224, %cst_107 [1] : vector<16x32xf32> to vector<16xf32>
    %226 = vector.shape_cast %225 : vector<16xf32> to vector<16x1xf32>
    %cst_108 = arith.constant 3.200000e+01 : f32
    %227 = vector.broadcast %cst_108 : f32 to vector<16x1xf32>
    %228 = arith.divf %226, %227 : vector<16x1xf32>
    %229 = vector.broadcast %221 : vector<16x1xf32> to vector<16x32xf32>
    %230 = arith.subf %213, %229 : vector<16x32xf32>
    %cst_109 = arith.constant 9.99999996E-13 : f32
    %231 = vector.broadcast %cst_109 : f32 to vector<16x1xf32>
    %232 = arith.addf %228, %231 : vector<16x1xf32>
    %233 = math.rsqrt %232 : vector<16x1xf32>
    %234 = vector.broadcast %233 : vector<16x1xf32> to vector<16x32xf32>
    %235 = arith.mulf %230, %234 : vector<16x32xf32>
    %236 = vector.broadcast %215 : vector<1x32xf32> to vector<16x32xf32>
    %237 = arith.mulf %235, %236 : vector<16x32xf32>
    %238 = vector.broadcast %217 : vector<1x32xf32> to vector<16x32xf32>
    %239 = arith.addf %237, %238 : vector<16x32xf32>
    %c1_110 = arith.constant 1 : index
    %c0_111 = arith.constant 0 : index
    %c0_112 = arith.constant 0 : index
    %240 = vector.load %arg11[%c1_110, %c0_111, %c0_112] : memref<2x32x64xf32, #tpu.memory_space<vmem>>, vector<1x32x64xf32>
    %241 = vector.shape_cast %240 : vector<1x32x64xf32> to vector<32x64xf32>
    %cst_113 = arith.constant dense<0.000000e+00> : vector<16x64xf32>
    %242 = tpu.matmul %239, %241, %cst_113 {dimension_numbers = #tpu.dot_dimension_numbers<[1], [0], [0], [1], [0, 0, 1, 1], [], []>} : vector<16x32xf32>, vector<32x64xf32>, vector<16x64xf32> -> vector<16x64xf32>
    %c1_114 = arith.constant 1 : index
    %c0_115 = arith.constant 0 : index
    %c0_116 = arith.constant 0 : index
    %243 = vector.load %arg12[%c1_114, %c0_115, %c0_116] : memref<2x1x64xf32, #tpu.memory_space<vmem>>, vector<1x1x64xf32>
    %244 = vector.shape_cast %243 : vector<1x1x64xf32> to vector<1x64xf32>
    %245 = vector.broadcast %244 : vector<1x64xf32> to vector<16x64xf32>
    %246 = arith.addf %242, %245 : vector<16x64xf32>
    %247 = arith.mulf %246, %246 : vector<16x64xf32>
    %248 = arith.mulf %246, %247 : vector<16x64xf32>
    %cst_117 = arith.constant 4.471500e-02 : f32
    %249 = vector.broadcast %cst_117 : f32 to vector<16x64xf32>
    %250 = arith.mulf %249, %248 : vector<16x64xf32>
    %251 = arith.addf %246, %250 : vector<16x64xf32>
    %cst_118 = arith.constant 0.797884583 : f32
    %252 = vector.broadcast %cst_118 : f32 to vector<16x64xf32>
    %253 = arith.mulf %252, %251 : vector<16x64xf32>
    %254 = math.tanh %253 : vector<16x64xf32>
    %cst_119 = arith.constant 1.000000e+00 : f32
    %255 = vector.broadcast %cst_119 : f32 to vector<16x64xf32>
    %256 = arith.addf %255, %254 : vector<16x64xf32>
    %cst_120 = arith.constant 5.000000e-01 : f32
    %257 = vector.broadcast %cst_120 : f32 to vector<16x64xf32>
    %258 = arith.mulf %257, %256 : vector<16x64xf32>
    %259 = arith.mulf %246, %258 : vector<16x64xf32>
    %c1_121 = arith.constant 1 : index
    %c0_122 = arith.constant 0 : index
    %c0_123 = arith.constant 0 : index
    %260 = vector.load %arg13[%c1_121, %c0_122, %c0_123] : memref<2x64x32xf32, #tpu.memory_space<vmem>>, vector<1x64x32xf32>
    %261 = vector.shape_cast %260 : vector<1x64x32xf32> to vector<64x32xf32>
    %cst_124 = arith.constant dense<0.000000e+00> : vector<16x32xf32>
    %262 = tpu.matmul %259, %261, %cst_124 {dimension_numbers = #tpu.dot_dimension_numbers<[1], [0], [0], [1], [0, 0, 1, 1], [], []>} : vector<16x64xf32>, vector<64x32xf32>, vector<16x32xf32> -> vector<16x32xf32>
    %c1_125 = arith.constant 1 : index
    %c0_126 = arith.constant 0 : index
    %c0_127 = arith.constant 0 : index
    %263 = vector.load %arg14[%c1_125, %c0_126, %c0_127] : memref<2x1x32xf32, #tpu.memory_space<vmem>>, vector<1x1x32xf32>
    %264 = vector.shape_cast %263 : vector<1x1x32xf32> to vector<1x32xf32>
    %265 = vector.broadcast %264 : vector<1x32xf32> to vector<16x32xf32>
    %266 = arith.addf %262, %265 : vector<16x32xf32>
    %267 = arith.addf %239, %266 : vector<16x32xf32>
    %c1_128 = arith.constant 1 : index
    %c0_129 = arith.constant 0 : index
    %c0_130 = arith.constant 0 : index
    %268 = vector.load %arg15[%c1_128, %c0_129, %c0_130] : memref<2x1x32xf32, #tpu.memory_space<vmem>>, vector<1x1x32xf32>
    %269 = vector.shape_cast %268 : vector<1x1x32xf32> to vector<1x32xf32>
    %c1_131 = arith.constant 1 : index
    %c0_132 = arith.constant 0 : index
    %c0_133 = arith.constant 0 : index
    %270 = vector.load %arg16[%c1_131, %c0_132, %c0_133] : memref<2x1x32xf32, #tpu.memory_space<vmem>>, vector<1x1x32xf32>
    %271 = vector.shape_cast %270 : vector<1x1x32xf32> to vector<1x32xf32>
    %cst_134 = arith.constant dense<0.000000e+00> : vector<16xf32>
    %272 = vector.multi_reduction <add>, %267, %cst_134 [1] : vector<16x32xf32> to vector<16xf32>
    %273 = vector.shape_cast %272 : vector<16xf32> to vector<16x1xf32>
    %cst_135 = arith.constant 3.200000e+01 : f32
    %274 = vector.broadcast %cst_135 : f32 to vector<16x1xf32>
    %275 = arith.divf %273, %274 : vector<16x1xf32>
    %276 = vector.broadcast %275 : vector<16x1xf32> to vector<16x32xf32>
    %277 = arith.subf %267, %276 : vector<16x32xf32>
    %278 = arith.mulf %277, %277 : vector<16x32xf32>
    %cst_136 = arith.constant dense<0.000000e+00> : vector<16xf32>
    %279 = vector.multi_reduction <add>, %278, %cst_136 [1] : vector<16x32xf32> to vector<16xf32>
    %280 = vector.shape_cast %279 : vector<16xf32> to vector<16x1xf32>
    %cst_137 = arith.constant 3.200000e+01 : f32
    %281 = vector.broadcast %cst_137 : f32 to vector<16x1xf32>
    %282 = arith.divf %280, %281 : vector<16x1xf32>
    %283 = vector.broadcast %275 : vector<16x1xf32> to vector<16x32xf32>
    %284 = arith.subf %267, %283 : vector<16x32xf32>
    %cst_138 = arith.constant 9.99999996E-13 : f32
    %285 = vector.broadcast %cst_138 : f32 to vector<16x1xf32>
    %286 = arith.addf %282, %285 : vector<16x1xf32>
    %287 = math.rsqrt %286 : vector<16x1xf32>
    %288 = vector.broadcast %287 : vector<16x1xf32> to vector<16x32xf32>
    %289 = arith.mulf %284, %288 : vector<16x32xf32>
    %290 = vector.broadcast %269 : vector<1x32xf32> to vector<16x32xf32>
    %291 = arith.mulf %289, %290 : vector<16x32xf32>
    %292 = vector.broadcast %271 : vector<1x32xf32> to vector<16x32xf32>
    %293 = arith.addf %291, %292 : vector<16x32xf32>
    %294 = vector.shape_cast %293 : vector<16x32xf32> to vector<2x8x32xf32>
    %c0_139 = arith.constant 0 : index
    %c0_140 = arith.constant 0 : index
    %295 = vector.load %arg2[%c0_139, %c0_140] : memref<2x8xf32, #tpu.memory_space<vmem>>, vector<2x8xf32>
    %296 = vector.shape_cast %295 : vector<2x8xf32> to vector<2x8x1xf32>
    %297 = vector.broadcast %296 : vector<2x8x1xf32> to vector<2x8x32xf32>
    %298 = arith.mulf %294, %297 : vector<2x8x32xf32>
    %cst_141 = arith.constant dense<0.000000e+00> : vector<2x32xf32>
    %299 = vector.multi_reduction <add>, %298, %cst_141 [1] : vector<2x8x32xf32> to vector<2x32xf32>
    %cst_142 = arith.constant dense<0.000000e+00> : vector<2xf32>
    %300 = vector.multi_reduction <add>, %295, %cst_142 [1] : vector<2x8xf32> to vector<2xf32>
    %301 = vector.shape_cast %300 : vector<2xf32> to vector<2x1xf32>
    %cst_143 = arith.constant 0.000000e+00 : f32
    %302 = vector.broadcast %cst_143 : f32 to vector<2x1xf32>
    %303 = arith.cmpf oeq, %301, %302 : vector<2x1xf32>
    %cst_144 = arith.constant 1.000000e+00 : f32
    %304 = vector.broadcast %cst_144 : f32 to vector<2x1xf32>
    %305 = arith.select %303, %304, %301 : vector<2x1xi1>, vector<2x1xf32>
    %306 = vector.broadcast %305 : vector<2x1xf32> to vector<2x32xf32>
    %307 = arith.divf %299, %306 : vector<2x32xf32>
    %c0_145 = arith.constant 0 : index
    %c0_146 = arith.constant 0 : index
    %308 = vector.load %arg17[%c0_145, %c0_146] : memref<32x128xf32, #tpu.memory_space<vmem>>, vector<32x128xf32>
    %cst_147 = arith.constant dense<0.000000e+00> : vector<2x128xf32>
    %309 = tpu.matmul %307, %308, %cst_147 {dimension_numbers = #tpu.dot_dimension_numbers<[1], [0], [0], [1], [0, 0, 1, 1], [], []>} : vector<2x32xf32>, vector<32x128xf32>, vector<2x128xf32> -> vector<2x128xf32>
    %c0_148 = arith.constant 0 : index
    %c0_149 = arith.constant 0 : index
    %310 = vector.load %arg18[%c0_148, %c0_149] : memref<1x128xf32, #tpu.memory_space<vmem>>, vector<1x128xf32>
    %311 = vector.broadcast %310 : vector<1x128xf32> to vector<2x128xf32>
    %312 = arith.addf %309, %311 : vector<2x128xf32>
    %c0_150 = arith.constant 0 : index
    %c0_151 = arith.constant 0 : index
    %313 = vector.load %arg19[%c0_150, %c0_151] : memref<2x128xf32, #tpu.memory_space<vmem>>, vector<2x128xf32>
    tpu.vector_store %arg19[%c0_150, %c0_151], %312 {strides = array<i32>} : memref<2x128xf32, #tpu.memory_space<vmem>>, vector<2x128xf32>,
    return
  }
}

</mosaic_0001>

<llo_original>
// kernel: bert_classification_forward.1
$region0: #{bert_classification_forward.1}
  #allocation0 [shape = 'u32[]', space=smem, size = 0x4, offset = 0x4, fixed_abs, tag = 'smem constant byte address 0x4 - core index']
  #allocation1 [shape = 'u32[144,128]{1,0:T(1,128)}', space=vmem, size = 0x12000, scoped, tag = 'internal scratch']
  %s0 = inlined_call_operand.vmem [shape: f32[16,32], index: 0, kind: input, shape index: {}]
  %s1 = inlined_call_operand.vmem [shape: f32[2,1,8], index: 1, kind: input, shape index: {}]
  %s2 = inlined_call_operand.vmem [shape: f32[2,8], index: 2, kind: input, shape index: {}]
  %s3 = inlined_call_operand.vmem [shape: f32[1,32], index: 3, kind: input, shape index: {}]
  %s4 = inlined_call_operand.vmem [shape: f32[1,32], index: 4, kind: input, shape index: {}]
  %s5 = inlined_call_operand.vmem [shape: f32[2,32,96], index: 5, kind: input, shape index: {}]
  %s6 = inlined_call_operand.vmem [shape: f32[2,1,96], index: 6, kind: input, shape index: {}]
  %s7 = inlined_call_operand.vmem [shape: f32[2,32,32], index: 7, kind: input, shape index: {}]
  %s8 = inlined_call_operand.vmem [shape: f32[2,1,32], index: 8, kind: input, shape index: {}]
  %s9 = inlined_call_operand.vmem [shape: f32[2,1,32], index: 9, kind: input, shape index: {}]
  %s10 = inlined_call_operand.vmem [shape: f32[2,1,32], index: 10, kind: input, shape index: {}]
  %s11 = inlined_call_operand.vmem [shape: f32[2,32,64], index: 11, kind: input, shape index: {}]
  %s12 = inlined_call_operand.vmem [shape: f32[2,1,64], index: 12, kind: input, shape index: {}]
  %s13 = inlined_call_operand.vmem [shape: f32[2,64,32], index: 13, kind: input, shape index: {}]
  %s14 = inlined_call_operand.vmem [shape: f32[2,1,32], index: 14, kind: input, shape index: {}]
  %s15 = inlined_call_operand.vmem [shape: f32[2,1,32], index: 15, kind: input, shape index: {}]
  %s16 = inlined_call_operand.vmem [shape: f32[2,1,32], index: 16, kind: input, shape index: {}]
  %s17 = inlined_call_operand.vmem [shape: f32[32,128], index: 17, kind: input, shape index: {}]
  %s18 = inlined_call_operand.vmem [shape: f32[1,128], index: 18, kind: input, shape index: {}]
  %s19 = inlined_call_operand.vmem [shape: f32[2,128], index: 19, kind: output, shape index: {}]
  %s20 = sld [smem:[#allocation0]]
  $region86: #{bert_classification_forward.1} parent=0
    _
  %s22 = ssub.s32 1, %s20
  %s23 = scalar_select 0, %s22, %s20
  // Predicated region
  $region2: #{bert_classification_forward.1} parent=0 // pred_check
    _
  $region3: #{bert_classification_forward.1} parent=0 // pred_check_branch
    %25 = sbr.rel (0) target = $region5
  $region4: #{bert_classification_forward.1} parent=0 // pred_region
    _
  $region5: #{bert_classification_forward.1} parent=0 // pred_fallthru
    _
  // Predicated region
  $region6: #{bert_classification_forward.1} parent=0 // pred_check
    _
  $region7: #{bert_classification_forward.1} parent=0 // pred_check_branch
    %27 = sbr.rel (0) target = $region9
  $region8: #{bert_classification_forward.1} parent=0 // pred_region
    _
  $region9: #{bert_classification_forward.1} parent=0 // pred_fallthru
    _
  // Predicated region
  $region10: #{bert_classification_forward.1} parent=0 // pred_check
    _
  $region11: #{bert_classification_forward.1} parent=0 // pred_check_branch
    %29 = sbr.rel (0) target = $region13
  $region12: #{bert_classification_forward.1} parent=0 // pred_region
    _
  $region13: #{bert_classification_forward.1} parent=0 // pred_fallthru
    _
  // Predicated region
  $region14: #{bert_classification_forward.1} parent=0 // pred_check
    _
  $region15: #{bert_classification_forward.1} parent=0 // pred_check_branch
    %31 = sbr.rel (0) target = $region17
  $region16: #{bert_classification_forward.1} parent=0 // pred_region
    _
  $region17: #{bert_classification_forward.1} parent=0 // pred_fallthru
    _
  // Predicated region
  $region18: #{bert_classification_forward.1} parent=0 // pred_check
    _
  $region19: #{bert_classification_forward.1} parent=0 // pred_check_branch
    %33 = sbr.rel (0) target = $region21
  $region20: #{bert_classification_forward.1} parent=0 // pred_region
    _
  $region21: #{bert_classification_forward.1} parent=0 // pred_fallthru
    _
  // Predicated region
  $region22: #{bert_classification_forward.1} parent=0 // pred_check
    _
  $region23: #{bert_classification_forward.1} parent=0 // pred_check_branch
    %35 = sbr.rel (0) target = $region25
  $region24: #{bert_classification_forward.1} parent=0 // pred_region
    _
  $region25: #{bert_classification_forward.1} parent=0 // pred_fallthru
    _
  // Predicated region
  $region26: #{bert_classification_forward.1} parent=0 // pred_check
    _
  $region27: #{bert_classification_forward.1} parent=0 // pred_check_branch
    %37 = sbr.rel (0) target = $region29
  $region28: #{bert_classification_forward.1} parent=0 // pred_region
    _
  $region29: #{bert_classification_forward.1} parent=0 // pred_fallthru
    _
  // Predicated region
  $region30: #{bert_classification_forward.1} parent=0 // pred_check
    _
  $region31: #{bert_classification_forward.1} parent=0 // pred_check_branch
    %39 = sbr.rel (0) target = $region33
  $region32: #{bert_classification_forward.1} parent=0 // pred_region
    _
  $region33: #{bert_classification_forward.1} parent=0 // pred_fallthru
    _
  // Predicated region
  $region34: #{bert_classification_forward.1} parent=0 // pred_check
    _
  $region35: #{bert_classification_forward.1} parent=0 // pred_check_branch
    %41 = sbr.rel (0) target = $region37
  $region36: #{bert_classification_forward.1} parent=0 // pred_region
    _
  $region37: #{bert_classification_forward.1} parent=0 // pred_fallthru
    _
  // Predicated region
  $region38: #{bert_classification_forward.1} parent=0 // pred_check
    _
  $region39: #{bert_classification_forward.1} parent=0 // pred_check_branch
    %43 = sbr.rel (0) target = $region41
  $region40: #{bert_classification_forward.1} parent=0 // pred_region
    _
  $region41: #{bert_classification_forward.1} parent=0 // pred_fallthru
    _
  // Predicated region
  $region42: #{bert_classification_forward.1} parent=0 // pred_check
    _
  $region43: #{bert_classification_forward.1} parent=0 // pred_check_branch
    %45 = sbr.rel (0) target = $region45
  $region44: #{bert_classification_forward.1} parent=0 // pred_region
    _
  $region45: #{bert_classification_forward.1} parent=0 // pred_fallthru
    _
  // Predicated region
  $region46: #{bert_classification_forward.1} parent=0 // pred_check
    _
  $region47: #{bert_classification_forward.1} parent=0 // pred_check_branch
    %47 = sbr.rel (0) target = $region49
  $region48: #{bert_classification_forward.1} parent=0 // pred_region
    _
  $region49: #{bert_classification_forward.1} parent=0 // pred_fallthru
    _
  // Predicated region
  $region50: #{bert_classification_forward.1} parent=0 // pred_check
    _
  $region51: #{bert_classification_forward.1} parent=0 // pred_check_branch
    %49 = sbr.rel (0) target = $region53
  $region52: #{bert_classification_forward.1} parent=0 // pred_region
    _
  $region53: #{bert_classification_forward.1} parent=0 // pred_fallthru
    _
  // Predicated region
  $region54: #{bert_classification_forward.1} parent=0 // pred_check
    _
  $region55: #{bert_classification_forward.1} parent=0 // pred_check_branch
    %51 = sbr.rel (0) target = $region57
  $region56: #{bert_classification_forward.1} parent=0 // pred_region
    _
  $region57: #{bert_classification_forward.1} parent=0 // pred_fallthru
    _
  // Predicated region
  $region58: #{bert_classification_forward.1} parent=0 // pred_check
    _
  $region59: #{bert_classification_forward.1} parent=0 // pred_check_branch
    %53 = sbr.rel (0) target = $region61
  $region60: #{bert_classification_forward.1} parent=0 // pred_region
    _
  $region61: #{bert_classification_forward.1} parent=0 // pred_fallthru
    _
  // Predicated region
  $region62: #{bert_classification_forward.1} parent=0 // pred_check
    _
  $region63: #{bert_classification_forward.1} parent=0 // pred_check_branch
    %55 = sbr.rel (0) target = $region65
  $region64: #{bert_classification_forward.1} parent=0 // pred_region
    _
  $region65: #{bert_classification_forward.1} parent=0 // pred_fallthru
    _
  // Predicated region
  $region66: #{bert_classification_forward.1} parent=0 // pred_check
    _
  $region67: #{bert_classification_forward.1} parent=0 // pred_check_branch
    %57 = sbr.rel (0) target = $region69
  $region68: #{bert_classification_forward.1} parent=0 // pred_region
    _
  $region69: #{bert_classification_forward.1} parent=0 // pred_fallthru
    _
  // Predicated region
  $region70: #{bert_classification_forward.1} parent=0 // pred_check
    _
  $region71: #{bert_classification_forward.1} parent=0 // pred_check_branch
    %59 = sbr.rel (0) target = $region73
  $region72: #{bert_classification_forward.1} parent=0 // pred_region
    _
  $region73: #{bert_classification_forward.1} parent=0 // pred_fallthru
    _
  // Predicated region
  $region74: #{bert_classification_forward.1} parent=0 // pred_check
    _
  $region75: #{bert_classification_forward.1} parent=0 // pred_check_branch
    %61 = sbr.rel (0) target = $region77
  $region76: #{bert_classification_forward.1} parent=0 // pred_region
    _
  $region77: #{bert_classification_forward.1} parent=0 // pred_fallthru
    _
  %v62 = vld [vmem:[%s0] sm:$0xff]
  %v63 = vld [vmem:[%s0 + $0x8] sm:$0xff]
  %v64 = vld [vmem:[%s3] sm:$0x1]
  %v65 = vld [vmem:[%s4] sm:$0x1]
  %vm66 = vcmask 261120
  %v67 = vsel %vm66, %v62, 0.0
  %68 = vadd.xlane.f32.xlu0 %v67
  %v69 = vpop.xlane.xlu0 %68
  %v70 = vsel %vm66, %v63, 0.0
  %71 = vadd.xlane.f32.xlu0 %v70
  %v72 = vpop.xlane.xlu0 %71
  %v73 = vrcp.pop 32.0
  %v74 = vmul.f32 %v69, %v73
  %v75 = vmul.f32 %v72, %v73
  %v76 = vsub.f32 %v62, %v74
  %v77 = vsub.f32 %v63, %v75
  %v78 = vmul.f32 %v76, %v76
  %v79 = vmul.f32 %v77, %v77
  %v80 = vsel %vm66, %v78, 0.0
  %81 = vadd.xlane.f32.xlu0 %v80
  %v82 = vpop.xlane.xlu0 %81
  %v83 = vsel %vm66, %v79, 0.0
  %84 = vadd.xlane.f32.xlu0 %v83
  %v85 = vpop.xlane.xlu0 %84
  %v86 = vmul.f32 %v82, %v73
  %v87 = vmul.f32 %v85, %v73
  %v88 = vadd.f32 %v86, 1e-12
  %v89 = vadd.f32 %v87, 1e-12
  %v90 = vrsqrt.pop %v88
  %v91 = vrsqrt.pop %v89
  %v92 = vmul.f32 %v76, %v90
  %v93 = vmul.f32 %v77, %v91
  %v95 = vlaneseq
  %v96 = vshrl.u32 %v95, 7
  %v97 = vsub.s32 0, %v96
  %v98 = vrot.slane %v64, %v97
  %v100 = vmul.f32 %v92, %v98
  %v101 = vmul.f32 %v93, %v98
  %v103 = vlaneseq
  %v104 = vshrl.u32 %v103, 7
  %v105 = vsub.s32 0, %v104
  %v106 = vrot.slane %v65, %v105
  %v108 = vadd.f32 %v100, %v106
  %v109 = vadd.f32 %v101, %v106
  %v110 = vld [vmem:[%s1] sm:$0x1]
  %v111 = vld [vmem:[%s1 + $0x1] sm:$0x1]
  %v112 = vld [vmem:[%s5] sm:$0xff]
  %v113 = vld [vmem:[%s5 + $0x8] sm:$0xff]
  %v114 = vld [vmem:[%s5 + $0x10] sm:$0xff]
  %v115 = vld [vmem:[%s5 + $0x18] sm:$0xff]
  %v116 = vld [vmem:[%s6] sm:$0x1]
  %v118 = vlaneseq
  %v119 = vshrl.u32 %v118, 7
  %v120 = vsub.s32 0, %v119
  %v121 = vrot.slane %v116, %v120
  %v124 = vsel %vm66, %v108, 0
  %v127 = vsel %vm66, %v109, 0
  %129 = vmatprep.subr.mxu0 0.0
  %130 = vmatpush1.msra.mxu0 0.0
  %131 = vmatprep.subr.mxu0 0.0
  %132 = vmatpush1.msra.mxu0 0.0
  %133 = vmatprep.subr.mxu0 0.0
  %134 = vmatpush1.msra.mxu0 0.0
  %135 = vmatprep.subr.mxu0 0.0
  %136 = vmatpush1.msra.mxu0 0.0
  %137 = vmatprep.subr.mxu0 0.0
  %138 = vmatpush1.msra.mxu0 0.0
  %139 = vmatprep.subr.mxu0 0.0
  %140 = vmatpush1.msra.mxu0 0.0
  %141 = vmatprep.subr.mxu0 0.0
  %142 = vmatpush1.msra.mxu0 0.0
  %143 = vmatprep.subr.mxu0 0.0
  %144 = vmatpush1.msra.mxu0 0.0
  %145 = vmatprep.subr.mxu0 0.0
  %146 = vmatpush1.msra.mxu0 0.0
  %147 = vmatprep.subr.mxu0 0.0
  %148 = vmatpush1.msra.mxu0 0.0
  %149 = vmatprep.subr.mxu0 0.0
  %150 = vmatpush1.msra.mxu0 0.0
  %151 = vmatprep.subr.mxu0 0.0
  %152 = vmatpush1.msra.mxu0 0.0
  %153 = vmatprep.subr.mxu0 0.0
  %154 = vmatpush1.msra.mxu0 %v115
  %155 = vmatprep.subr.mxu0 0.0
  %156 = vmatpush1.msra.mxu0 %v114
  %157 = vmatprep.subr.mxu0 0.0
  %158 = vmatpush1.msra.mxu0 %v113
  %159 = vmatprep.subr.mxu0 0.0
  %160 = vmatpush1.msra.mxu0 %v112
  %161 = vmatprep.subr.mxu0 0.0
  %162 = vmatpush2.msra.mxu0 0.0
  %163 = vmatprep.subr.mxu0 0.0
  %164 = vmatpush2.msra.mxu0 0.0
  %165 = vmatprep.subr.mxu0 0.0
  %166 = vmatpush2.msra.mxu0 0.0
  %167 = vmatprep.subr.mxu0 0.0
  %168 = vmatpush2.msra.mxu0 0.0
  %169 = vmatprep.subr.mxu0 0.0
  %170 = vmatpush2.msra.mxu0 0.0
  %171 = vmatprep.subr.mxu0 0.0
  %172 = vmatpush2.msra.mxu0 0.0
  %173 = vmatprep.subr.mxu0 0.0
  %174 = vmatpush2.msra.mxu0 0.0
  %175 = vmatprep.subr.mxu0 0.0
  %176 = vmatpush2.msra.mxu0 0.0
  %177 = vmatprep.subr.mxu0 0.0
  %178 = vmatpush2.msra.mxu0 0.0
  %179 = vmatprep.subr.mxu0 0.0
  %180 = vmatpush2.msra.mxu0 0.0
  %181 = vmatprep.subr.mxu0 0.0
  %182 = vmatpush2.msra.mxu0 0.0
  %183 = vmatprep.subr.mxu0 0.0
  %184 = vmatpush2.msra.mxu0 0.0
  %185 = vmatprep.subr.mxu0 0.0
  %186 = vmatpush2.msra.mxu0 0.0
  %187 = vmatprep.subr.mxu0 0.0
  %188 = vmatpush2.msra.mxu0 0.0
  %189 = vmatprep.subr.mxu0 0.0
  %190 = vmatpush2.msra.mxu0 0.0
  %191 = vmatprep.subr.mxu0 0.0
  %192 = vmatpush2.msra.mxu0 0.0
  %193 = vmatprep.mubr.f32.mxu0 0.0
  %194 = vmatmul.mubr.f32.gmra.mxu0 %v124
  %v195 = vpop.f32.mrf.mxu0
  %v196 = vadd.f32 %v121, %v195
  %v197 = vpop.f32.mrf.mxu0
  %198 = vmatprep.mubr.f32.mxu0 0.0
  %199 = vmatmul.mubr.f32.gmra.mxu0 %v127
  %v200 = vpop.f32.mrf.mxu0
  %v201 = vadd.f32 %v121, %v200
  %v202 = vpop.f32.mrf.mxu0
  %203 = vdwg.mxu0
  %205 = vrot.lane.b32.xlu0 %v196, 96
  %v206 = vpop.permute.xlu0 %205
  %vm207 = vcmask 130048
  %v208 = vsel %vm207, %v196, 0
  %v210 = vsel %vm207, %v206, 0
  %212 = vmatprep.subr.mxu0 0.0
  %213 = vmatpush1.xpose.msra.mxu0 0.0
  %214 = vmatprep.subr.mxu0 0.0
  %215 = vmatpush1.xpose.msra.mxu0 0.0
  %216 = vmatprep.subr.mxu0 0.0
  %217 = vmatpush1.xpose.msra.mxu0 0.0
  %218 = vmatprep.subr.mxu0 0.0
  %219 = vmatpush1.xpose.msra.mxu0 0.0
  %220 = vmatprep.subr.mxu0 0.0
  %221 = vmatpush1.xpose.msra.mxu0 0.0
  %222 = vmatprep.subr.mxu0 0.0
  %223 = vmatpush1.xpose.msra.mxu0 0.0
  %224 = vmatprep.subr.mxu0 0.0
  %225 = vmatpush1.xpose.msra.mxu0 0.0
  %226 = vmatprep.subr.mxu0 0.0
  %227 = vmatpush1.xpose.msra.mxu0 0.0
  %228 = vmatprep.subr.mxu0 0.0
  %229 = vmatpush1.xpose.msra.mxu0 0.0
  %230 = vmatprep.subr.mxu0 0.0
  %231 = vmatpush1.xpose.msra.mxu0 0.0
  %232 = vmatprep.subr.mxu0 0.0
  %233 = vmatpush1.xpose.msra.mxu0 0.0
  %234 = vmatprep.subr.mxu0 0.0
  %235 = vmatpush1.xpose.msra.mxu0 0.0
  %236 = vmatprep.subr.mxu0 0.0
  %237 = vmatpush1.xpose.msra.mxu0 0.0
  %238 = vmatprep.subr.mxu0 0.0
  %239 = vmatpush1.xpose.msra.mxu0 0.0
  %240 = vmatprep.subr.mxu0 0.0
  %241 = vmatpush1.xpose.msra.mxu0 0.0
  %242 = vmatprep.subr.mxu0 0.0
  %243 = vmatpush1.xpose.msra.mxu0 %v210
  %244 = vmatprep.subr.mxu0 0.0
  %245 = vmatpush2.xpose.msra.mxu0 0.0
  %246 = vmatprep.subr.mxu0 0.0
  %247 = vmatpush2.xpose.msra.mxu0 0.0
  %248 = vmatprep.subr.mxu0 0.0
  %249 = vmatpush2.xpose.msra.mxu0 0.0
  %250 = vmatprep.subr.mxu0 0.0
  %251 = vmatpush2.xpose.msra.mxu0 0.0
  %252 = vmatprep.subr.mxu0 0.0
  %253 = vmatpush2.xpose.msra.mxu0 0.0
  %254 = vmatprep.subr.mxu0 0.0
  %255 = vmatpush2.xpose.msra.mxu0 0.0
  %256 = vmatprep.subr.mxu0 0.0
  %257 = vmatpush2.xpose.msra.mxu0 0.0
  %258 = vmatprep.subr.mxu0 0.0
  %259 = vmatpush2.xpose.msra.mxu0 0.0
  %260 = vmatprep.subr.mxu0 0.0
  %261 = vmatpush2.xpose.msra.mxu0 0.0
  %262 = vmatprep.subr.mxu0 0.0
  %263 = vmatpush2.xpose.msra.mxu0 0.0
  %264 = vmatprep.subr.mxu0 0.0
  %265 = vmatpush2.xpose.msra.mxu0 0.0
  %266 = vmatprep.subr.mxu0 0.0
  %267 = vmatpush2.xpose.msra.mxu0 0.0
  %268 = vmatprep.subr.mxu0 0.0
  %269 = vmatpush2.xpose.msra.mxu0 0.0
  %270 = vmatprep.subr.mxu0 0.0
  %271 = vmatpush2.xpose.msra.mxu0 0.0
  %272 = vmatprep.subr.mxu0 0.0
  %273 = vmatpush2.xpose.msra.mxu0 0.0
  %274 = vmatprep.subr.mxu0 0.0
  %275 = vmatpush2.xpose.msra.mxu0 0.0
  %276 = vmatprep.mubr.f32.mxu0 0.0
  %277 = vmatmul.mubr.f32.gmra.mxu0 %v208
  %v278 = vpop.f32.mrf.mxu0
  %v279 = vadd.f32 0.0, %v278
  %v280 = vpop.f32.mrf.mxu0
  %281 = vdwg.mxu0
  %283 = vrot.lane.b32.xlu0 %v201, 96
  %v284 = vpop.permute.xlu0 %283
  %v285 = vsel %vm207, %v201, 0
  %v287 = vsel %vm207, %v284, 0
  %289 = vmatprep.subr.mxu0 0.0
  %290 = vmatpush1.xpose.msra.mxu0 0.0
  %291 = vmatprep.subr.mxu0 0.0
  %292 = vmatpush1.xpose.msra.mxu0 0.0
  %293 = vmatprep.subr.mxu0 0.0
  %294 = vmatpush1.xpose.msra.mxu0 0.0
  %295 = vmatprep.subr.mxu0 0.0
  %296 = vmatpush1.xpose.msra.mxu0 0.0
  %297 = vmatprep.subr.mxu0 0.0
  %298 = vmatpush1.xpose.msra.mxu0 0.0
  %299 = vmatprep.subr.mxu0 0.0
  %300 = vmatpush1.xpose.msra.mxu0 0.0
  %301 = vmatprep.subr.mxu0 0.0
  %302 = vmatpush1.xpose.msra.mxu0 0.0
  %303 = vmatprep.subr.mxu0 0.0
  %304 = vmatpush1.xpose.msra.mxu0 0.0
  %305 = vmatprep.subr.mxu0 0.0
  %306 = vmatpush1.xpose.msra.mxu0 0.0
  %307 = vmatprep.subr.mxu0 0.0
  %308 = vmatpush1.xpose.msra.mxu0 0.0
  %309 = vmatprep.subr.mxu0 0.0
  %310 = vmatpush1.xpose.msra.mxu0 0.0
  %311 = vmatprep.subr.mxu0 0.0
  %312 = vmatpush1.xpose.msra.mxu0 0.0
  %313 = vmatprep.subr.mxu0 0.0
  %314 = vmatpush1.xpose.msra.mxu0 0.0
  %315 = vmatprep.subr.mxu0 0.0
  %316 = vmatpush1.xpose.msra.mxu0 0.0
  %317 = vmatprep.subr.mxu0 0.0
  %318 = vmatpush1.xpose.msra.mxu0 0.0
  %319 = vmatprep.subr.mxu0 0.0
  %320 = vmatpush1.xpose.msra.mxu0 %v287
  %321 = vmatprep.subr.mxu0 0.0
  %322 = vmatpush2.xpose.msra.mxu0 0.0
  %323 = vmatprep.subr.mxu0 0.0
  %324 = vmatpush2.xpose.msra.mxu0 0.0
  %325 = vmatprep.subr.mxu0 0.0
  %326 = vmatpush2.xpose.msra.mxu0 0.0
  %327 = vmatprep.subr.mxu0 0.0
  %328 = vmatpush2.xpose.msra.mxu0 0.0
  %329 = vmatprep.subr.mxu0 0.0
  %330 = vmatpush2.xpose.msra.mxu0 0.0
  %331 = vmatprep.subr.mxu0 0.0
  %332 = vmatpush2.xpose.msra.mxu0 0.0
  %333 = vmatprep.subr.mxu0 0.0
  %334 = vmatpush2.xpose.msra.mxu0 0.0
  %335 = vmatprep.subr.mxu0 0.0
  %336 = vmatpush2.xpose.msra.mxu0 0.0
  %337 = vmatprep.subr.mxu0 0.0
  %338 = vmatpush2.xpose.msra.mxu0 0.0
  %339 = vmatprep.subr.mxu0 0.0
  %340 = vmatpush2.xpose.msra.mxu0 0.0
  %341 = vmatprep.subr.mxu0 0.0
  %342 = vmatpush2.xpose.msra.mxu0 0.0
  %343 = vmatprep.subr.mxu0 0.0
  %344 = vmatpush2.xpose.msra.mxu0 0.0
  %345 = vmatprep.subr.mxu0 0.0
  %346 = vmatpush2.xpose.msra.mxu0 0.0
  %347 = vmatprep.subr.mxu0 0.0
  %348 = vmatpush2.xpose.msra.mxu0 0.0
  %349 = vmatprep.subr.mxu0 0.0
  %350 = vmatpush2.xpose.msra.mxu0 0.0
  %351 = vmatprep.subr.mxu0 0.0
  %352 = vmatpush2.xpose.msra.mxu0 0.0
  %353 = vmatprep.mubr.f32.mxu0 0.0
  %354 = vmatmul.mubr.f32.gmra.mxu0 %v285
  %v355 = vpop.f32.mrf.mxu0
  %v356 = vadd.f32 0.0, %v355
  %v357 = vpop.f32.mrf.mxu0
  %358 = vdwg.mxu0
  %v359 = vmul.f32 %v279, 0.25
  %v360 = vmul.f32 %v356, 0.25
  %v363 = vlaneseq
  %v364 = vshrl.u32 %v363, 7
  %v365 = vsub.s32 0, %v364
  %v366 = vrot.slane %v110, %v365
  %v367 = vlaneseq
  %v368 = vshrl.u32 %v367, 7
  %v369 = vsub.s32 0, %v368
  %v370 = vrot.slane %v111, %v369
  %v373 = vadd.f32 %v359, %v366
  %v374 = vadd.f32 %v360, %v370
  %vm375 = vcmask 64512
  %v376 = vsel %vm375, %v373, -inf
  %377 = vmax.xlane.f32.xlu0 %v376
  %v378 = vpop.xlane.xlu0 %377
  %v379 = vsel %vm375, %v374, -inf
  %380 = vmax.xlane.f32.xlu0 %v379
  %v381 = vpop.xlane.xlu0 %380
  %v382 = vsub.f32 %v373, %v378
  %v383 = vsub.f32 %v374, %v381
  %v384 = vmul.f32 %v382, 1.442695
  %v385 = vpow.pop %v384
  %v386 = vmul.f32 %v383, 1.442695
  %v387 = vpow.pop %v386
  %v388 = vsel %vm375, %v385, 0.0
  %389 = vadd.xlane.f32.xlu0 %v388
  %v390 = vpop.xlane.xlu0 %389
  %v391 = vsel %vm375, %v387, 0.0
  %392 = vadd.xlane.f32.xlu0 %v391
  %v393 = vpop.xlane.xlu0 %392
  %v394 = vrcp.pop %v390
  %v395 = vmul.f32 %v385, %v394
  %v396 = vrcp.pop %v393
  %v397 = vmul.f32 %v387, %v396
  %398 = vrot.lane.b32.xlu0 %v196, 64
  %v399 = vpop.permute.xlu0 %398
  %v402 = vsel %vm375, %v395, 0
  %404 = vmatprep.subr.mxu0 0.0
  %405 = vmatpush1.msra.mxu0 0.0
  %406 = vmatprep.subr.mxu0 0.0
  %407 = vmatpush1.msra.mxu0 0.0
  %408 = vmatprep.subr.mxu0 0.0
  %409 = vmatpush1.msra.mxu0 0.0
  %410 = vmatprep.subr.mxu0 0.0
  %411 = vmatpush1.msra.mxu0 0.0
  %412 = vmatprep.subr.mxu0 0.0
  %413 = vmatpush1.msra.mxu0 0.0
  %414 = vmatprep.subr.mxu0 0.0
  %415 = vmatpush1.msra.mxu0 0.0
  %416 = vmatprep.subr.mxu0 0.0
  %417 = vmatpush1.msra.mxu0 0.0
  %418 = vmatprep.subr.mxu0 0.0
  %419 = vmatpush1.msra.mxu0 0.0
  %420 = vmatprep.subr.mxu0 0.0
  %421 = vmatpush1.msra.mxu0 0.0
  %422 = vmatprep.subr.mxu0 0.0
  %423 = vmatpush1.msra.mxu0 0.0
  %424 = vmatprep.subr.mxu0 0.0
  %425 = vmatpush1.msra.mxu0 0.0
  %426 = vmatprep.subr.mxu0 0.0
  %427 = vmatpush1.msra.mxu0 0.0
  %428 = vmatprep.subr.mxu0 0.0
  %429 = vmatpush1.msra.mxu0 0.0
  %430 = vmatprep.subr.mxu0 0.0
  %431 = vmatpush1.msra.mxu0 0.0
  %432 = vmatprep.subr.mxu0 0.0
  %433 = vmatpush1.msra.mxu0 0.0
  %434 = vmatprep.subr.mxu0 0.0
  %435 = vmatpush1.msra.mxu0 %v399
  %436 = vmatprep.subr.mxu0 0.0
  %437 = vmatpush2.msra.mxu0 0.0
  %438 = vmatprep.subr.mxu0 0.0
  %439 = vmatpush2.msra.mxu0 0.0
  %440 = vmatprep.subr.mxu0 0.0
  %441 = vmatpush2.msra.mxu0 0.0
  %442 = vmatprep.subr.mxu0 0.0
  %443 = vmatpush2.msra.mxu0 0.0
  %444 = vmatprep.subr.mxu0 0.0
  %445 = vmatpush2.msra.mxu0 0.0
  %446 = vmatprep.subr.mxu0 0.0
  %447 = vmatpush2.msra.mxu0 0.0
  %448 = vmatprep.subr.mxu0 0.0
  %449 = vmatpush2.msra.mxu0 0.0
  %450 = vmatprep.subr.mxu0 0.0
  %451 = vmatpush2.msra.mxu0 0.0
  %452 = vmatprep.subr.mxu0 0.0
  %453 = vmatpush2.msra.mxu0 0.0
  %454 = vmatprep.subr.mxu0 0.0
  %455 = vmatpush2.msra.mxu0 0.0
  %456 = vmatprep.subr.mxu0 0.0
  %457 = vmatpush2.msra.mxu0 0.0
  %458 = vmatprep.subr.mxu0 0.0
  %459 = vmatpush2.msra.mxu0 0.0
  %460 = vmatprep.subr.mxu0 0.0
  %461 = vmatpush2.msra.mxu0 0.0
  %462 = vmatprep.subr.mxu0 0.0
  %463 = vmatpush2.msra.mxu0 0.0
  %464 = vmatprep.subr.mxu0 0.0
  %465 = vmatpush2.msra.mxu0 0.0
  %466 = vmatprep.subr.mxu0 0.0
  %467 = vmatpush2.msra.mxu0 0.0
  %468 = vmatprep.mubr.f32.mxu0 0.0
  %469 = vmatmul.mubr.f32.gmra.mxu0 %v402
  %v470 = vpop.f32.mrf.mxu0
  %v471 = vadd.f32 0.0, %v470
  %v472 = vpop.f32.mrf.mxu0
  %473 = vdwg.mxu0
  %474 = vrot.lane.b32.xlu0 %v201, 64
  %v475 = vpop.permute.xlu0 %474
  %v478 = vsel %vm375, %v397, 0
  %480 = vmatprep.subr.mxu0 0.0
  %481 = vmatpush1.msra.mxu0 0.0
  %482 = vmatprep.subr.mxu0 0.0
  %483 = vmatpush1.msra.mxu0 0.0
  %484 = vmatprep.subr.mxu0 0.0
  %485 = vmatpush1.msra.mxu0 0.0
  %486 = vmatprep.subr.mxu0 0.0
  %487 = vmatpush1.msra.mxu0 0.0
  %488 = vmatprep.subr.mxu0 0.0
  %489 = vmatpush1.msra.mxu0 0.0
  %490 = vmatprep.subr.mxu0 0.0
  %491 = vmatpush1.msra.mxu0 0.0
  %492 = vmatprep.subr.mxu0 0.0
  %493 = vmatpush1.msra.mxu0 0.0
  %494 = vmatprep.subr.mxu0 0.0
  %495 = vmatpush1.msra.mxu0 0.0
  %496 = vmatprep.subr.mxu0 0.0
  %497 = vmatpush1.msra.mxu0 0.0
  %498 = vmatprep.subr.mxu0 0.0
  %499 = vmatpush1.msra.mxu0 0.0
  %500 = vmatprep.subr.mxu0 0.0
  %501 = vmatpush1.msra.mxu0 0.0
  %502 = vmatprep.subr.mxu0 0.0
  %503 = vmatpush1.msra.mxu0 0.0
  %504 = vmatprep.subr.mxu0 0.0
  %505 = vmatpush1.msra.mxu0 0.0
  %506 = vmatprep.subr.mxu0 0.0
  %507 = vmatpush1.msra.mxu0 0.0
  %508 = vmatprep.subr.mxu0 0.0
  %509 = vmatpush1.msra.mxu0 0.0
  %510 = vmatprep.subr.mxu0 0.0
  %511 = vmatpush1.msra.mxu0 %v475
  %512 = vmatprep.subr.mxu0 0.0
  %513 = vmatpush2.msra.mxu0 0.0
  %514 = vmatprep.subr.mxu0 0.0
  %515 = vmatpush2.msra.mxu0 0.0
  %516 = vmatprep.subr.mxu0 0.0
  %517 = vmatpush2.msra.mxu0 0.0
  %518 = vmatprep.subr.mxu0 0.0
  %519 = vmatpush2.msra.mxu0 0.0
  %520 = vmatprep.subr.mxu0 0.0
  %521 = vmatpush2.msra.mxu0 0.0
  %522 = vmatprep.subr.mxu0 0.0
  %523 = vmatpush2.msra.mxu0 0.0
  %524 = vmatprep.subr.mxu0 0.0
  %525 = vmatpush2.msra.mxu0 0.0
  %526 = vmatprep.subr.mxu0 0.0
  %527 = vmatpush2.msra.mxu0 0.0
  %528 = vmatprep.subr.mxu0 0.0
  %529 = vmatpush2.msra.mxu0 0.0
  %530 = vmatprep.subr.mxu0 0.0
  %531 = vmatpush2.msra.mxu0 0.0
  %532 = vmatprep.subr.mxu0 0.0
  %533 = vmatpush2.msra.mxu0 0.0
  %534 = vmatprep.subr.mxu0 0.0
  %535 = vmatpush2.msra.mxu0 0.0
  %536 = vmatprep.subr.mxu0 0.0
  %537 = vmatpush2.msra.mxu0 0.0
  %538 = vmatprep.subr.mxu0 0.0
  %539 = vmatpush2.msra.mxu0 0.0
  %540 = vmatprep.subr.mxu0 0.0
  %541 = vmatpush2.msra.mxu0 0.0
  %542 = vmatprep.subr.mxu0 0.0
  %543 = vmatpush2.msra.mxu0 0.0
  %544 = vmatprep.mubr.f32.mxu0 0.0
  %545 = vmatmul.mubr.f32.gmra.mxu0 %v478
  %v546 = vpop.f32.mrf.mxu0
  %v547 = vadd.f32 0.0, %v546
  %v548 = vpop.f32.mrf.mxu0
  %549 = vdwg.mxu0
  %550 = vrot.lane.b32.xlu0 %v196, 112
  %v551 = vpop.permute.xlu0 %550
  %552 = vrot.lane.b32.xlu0 %v196, 80
  %v553 = vpop.permute.xlu0 %552
  %v554 = vsel %vm207, %v551, 0
  %v556 = vsel %vm207, %v553, 0
  %558 = vmatprep.subr.mxu0 0.0
  %559 = vmatpush1.xpose.msra.mxu0 0.0
  %560 = vmatprep.subr.mxu0 0.0
  %561 = vmatpush1.xpose.msra.mxu0 0.0
  %562 = vmatprep.subr.mxu0 0.0
  %563 = vmatpush1.xpose.msra.mxu0 0.0
  %564 = vmatprep.subr.mxu0 0.0
  %565 = vmatpush1.xpose.msra.mxu0 0.0
  %566 = vmatprep.subr.mxu0 0.0
  %567 = vmatpush1.xpose.msra.mxu0 0.0
  %568 = vmatprep.subr.mxu0 0.0
  %569 = vmatpush1.xpose.msra.mxu0 0.0
  %570 = vmatprep.subr.mxu0 0.0
  %571 = vmatpush1.xpose.msra.mxu0 0.0
  %572 = vmatprep.subr.mxu0 0.0
  %573 = vmatpush1.xpose.msra.mxu0 0.0
  %574 = vmatprep.subr.mxu0 0.0
  %575 = vmatpush1.xpose.msra.mxu0 0.0
  %576 = vmatprep.subr.mxu0 0.0
  %577 = vmatpush1.xpose.msra.mxu0 0.0
  %578 = vmatprep.subr.mxu0 0.0
  %579 = vmatpush1.xpose.msra.mxu0 0.0
  %580 = vmatprep.subr.mxu0 0.0
  %581 = vmatpush1.xpose.msra.mxu0 0.0
  %582 = vmatprep.subr.mxu0 0.0
  %583 = vmatpush1.xpose.msra.mxu0 0.0
  %584 = vmatprep.subr.mxu0 0.0
  %585 = vmatpush1.xpose.msra.mxu0 0.0
  %586 = vmatprep.subr.mxu0 0.0
  %587 = vmatpush1.xpose.msra.mxu0 0.0
  %588 = vmatprep.subr.mxu0 0.0
  %589 = vmatpush1.xpose.msra.mxu0 %v556
  %590 = vmatprep.subr.mxu0 0.0
  %591 = vmatpush2.xpose.msra.mxu0 0.0
  %592 = vmatprep.subr.mxu0 0.0
  %593 = vmatpush2.xpose.msra.mxu0 0.0
  %594 = vmatprep.subr.mxu0 0.0
  %595 = vmatpush2.xpose.msra.mxu0 0.0
  %596 = vmatprep.subr.mxu0 0.0
  %597 = vmatpush2.xpose.msra.mxu0 0.0
  %598 = vmatprep.subr.mxu0 0.0
  %599 = vmatpush2.xpose.msra.mxu0 0.0
  %600 = vmatprep.subr.mxu0 0.0
  %601 = vmatpush2.xpose.msra.mxu0 0.0
  %602 = vmatprep.subr.mxu0 0.0
  %603 = vmatpush2.xpose.msra.mxu0 0.0
  %604 = vmatprep.subr.mxu0 0.0
  %605 = vmatpush2.xpose.msra.mxu0 0.0
  %606 = vmatprep.subr.mxu0 0.0
  %607 = vmatpush2.xpose.msra.mxu0 0.0
  %608 = vmatprep.subr.mxu0 0.0
  %609 = vmatpush2.xpose.msra.mxu0 0.0
  %610 = vmatprep.subr.mxu0 0.0
  %611 = vmatpush2.xpose.msra.mxu0 0.0
  %612 = vmatprep.subr.mxu0 0.0
  %613 = vmatpush2.xpose.msra.mxu0 0.0
  %614 = vmatprep.subr.mxu0 0.0
  %615 = vmatpush2.xpose.msra.mxu0 0.0
  %616 = vmatprep.subr.mxu0 0.0
  %617 = vmatpush2.xpose.msra.mxu0 0.0
  %618 = vmatprep.subr.mxu0 0.0
  %619 = vmatpush2.xpose.msra.mxu0 0.0
  %620 = vmatprep.subr.mxu0 0.0
  %621 = vmatpush2.xpose.msra.mxu0 0.0
  %622 = vmatprep.mubr.f32.mxu0 0.0
  %623 = vmatmul.mubr.f32.gmra.mxu0 %v554
  %v624 = vpop.f32.mrf.mxu0
  %v625 = vadd.f32 0.0, %v624
  %v626 = vpop.f32.mrf.mxu0
  %627 = vdwg.mxu0
  %628 = vrot.lane.b32.xlu0 %v201, 112
  %v629 = vpop.permute.xlu0 %628
  %630 = vrot.lane.b32.xlu0 %v201, 80
  %v631 = vpop.permute.xlu0 %630
  %v632 = vsel %vm207, %v629, 0
  %v634 = vsel %vm207, %v631, 0
  %636 = vmatprep.subr.mxu0 0.0
  %637 = vmatpush1.xpose.msra.mxu0 0.0
  %638 = vmatprep.subr.mxu0 0.0
  %639 = vmatpush1.xpose.msra.mxu0 0.0
  %640 = vmatprep.subr.mxu0 0.0
  %641 = vmatpush1.xpose.msra.mxu0 0.0
  %642 = vmatprep.subr.mxu0 0.0
  %643 = vmatpush1.xpose.msra.mxu0 0.0
  %644 = vmatprep.subr.mxu0 0.0
  %645 = vmatpush1.xpose.msra.mxu0 0.0
  %646 = vmatprep.subr.mxu0 0.0
  %647 = vmatpush1.xpose.msra.mxu0 0.0
  %648 = vmatprep.subr.mxu0 0.0
  %649 = vmatpush1.xpose.msra.mxu0 0.0
  %650 = vmatprep.subr.mxu0 0.0
  %651 = vmatpush1.xpose.msra.mxu0 0.0
  %652 = vmatprep.subr.mxu0 0.0
  %653 = vmatpush1.xpose.msra.mxu0 0.0
  %654 = vmatprep.subr.mxu0 0.0
  %655 = vmatpush1.xpose.msra.mxu0 0.0
  %656 = vmatprep.subr.mxu0 0.0
  %657 = vmatpush1.xpose.msra.mxu0 0.0
  %658 = vmatprep.subr.mxu0 0.0
  %659 = vmatpush1.xpose.msra.mxu0 0.0
  %660 = vmatprep.subr.mxu0 0.0
  %661 = vmatpush1.xpose.msra.mxu0 0.0
  %662 = vmatprep.subr.mxu0 0.0
  %663 = vmatpush1.xpose.msra.mxu0 0.0
  %664 = vmatprep.subr.mxu0 0.0
  %665 = vmatpush1.xpose.msra.mxu0 0.0
  %666 = vmatprep.subr.mxu0 0.0
  %667 = vmatpush1.xpose.msra.mxu0 %v634
  %668 = vmatprep.subr.mxu0 0.0
  %669 = vmatpush2.xpose.msra.mxu0 0.0
  %670 = vmatprep.subr.mxu0 0.0
  %671 = vmatpush2.xpose.msra.mxu0 0.0
  %672 = vmatprep.subr.mxu0 0.0
  %673 = vmatpush2.xpose.msra.mxu0 0.0
  %674 = vmatprep.subr.mxu0 0.0
  %675 = vmatpush2.xpose.msra.mxu0 0.0
  %676 = vmatprep.subr.mxu0 0.0
  %677 = vmatpush2.xpose.msra.mxu0 0.0
  %678 = vmatprep.subr.mxu0 0.0
  %679 = vmatpush2.xpose.msra.mxu0 0.0
  %680 = vmatprep.subr.mxu0 0.0
  %681 = vmatpush2.xpose.msra.mxu0 0.0
  %682 = vmatprep.subr.mxu0 0.0
  %683 = vmatpush2.xpose.msra.mxu0 0.0
  %684 = vmatprep.subr.mxu0 0.0
  %685 = vmatpush2.xpose.msra.mxu0 0.0
  %686 = vmatprep.subr.mxu0 0.0
  %687 = vmatpush2.xpose.msra.mxu0 0.0
  %688 = vmatprep.subr.mxu0 0.0
  %689 = vmatpush2.xpose.msra.mxu0 0.0
  %690 = vmatprep.subr.mxu0 0.0
  %691 = vmatpush2.xpose.msra.mxu0 0.0
  %692 = vmatprep.subr.mxu0 0.0
  %693 = vmatpush2.xpose.msra.mxu0 0.0
  %694 = vmatprep.subr.mxu0 0.0
  %695 = vmatpush2.xpose.msra.mxu0 0.0
  %696 = vmatprep.subr.mxu0 0.0
  %697 = vmatpush2.xpose.msra.mxu0 0.0
  %698 = vmatprep.subr.mxu0 0.0
  %699 = vmatpush2.xpose.msra.mxu0 0.0
  %700 = vmatprep.mubr.f32.mxu0 0.0
  %701 = vmatmul.mubr.f32.gmra.mxu0 %v632
  %v702 = vpop.f32.mrf.mxu0
  %v703 = vadd.f32 0.0, %v702
  %v704 = vpop.f32.mrf.mxu0
  %705 = vdwg.mxu0
  %v706 = vmul.f32 %v625, 0.25
  %v707 = vmul.f32 %v703, 0.25
  %v708 = vadd.f32 %v706, %v366
  %v709 = vadd.f32 %v707, %v370
  %v710 = vsel %vm375, %v708, -inf
  %711 = vmax.xlane.f32.xlu0 %v710
  %v712 = vpop.xlane.xlu0 %711
  %v713 = vsel %vm375, %v709, -inf
  %714 = vmax.xlane.f32.xlu0 %v713
  %v715 = vpop.xlane.xlu0 %714
  %v716 = vsub.f32 %v708, %v712
  %v717 = vsub.f32 %v709, %v715
  %v718 = vmul.f32 %v716, 1.442695
  %v719 = vpow.pop %v718
  %v720 = vmul.f32 %v717, 1.442695
  %v721 = vpow.pop %v720
  %v722 = vsel %vm375, %v719, 0.0
  %723 = vadd.xlane.f32.xlu0 %v722
  %v724 = vpop.xlane.xlu0 %723
  %v725 = vsel %vm375, %v721, 0.0
  %726 = vadd.xlane.f32.xlu0 %v725
  %v727 = vpop.xlane.xlu0 %726
  %v728 = vrcp.pop %v724
  %v729 = vmul.f32 %v719, %v728
  %v730 = vrcp.pop %v727
  %v731 = vmul.f32 %v721, %v730
  %732 = vrot.lane.b32.xlu0 %v196, 48
  %v733 = vpop.permute.xlu0 %732
  %v736 = vsel %vm375, %v729, 0
  %738 = vmatprep.subr.mxu0 0.0
  %739 = vmatpush1.msra.mxu0 0.0
  %740 = vmatprep.subr.mxu0 0.0
  %741 = vmatpush1.msra.mxu0 0.0
  %742 = vmatprep.subr.mxu0 0.0
  %743 = vmatpush1.msra.mxu0 0.0
  %744 = vmatprep.subr.mxu0 0.0
  %745 = vmatpush1.msra.mxu0 0.0
  %746 = vmatprep.subr.mxu0 0.0
  %747 = vmatpush1.msra.mxu0 0.0
  %748 = vmatprep.subr.mxu0 0.0
  %749 = vmatpush1.msra.mxu0 0.0
  %750 = vmatprep.subr.mxu0 0.0
  %751 = vmatpush1.msra.mxu0 0.0
  %752 = vmatprep.subr.mxu0 0.0
  %753 = vmatpush1.msra.mxu0 0.0
  %754 = vmatprep.subr.mxu0 0.0
  %755 = vmatpush1.msra.mxu0 0.0
  %756 = vmatprep.subr.mxu0 0.0
  %757 = vmatpush1.msra.mxu0 0.0
  %758 = vmatprep.subr.mxu0 0.0
  %759 = vmatpush1.msra.mxu0 0.0
  %760 = vmatprep.subr.mxu0 0.0
  %761 = vmatpush1.msra.mxu0 0.0
  %762 = vmatprep.subr.mxu0 0.0
  %763 = vmatpush1.msra.mxu0 0.0
  %764 = vmatprep.subr.mxu0 0.0
  %765 = vmatpush1.msra.mxu0 0.0
  %766 = vmatprep.subr.mxu0 0.0
  %767 = vmatpush1.msra.mxu0 0.0
  %768 = vmatprep.subr.mxu0 0.0
  %769 = vmatpush1.msra.mxu0 %v733
  %770 = vmatprep.subr.mxu0 0.0
  %771 = vmatpush2.msra.mxu0 0.0
  %772 = vmatprep.subr.mxu0 0.0
  %773 = vmatpush2.msra.mxu0 0.0
  %774 = vmatprep.subr.mxu0 0.0
  %775 = vmatpush2.msra.mxu0 0.0
  %776 = vmatprep.subr.mxu0 0.0
  %777 = vmatpush2.msra.mxu0 0.0
  %778 = vmatprep.subr.mxu0 0.0
  %779 = vmatpush2.msra.mxu0 0.0
  %780 = vmatprep.subr.mxu0 0.0
  %781 = vmatpush2.msra.mxu0 0.0
  %782 = vmatprep.subr.mxu0 0.0
  %783 = vmatpush2.msra.mxu0 0.0
  %784 = vmatprep.subr.mxu0 0.0
  %785 = vmatpush2.msra.mxu0 0.0
  %786 = vmatprep.subr.mxu0 0.0
  %787 = vmatpush2.msra.mxu0 0.0
  %788 = vmatprep.subr.mxu0 0.0
  %789 = vmatpush2.msra.mxu0 0.0
  %790 = vmatprep.subr.mxu0 0.0
  %791 = vmatpush2.msra.mxu0 0.0
  %792 = vmatprep.subr.mxu0 0.0
  %793 = vmatpush2.msra.mxu0 0.0
  %794 = vmatprep.subr.mxu0 0.0
  %795 = vmatpush2.msra.mxu0 0.0
  %796 = vmatprep.subr.mxu0 0.0
  %797 = vmatpush2.msra.mxu0 0.0
  %798 = vmatprep.subr.mxu0 0.0
  %799 = vmatpush2.msra.mxu0 0.0
  %800 = vmatprep.subr.mxu0 0.0
  %801 = vmatpush2.msra.mxu0 0.0
  %802 = vmatprep.mubr.f32.mxu0 0.0
  %803 = vmatmul.mubr.f32.gmra.mxu0 %v736
  %v804 = vpop.f32.mrf.mxu0
  %v805 = vadd.f32 0.0, %v804
  %v806 = vpop.f32.mrf.mxu0
  %807 = vdwg.mxu0
  %808 = vrot.lane.b32.xlu0 %v201, 48
  %v809 = vpop.permute.xlu0 %808
  %v812 = vsel %vm375, %v731, 0
  %814 = vmatprep.subr.mxu0 0.0
  %815 = vmatpush1.msra.mxu0 0.0
  %816 = vmatprep.subr.mxu0 0.0
  %817 = vmatpush1.msra.mxu0 0.0
  %818 = vmatprep.subr.mxu0 0.0
  %819 = vmatpush1.msra.mxu0 0.0
  %820 = vmatprep.subr.mxu0 0.0
  %821 = vmatpush1.msra.mxu0 0.0
  %822 = vmatprep.subr.mxu0 0.0
  %823 = vmatpush1.msra.mxu0 0.0
  %824 = vmatprep.subr.mxu0 0.0
  %825 = vmatpush1.msra.mxu0 0.0
  %826 = vmatprep.subr.mxu0 0.0
  %827 = vmatpush1.msra.mxu0 0.0
  %828 = vmatprep.subr.mxu0 0.0
  %829 = vmatpush1.msra.mxu0 0.0
  %830 = vmatprep.subr.mxu0 0.0
  %831 = vmatpush1.msra.mxu0 0.0
  %832 = vmatprep.subr.mxu0 0.0
  %833 = vmatpush1.msra.mxu0 0.0
  %834 = vmatprep.subr.mxu0 0.0
  %835 = vmatpush1.msra.mxu0 0.0
  %836 = vmatprep.subr.mxu0 0.0
  %837 = vmatpush1.msra.mxu0 0.0
  %838 = vmatprep.subr.mxu0 0.0
  %839 = vmatpush1.msra.mxu0 0.0
  %840 = vmatprep.subr.mxu0 0.0
  %841 = vmatpush1.msra.mxu0 0.0
  %842 = vmatprep.subr.mxu0 0.0
  %843 = vmatpush1.msra.mxu0 0.0
  %844 = vmatprep.subr.mxu0 0.0
  %845 = vmatpush1.msra.mxu0 %v809
  %846 = vmatprep.subr.mxu0 0.0
  %847 = vmatpush2.msra.mxu0 0.0
  %848 = vmatprep.subr.mxu0 0.0
  %849 = vmatpush2.msra.mxu0 0.0
  %850 = vmatprep.subr.mxu0 0.0
  %851 = vmatpush2.msra.mxu0 0.0
  %852 = vmatprep.subr.mxu0 0.0
  %853 = vmatpush2.msra.mxu0 0.0
  %854 = vmatprep.subr.mxu0 0.0
  %855 = vmatpush2.msra.mxu0 0.0
  %856 = vmatprep.subr.mxu0 0.0
  %857 = vmatpush2.msra.mxu0 0.0
  %858 = vmatprep.subr.mxu0 0.0
  %859 = vmatpush2.msra.mxu0 0.0
  %860 = vmatprep.subr.mxu0 0.0
  %861 = vmatpush2.msra.mxu0 0.0
  %862 = vmatprep.subr.mxu0 0.0
  %863 = vmatpush2.msra.mxu0 0.0
  %864 = vmatprep.subr.mxu0 0.0
  %865 = vmatpush2.msra.mxu0 0.0
  %866 = vmatprep.subr.mxu0 0.0
  %867 = vmatpush2.msra.mxu0 0.0
  %868 = vmatprep.subr.mxu0 0.0
  %869 = vmatpush2.msra.mxu0 0.0
  %870 = vmatprep.subr.mxu0 0.0
  %871 = vmatpush2.msra.mxu0 0.0
  %872 = vmatprep.subr.mxu0 0.0
  %873 = vmatpush2.msra.mxu0 0.0
  %874 = vmatprep.subr.mxu0 0.0
  %875 = vmatpush2.msra.mxu0 0.0
  %876 = vmatprep.subr.mxu0 0.0
  %877 = vmatpush2.msra.mxu0 0.0
  %878 = vmatprep.mubr.f32.mxu0 0.0
  %879 = vmatmul.mubr.f32.gmra.mxu0 %v812
  %v880 = vpop.f32.mrf.mxu0
  %v881 = vadd.f32 0.0, %v880
  %v882 = vpop.f32.mrf.mxu0
  %883 = vdwg.mxu0
  %886 = vrot.lane.b32.xlu0 %v805, 16
  %v887 = vpop.permute.xlu0 %886
  %888 = vrot.lane.b32.xlu0 %v881, 16
  %v889 = vpop.permute.xlu0 %888
  %v892 = vsel %vm207, %v471, %v887
  %v893 = vsel %vm207, %v547, %v889
  %v894 = vld [vmem:[%s7] sm:$0xff]
  %v895 = vld [vmem:[%s7 + $0x8] sm:$0xff]
  %v896 = vld [vmem:[%s7 + $0x10] sm:$0xff]
  %v897 = vld [vmem:[%s7 + $0x18] sm:$0xff]
  %v898 = vld [vmem:[%s8] sm:$0x1]
  %v900 = vlaneseq
  %v901 = vshrl.u32 %v900, 7
  %v902 = vsub.s32 0, %v901
  %v903 = vrot.slane %v898, %v902
  %v906 = vsel %vm66, %v892, 0
  %v909 = vsel %vm66, %v893, 0
  %911 = vmatprep.subr.mxu0 0.0
  %912 = vmatpush1.msra.mxu0 0.0
  %913 = vmatprep.subr.mxu0 0.0
  %914 = vmatpush1.msra.mxu0 0.0
  %915 = vmatprep.subr.mxu0 0.0
  %916 = vmatpush1.msra.mxu0 0.0
  %917 = vmatprep.subr.mxu0 0.0
  %918 = vmatpush1.msra.mxu0 0.0
  %919 = vmatprep.subr.mxu0 0.0
  %920 = vmatpush1.msra.mxu0 0.0
  %921 = vmatprep.subr.mxu0 0.0
  %922 = vmatpush1.msra.mxu0 0.0
  %923 = vmatprep.subr.mxu0 0.0
  %924 = vmatpush1.msra.mxu0 0.0
  %925 = vmatprep.subr.mxu0 0.0
  %926 = vmatpush1.msra.mxu0 0.0
  %927 = vmatprep.subr.mxu0 0.0
  %928 = vmatpush1.msra.mxu0 0.0
  %929 = vmatprep.subr.mxu0 0.0
  %930 = vmatpush1.msra.mxu0 0.0
  %931 = vmatprep.subr.mxu0 0.0
  %932 = vmatpush1.msra.mxu0 0.0
  %933 = vmatprep.subr.mxu0 0.0
  %934 = vmatpush1.msra.mxu0 0.0
  %935 = vmatprep.subr.mxu0 0.0
  %936 = vmatpush1.msra.mxu0 %v897
  %937 = vmatprep.subr.mxu0 0.0
  %938 = vmatpush1.msra.mxu0 %v896
  %939 = vmatprep.subr.mxu0 0.0
  %940 = vmatpush1.msra.mxu0 %v895
  %941 = vmatprep.subr.mxu0 0.0
  %942 = vmatpush1.msra.mxu0 %v894
  %943 = vmatprep.subr.mxu0 0.0
  %944 = vmatpush2.msra.mxu0 0.0
  %945 = vmatprep.subr.mxu0 0.0
  %946 = vmatpush2.msra.mxu0 0.0
  %947 = vmatprep.subr.mxu0 0.0
  %948 = vmatpush2.msra.mxu0 0.0
  %949 = vmatprep.subr.mxu0 0.0
  %950 = vmatpush2.msra.mxu0 0.0
  %951 = vmatprep.subr.mxu0 0.0
  %952 = vmatpush2.msra.mxu0 0.0
  %953 = vmatprep.subr.mxu0 0.0
  %954 = vmatpush2.msra.mxu0 0.0
  %955 = vmatprep.subr.mxu0 0.0
  %956 = vmatpush2.msra.mxu0 0.0
  %957 = vmatprep.subr.mxu0 0.0
  %958 = vmatpush2.msra.mxu0 0.0
  %959 = vmatprep.subr.mxu0 0.0
  %960 = vmatpush2.msra.mxu0 0.0
  %961 = vmatprep.subr.mxu0 0.0
  %962 = vmatpush2.msra.mxu0 0.0
  %963 = vmatprep.subr.mxu0 0.0
  %964 = vmatpush2.msra.mxu0 0.0
  %965 = vmatprep.subr.mxu0 0.0
  %966 = vmatpush2.msra.mxu0 0.0
  %967 = vmatprep.subr.mxu0 0.0
  %968 = vmatpush2.msra.mxu0 0.0
  %969 = vmatprep.subr.mxu0 0.0
  %970 = vmatpush2.msra.mxu0 0.0
  %971 = vmatprep.subr.mxu0 0.0
  %972 = vmatpush2.msra.mxu0 0.0
  %973 = vmatprep.subr.mxu0 0.0
  %974 = vmatpush2.msra.mxu0 0.0
  %975 = vmatprep.mubr.f32.mxu0 0.0
  %976 = vmatmul.mubr.f32.gmra.mxu0 %v906
  %v977 = vpop.f32.mrf.mxu0
  %v978 = vadd.f32 %v903, %v977
  %v979 = vpop.f32.mrf.mxu0
  %980 = vmatprep.mubr.f32.mxu0 0.0
  %981 = vmatmul.mubr.f32.gmra.mxu0 %v909
  %v982 = vpop.f32.mrf.mxu0
  %v983 = vadd.f32 %v903, %v982
  %v984 = vpop.f32.mrf.mxu0
  %985 = vdwg.mxu0
  %v986 = vadd.f32 %v108, %v978
  %v987 = vadd.f32 %v109, %v983
  %v988 = vld [vmem:[%s9] sm:$0x1]
  %v989 = vld [vmem:[%s10] sm:$0x1]
  %v990 = vsel %vm66, %v986, 0.0
  %991 = vadd.xlane.f32.xlu0 %v990
  %v992 = vpop.xlane.xlu0 %991
  %v993 = vsel %vm66, %v987, 0.0
  %994 = vadd.xlane.f32.xlu0 %v993
  %v995 = vpop.xlane.xlu0 %994
  %v996 = vmul.f32 %v992, %v73
  %v997 = vmul.f32 %v995, %v73
  %v998 = vsub.f32 %v986, %v996
  %v999 = vsub.f32 %v987, %v997
  %v1000 = vmul.f32 %v998, %v998
  %v1001 = vmul.f32 %v999, %v999
  %v1002 = vsel %vm66, %v1000, 0.0
  %1003 = vadd.xlane.f32.xlu0 %v1002
  %v1004 = vpop.xlane.xlu0 %1003
  %v1005 = vsel %vm66, %v1001, 0.0
  %1006 = vadd.xlane.f32.xlu0 %v1005
  %v1007 = vpop.xlane.xlu0 %1006
  %v1008 = vmul.f32 %v1004, %v73
  %v1009 = vmul.f32 %v1007, %v73
  %v1010 = vadd.f32 %v1008, 1e-12
  %v1011 = vadd.f32 %v1009, 1e-12
  %v1012 = vrsqrt.pop %v1010
  %v1013 = vrsqrt.pop %v1011
  %v1014 = vmul.f32 %v998, %v1012
  %v1015 = vmul.f32 %v999, %v1013
  %v1017 = vlaneseq
  %v1018 = vshrl.u32 %v1017, 7
  %v1019 = vsub.s32 0, %v1018
  %v1020 = vrot.slane %v988, %v1019
  %v1022 = vmul.f32 %v1014, %v1020
  %v1023 = vmul.f32 %v1015, %v1020
  %v1025 = vlaneseq
  %v1026 = vshrl.u32 %v1025, 7
  %v1027 = vsub.s32 0, %v1026
  %v1028 = vrot.slane %v989, %v1027
  %v1030 = vadd.f32 %v1022, %v1028
  %v1031 = vadd.f32 %v1023, %v1028
  %v1032 = vld [vmem:[%s11] sm:$0xff]
  %v1033 = vld [vmem:[%s11 + $0x8] sm:$0xff]
  %v1034 = vld [vmem:[%s11 + $0x10] sm:$0xff]
  %v1035 = vld [vmem:[%s11 + $0x18] sm:$0xff]
  %v1036 = vld [vmem:[%s12] sm:$0x1]
  %v1038 = vlaneseq
  %v1039 = vshrl.u32 %v1038, 7
  %v1040 = vsub.s32 0, %v1039
  %v1041 = vrot.slane %v1036, %v1040
  %v1044 = vsel %vm66, %v1030, 0
  %v1047 = vsel %vm66, %v1031, 0
  %1049 = vmatprep.subr.mxu0 0.0
  %1050 = vmatpush1.msra.mxu0 0.0
  %1051 = vmatprep.subr.mxu0 0.0
  %1052 = vmatpush1.msra.mxu0 0.0
  %1053 = vmatprep.subr.mxu0 0.0
  %1054 = vmatpush1.msra.mxu0 0.0
  %1055 = vmatprep.subr.mxu0 0.0
  %1056 = vmatpush1.msra.mxu0 0.0
  %1057 = vmatprep.subr.mxu0 0.0
  %1058 = vmatpush1.msra.mxu0 0.0
  %1059 = vmatprep.subr.mxu0 0.0
  %1060 = vmatpush1.msra.mxu0 0.0
  %1061 = vmatprep.subr.mxu0 0.0
  %1062 = vmatpush1.msra.mxu0 0.0
  %1063 = vmatprep.subr.mxu0 0.0
  %1064 = vmatpush1.msra.mxu0 0.0
  %1065 = vmatprep.subr.mxu0 0.0
  %1066 = vmatpush1.msra.mxu0 0.0
  %1067 = vmatprep.subr.mxu0 0.0
  %1068 = vmatpush1.msra.mxu0 0.0
  %1069 = vmatprep.subr.mxu0 0.0
  %1070 = vmatpush1.msra.mxu0 0.0
  %1071 = vmatprep.subr.mxu0 0.0
  %1072 = vmatpush1.msra.mxu0 0.0
  %1073 = vmatprep.subr.mxu0 0.0
  %1074 = vmatpush1.msra.mxu0 %v1035
  %1075 = vmatprep.subr.mxu0 0.0
  %1076 = vmatpush1.msra.mxu0 %v1034
  %1077 = vmatprep.subr.mxu0 0.0
  %1078 = vmatpush1.msra.mxu0 %v1033
  %1079 = vmatprep.subr.mxu0 0.0
  %1080 = vmatpush1.msra.mxu0 %v1032
  %1081 = vmatprep.subr.mxu0 0.0
  %1082 = vmatpush2.msra.mxu0 0.0
  %1083 = vmatprep.subr.mxu0 0.0
  %1084 = vmatpush2.msra.mxu0 0.0
  %1085 = vmatprep.subr.mxu0 0.0
  %1086 = vmatpush2.msra.mxu0 0.0
  %1087 = vmatprep.subr.mxu0 0.0
  %1088 = vmatpush2.msra.mxu0 0.0
  %1089 = vmatprep.subr.mxu0 0.0
  %1090 = vmatpush2.msra.mxu0 0.0
  %1091 = vmatprep.subr.mxu0 0.0
  %1092 = vmatpush2.msra.mxu0 0.0
  %1093 = vmatprep.subr.mxu0 0.0
  %1094 = vmatpush2.msra.mxu0 0.0
  %1095 = vmatprep.subr.mxu0 0.0
  %1096 = vmatpush2.msra.mxu0 0.0
  %1097 = vmatprep.subr.mxu0 0.0
  %1098 = vmatpush2.msra.mxu0 0.0
  %1099 = vmatprep.subr.mxu0 0.0
  %1100 = vmatpush2.msra.mxu0 0.0
  %1101 = vmatprep.subr.mxu0 0.0
  %1102 = vmatpush2.msra.mxu0 0.0
  %1103 = vmatprep.subr.mxu0 0.0
  %1104 = vmatpush2.msra.mxu0 0.0
  %1105 = vmatprep.subr.mxu0 0.0
  %1106 = vmatpush2.msra.mxu0 0.0
  %1107 = vmatprep.subr.mxu0 0.0
  %1108 = vmatpush2.msra.mxu0 0.0
  %1109 = vmatprep.subr.mxu0 0.0
  %1110 = vmatpush2.msra.mxu0 0.0
  %1111 = vmatprep.subr.mxu0 0.0
  %1112 = vmatpush2.msra.mxu0 0.0
  %1113 = vmatprep.mubr.f32.mxu0 0.0
  %1114 = vmatmul.mubr.f32.gmra.mxu0 %v1044
  %v1115 = vpop.f32.mrf.mxu0
  %v1116 = vadd.f32 %v1041, %v1115
  %v1117 = vpop.f32.mrf.mxu0
  %1118 = vmatprep.mubr.f32.mxu0 0.0
  %1119 = vmatmul.mubr.f32.gmra.mxu0 %v1047
  %v1120 = vpop.f32.mrf.mxu0
  %v1121 = vadd.f32 %v1041, %v1120
  %v1122 = vpop.f32.mrf.mxu0
  %1123 = vdwg.mxu0
  %v1124 = vmul.f32 %v1116, %v1116
  %v1125 = vmul.f32 %v1121, %v1121
  %v1126 = vmul.f32 %v1116, %v1124
  %v1127 = vmul.f32 %v1121, %v1125
  %v1128 = vmul.f32 %v1126, 0.044715
  %v1129 = vmul.f32 %v1127, 0.044715
  %v1130 = vadd.f32 %v1116, %v1128
  %v1131 = vadd.f32 %v1121, %v1129
  %v1132 = vmul.f32 %v1130, 0.7978846
  %v1133 = vmul.f32 %v1131, 0.7978846
  %v1134 = vtanh.pop %v1132
  %v1135 = vtanh.pop %v1133
  %v1136 = vadd.f32 %v1134, 1.0
  %v1137 = vadd.f32 %v1135, 1.0
  %v1138 = vmul.f32 %v1136, 0.5
  %v1139 = vmul.f32 %v1137, 0.5
  %v1140 = vmul.f32 %v1116, %v1138
  %v1141 = vmul.f32 %v1121, %v1139
  %v1142 = vld [vmem:[%s13] sm:$0xff]
  %v1143 = vld [vmem:[%s13 + $0x8] sm:$0xff]
  %v1144 = vld [vmem:[%s13 + $0x10] sm:$0xff]
  %v1145 = vld [vmem:[%s13 + $0x18] sm:$0xff]
  %v1146 = vld [vmem:[%s13 + $0x20] sm:$0xff]
  %v1147 = vld [vmem:[%s13 + $0x28] sm:$0xff]
  %v1148 = vld [vmem:[%s13 + $0x30] sm:$0xff]
  %v1149 = vld [vmem:[%s13 + $0x38] sm:$0xff]
  %v1150 = vld [vmem:[%s14] sm:$0x1]
  %v1152 = vlaneseq
  %v1153 = vshrl.u32 %v1152, 7
  %v1154 = vsub.s32 0, %v1153
  %v1155 = vrot.slane %v1150, %v1154
  %vm1157 = vcmask 523264
  %v1159 = vsel %vm1157, %v1140, 0
  %v1162 = vsel %vm1157, %v1141, 0
  %1164 = vmatprep.subr.mxu0 0.0
  %1165 = vmatpush1.msra.mxu0 0.0
  %1166 = vmatprep.subr.mxu0 0.0
  %1167 = vmatpush1.msra.mxu0 0.0
  %1168 = vmatprep.subr.mxu0 0.0
  %1169 = vmatpush1.msra.mxu0 0.0
  %1170 = vmatprep.subr.mxu0 0.0
  %1171 = vmatpush1.msra.mxu0 0.0
  %1172 = vmatprep.subr.mxu0 0.0
  %1173 = vmatpush1.msra.mxu0 0.0
  %1174 = vmatprep.subr.mxu0 0.0
  %1175 = vmatpush1.msra.mxu0 0.0
  %1176 = vmatprep.subr.mxu0 0.0
  %1177 = vmatpush1.msra.mxu0 0.0
  %1178 = vmatprep.subr.mxu0 0.0
  %1179 = vmatpush1.msra.mxu0 0.0
  %1180 = vmatprep.subr.mxu0 0.0
  %1181 = vmatpush1.msra.mxu0 %v1149
  %1182 = vmatprep.subr.mxu0 0.0
  %1183 = vmatpush1.msra.mxu0 %v1148
  %1184 = vmatprep.subr.mxu0 0.0
  %1185 = vmatpush1.msra.mxu0 %v1147
  %1186 = vmatprep.subr.mxu0 0.0
  %1187 = vmatpush1.msra.mxu0 %v1146
  %1188 = vmatprep.subr.mxu0 0.0
  %1189 = vmatpush1.msra.mxu0 %v1145
  %1190 = vmatprep.subr.mxu0 0.0
  %1191 = vmatpush1.msra.mxu0 %v1144
  %1192 = vmatprep.subr.mxu0 0.0
  %1193 = vmatpush1.msra.mxu0 %v1143
  %1194 = vmatprep.subr.mxu0 0.0
  %1195 = vmatpush1.msra.mxu0 %v1142
  %1196 = vmatprep.subr.mxu0 0.0
  %1197 = vmatpush2.msra.mxu0 0.0
  %1198 = vmatprep.subr.mxu0 0.0
  %1199 = vmatpush2.msra.mxu0 0.0
  %1200 = vmatprep.subr.mxu0 0.0
  %1201 = vmatpush2.msra.mxu0 0.0
  %1202 = vmatprep.subr.mxu0 0.0
  %1203 = vmatpush2.msra.mxu0 0.0
  %1204 = vmatprep.subr.mxu0 0.0
  %1205 = vmatpush2.msra.mxu0 0.0
  %1206 = vmatprep.subr.mxu0 0.0
  %1207 = vmatpush2.msra.mxu0 0.0
  %1208 = vmatprep.subr.mxu0 0.0
  %1209 = vmatpush2.msra.mxu0 0.0
  %1210 = vmatprep.subr.mxu0 0.0
  %1211 = vmatpush2.msra.mxu0 0.0
  %1212 = vmatprep.subr.mxu0 0.0
  %1213 = vmatpush2.msra.mxu0 0.0
  %1214 = vmatprep.subr.mxu0 0.0
  %1215 = vmatpush2.msra.mxu0 0.0
  %1216 = vmatprep.subr.mxu0 0.0
  %1217 = vmatpush2.msra.mxu0 0.0
  %1218 = vmatprep.subr.mxu0 0.0
  %1219 = vmatpush2.msra.mxu0 0.0
  %1220 = vmatprep.subr.mxu0 0.0
  %1221 = vmatpush2.msra.mxu0 0.0
  %1222 = vmatprep.subr.mxu0 0.0
  %1223 = vmatpush2.msra.mxu0 0.0
  %1224 = vmatprep.subr.mxu0 0.0
  %1225 = vmatpush2.msra.mxu0 0.0
  %1226 = vmatprep.subr.mxu0 0.0
  %1227 = vmatpush2.msra.mxu0 0.0
  %1228 = vmatprep.mubr.f32.mxu0 0.0
  %1229 = vmatmul.mubr.f32.gmra.mxu0 %v1159
  %v1230 = vpop.f32.mrf.mxu0
  %v1231 = vadd.f32 %v1155, %v1230
  %v1232 = vpop.f32.mrf.mxu0
  %1233 = vmatprep.mubr.f32.mxu0 0.0
  %1234 = vmatmul.mubr.f32.gmra.mxu0 %v1162
  %v1235 = vpop.f32.mrf.mxu0
  %v1236 = vadd.f32 %v1155, %v1235
  %v1237 = vpop.f32.mrf.mxu0
  %1238 = vdwg.mxu0
  %v1239 = vadd.f32 %v1030, %v1231
  %v1240 = vadd.f32 %v1031, %v1236
  %v1241 = vld [vmem:[%s15] sm:$0x1]
  %v1242 = vld [vmem:[%s16] sm:$0x1]
  %v1243 = vsel %vm66, %v1239, 0.0
  %1244 = vadd.xlane.f32.xlu0 %v1243
  %v1245 = vpop.xlane.xlu0 %1244
  %v1246 = vsel %vm66, %v1240, 0.0
  %1247 = vadd.xlane.f32.xlu0 %v1246
  %v1248 = vpop.xlane.xlu0 %1247
  %v1249 = vmul.f32 %v1245, %v73
  %v1250 = vmul.f32 %v1248, %v73
  %v1251 = vsub.f32 %v1239, %v1249
  %v1252 = vsub.f32 %v1240, %v1250
  %v1253 = vmul.f32 %v1251, %v1251
  %v1254 = vmul.f32 %v1252, %v1252
  %v1255 = vsel %vm66, %v1253, 0.0
  %1256 = vadd.xlane.f32.xlu0 %v1255
  %v1257 = vpop.xlane.xlu0 %1256
  %v1258 = vsel %vm66, %v1254, 0.0
  %1259 = vadd.xlane.f32.xlu0 %v1258
  %v1260 = vpop.xlane.xlu0 %1259
  %v1261 = vmul.f32 %v1257, %v73
  %v1262 = vmul.f32 %v1260, %v73
  %v1263 = vadd.f32 %v1261, 1e-12
  %v1264 = vadd.f32 %v1262, 1e-12
  %v1265 = vrsqrt.pop %v1263
  %v1266 = vrsqrt.pop %v1264
  %v1267 = vmul.f32 %v1251, %v1265
  %v1268 = vmul.f32 %v1252, %v1266
  %v1270 = vlaneseq
  %v1271 = vshrl.u32 %v1270, 7
  %v1272 = vsub.s32 0, %v1271
  %v1273 = vrot.slane %v1241, %v1272
  %v1275 = vmul.f32 %v1267, %v1273
  %v1276 = vmul.f32 %v1268, %v1273
  %v1278 = vlaneseq
  %v1279 = vshrl.u32 %v1278, 7
  %v1280 = vsub.s32 0, %v1279
  %v1281 = vrot.slane %v1242, %v1280
  %v1283 = vadd.f32 %v1275, %v1281
  %v1284 = vadd.f32 %v1276, %v1281
  %s1285 = scalar_lea.vmem %s5, 32
  %v1286 = vld [vmem:[%s1285] sm:$0xff]
  %v1287 = vld [vmem:[%s1285 + $0x8] sm:$0xff]
  %v1288 = vld [vmem:[%s1285 + $0x10] sm:$0xff]
  %v1289 = vld [vmem:[%s1285 + $0x18] sm:$0xff]
  %s1290 = scalar_lea.vmem %s6, 1
  %v1291 = vld [vmem:[%s1290] sm:$0x1]
  %v1293 = vlaneseq
  %v1294 = vshrl.u32 %v1293, 7
  %v1295 = vsub.s32 0, %v1294
  %v1296 = vrot.slane %v1291, %v1295
  %v1299 = vsel %vm66, %v1283, 0
  %v1302 = vsel %vm66, %v1284, 0
  %1304 = vmatprep.subr.mxu0 0.0
  %1305 = vmatpush1.msra.mxu0 0.0
  %1306 = vmatprep.subr.mxu0 0.0
  %1307 = vmatpush1.msra.mxu0 0.0
  %1308 = vmatprep.subr.mxu0 0.0
  %1309 = vmatpush1.msra.mxu0 0.0
  %1310 = vmatprep.subr.mxu0 0.0
  %1311 = vmatpush1.msra.mxu0 0.0
  %1312 = vmatprep.subr.mxu0 0.0
  %1313 = vmatpush1.msra.mxu0 0.0
  %1314 = vmatprep.subr.mxu0 0.0
  %1315 = vmatpush1.msra.mxu0 0.0
  %1316 = vmatprep.subr.mxu0 0.0
  %1317 = vmatpush1.msra.mxu0 0.0
  %1318 = vmatprep.subr.mxu0 0.0
  %1319 = vmatpush1.msra.mxu0 0.0
  %1320 = vmatprep.subr.mxu0 0.0
  %1321 = vmatpush1.msra.mxu0 0.0
  %1322 = vmatprep.subr.mxu0 0.0
  %1323 = vmatpush1.msra.mxu0 0.0
  %1324 = vmatprep.subr.mxu0 0.0
  %1325 = vmatpush1.msra.mxu0 0.0
  %1326 = vmatprep.subr.mxu0 0.0
  %1327 = vmatpush1.msra.mxu0 0.0
  %1328 = vmatprep.subr.mxu0 0.0
  %1329 = vmatpush1.msra.mxu0 %v1289
  %1330 = vmatprep.subr.mxu0 0.0
  %1331 = vmatpush1.msra.mxu0 %v1288
  %1332 = vmatprep.subr.mxu0 0.0
  %1333 = vmatpush1.msra.mxu0 %v1287
  %1334 = vmatprep.subr.mxu0 0.0
  %1335 = vmatpush1.msra.mxu0 %v1286
  %1336 = vmatprep.subr.mxu0 0.0
  %1337 = vmatpush2.msra.mxu0 0.0
  %1338 = vmatprep.subr.mxu0 0.0
  %1339 = vmatpush2.msra.mxu0 0.0
  %1340 = vmatprep.subr.mxu0 0.0
  %1341 = vmatpush2.msra.mxu0 0.0
  %1342 = vmatprep.subr.mxu0 0.0
  %1343 = vmatpush2.msra.mxu0 0.0
  %1344 = vmatprep.subr.mxu0 0.0
  %1345 = vmatpush2.msra.mxu0 0.0
  %1346 = vmatprep.subr.mxu0 0.0
  %1347 = vmatpush2.msra.mxu0 0.0
  %1348 = vmatprep.subr.mxu0 0.0
  %1349 = vmatpush2.msra.mxu0 0.0
  %1350 = vmatprep.subr.mxu0 0.0
  %1351 = vmatpush2.msra.mxu0 0.0
  %1352 = vmatprep.subr.mxu0 0.0
  %1353 = vmatpush2.msra.mxu0 0.0
  %1354 = vmatprep.subr.mxu0 0.0
  %1355 = vmatpush2.msra.mxu0 0.0
  %1356 = vmatprep.subr.mxu0 0.0
  %1357 = vmatpush2.msra.mxu0 0.0
  %1358 = vmatprep.subr.mxu0 0.0
  %1359 = vmatpush2.msra.mxu0 0.0
  %1360 = vmatprep.subr.mxu0 0.0
  %1361 = vmatpush2.msra.mxu0 0.0
  %1362 = vmatprep.subr.mxu0 0.0
  %1363 = vmatpush2.msra.mxu0 0.0
  %1364 = vmatprep.subr.mxu0 0.0
  %1365 = vmatpush2.msra.mxu0 0.0
  %1366 = vmatprep.subr.mxu0 0.0
  %1367 = vmatpush2.msra.mxu0 0.0
  %1368 = vmatprep.mubr.f32.mxu0 0.0
  %1369 = vmatmul.mubr.f32.gmra.mxu0 %v1299
  %v1370 = vpop.f32.mrf.mxu0
  %v1371 = vadd.f32 %v1296, %v1370
  %v1372 = vpop.f32.mrf.mxu0
  %1373 = vmatprep.mubr.f32.mxu0 0.0
  %1374 = vmatmul.mubr.f32.gmra.mxu0 %v1302
  %v1375 = vpop.f32.mrf.mxu0
  %v1376 = vadd.f32 %v1296, %v1375
  %v1377 = vpop.f32.mrf.mxu0
  %1378 = vdwg.mxu0
  %1380 = vrot.lane.b32.xlu0 %v1371, 96
  %v1381 = vpop.permute.xlu0 %1380
  %v1382 = vsel %vm207, %v1371, 0
  %v1384 = vsel %vm207, %v1381, 0
  %1386 = vmatprep.subr.mxu0 0.0
  %1387 = vmatpush1.xpose.msra.mxu0 0.0
  %1388 = vmatprep.subr.mxu0 0.0
  %1389 = vmatpush1.xpose.msra.mxu0 0.0
  %1390 = vmatprep.subr.mxu0 0.0
  %1391 = vmatpush1.xpose.msra.mxu0 0.0
  %1392 = vmatprep.subr.mxu0 0.0
  %1393 = vmatpush1.xpose.msra.mxu0 0.0
  %1394 = vmatprep.subr.mxu0 0.0
  %1395 = vmatpush1.xpose.msra.mxu0 0.0
  %1396 = vmatprep.subr.mxu0 0.0
  %1397 = vmatpush1.xpose.msra.mxu0 0.0
  %1398 = vmatprep.subr.mxu0 0.0
  %1399 = vmatpush1.xpose.msra.mxu0 0.0
  %1400 = vmatprep.subr.mxu0 0.0
  %1401 = vmatpush1.xpose.msra.mxu0 0.0
  %1402 = vmatprep.subr.mxu0 0.0
  %1403 = vmatpush1.xpose.msra.mxu0 0.0
  %1404 = vmatprep.subr.mxu0 0.0
  %1405 = vmatpush1.xpose.msra.mxu0 0.0
  %1406 = vmatprep.subr.mxu0 0.0
  %1407 = vmatpush1.xpose.msra.mxu0 0.0
  %1408 = vmatprep.subr.mxu0 0.0
  %1409 = vmatpush1.xpose.msra.mxu0 0.0
  %1410 = vmatprep.subr.mxu0 0.0
  %1411 = vmatpush1.xpose.msra.mxu0 0.0
  %1412 = vmatprep.subr.mxu0 0.0
  %1413 = vmatpush1.xpose.msra.mxu0 0.0
  %1414 = vmatprep.subr.mxu0 0.0
  %1415 = vmatpush1.xpose.msra.mxu0 0.0
  %1416 = vmatprep.subr.mxu0 0.0
  %1417 = vmatpush1.xpose.msra.mxu0 %v1384
  %1418 = vmatprep.subr.mxu0 0.0
  %1419 = vmatpush2.xpose.msra.mxu0 0.0
  %1420 = vmatprep.subr.mxu0 0.0
  %1421 = vmatpush2.xpose.msra.mxu0 0.0
  %1422 = vmatprep.subr.mxu0 0.0
  %1423 = vmatpush2.xpose.msra.mxu0 0.0
  %1424 = vmatprep.subr.mxu0 0.0
  %1425 = vmatpush2.xpose.msra.mxu0 0.0
  %1426 = vmatprep.subr.mxu0 0.0
  %1427 = vmatpush2.xpose.msra.mxu0 0.0
  %1428 = vmatprep.subr.mxu0 0.0
  %1429 = vmatpush2.xpose.msra.mxu0 0.0
  %1430 = vmatprep.subr.mxu0 0.0
  %1431 = vmatpush2.xpose.msra.mxu0 0.0
  %1432 = vmatprep.subr.mxu0 0.0
  %1433 = vmatpush2.xpose.msra.mxu0 0.0
  %1434 = vmatprep.subr.mxu0 0.0
  %1435 = vmatpush2.xpose.msra.mxu0 0.0
  %1436 = vmatprep.subr.mxu0 0.0
  %1437 = vmatpush2.xpose.msra.mxu0 0.0
  %1438 = vmatprep.subr.mxu0 0.0
  %1439 = vmatpush2.xpose.msra.mxu0 0.0
  %1440 = vmatprep.subr.mxu0 0.0
  %1441 = vmatpush2.xpose.msra.mxu0 0.0
  %1442 = vmatprep.subr.mxu0 0.0
  %1443 = vmatpush2.xpose.msra.mxu0 0.0
  %1444 = vmatprep.subr.mxu0 0.0
  %1445 = vmatpush2.xpose.msra.mxu0 0.0
  %1446 = vmatprep.subr.mxu0 0.0
  %1447 = vmatpush2.xpose.msra.mxu0 0.0
  %1448 = vmatprep.subr.mxu0 0.0
  %1449 = vmatpush2.xpose.msra.mxu0 0.0
  %1450 = vmatprep.mubr.f32.mxu0 0.0
  %1451 = vmatmul.mubr.f32.gmra.mxu0 %v1382
  %v1452 = vpop.f32.mrf.mxu0
  %v1453 = vadd.f32 0.0, %v1452
  %v1454 = vpop.f32.mrf.mxu0
  %1455 = vdwg.mxu0
  %1457 = vrot.lane.b32.xlu0 %v1376, 96
  %v1458 = vpop.permute.xlu0 %1457
  %v1459 = vsel %vm207, %v1376, 0
  %v1461 = vsel %vm207, %v1458, 0
  %1463 = vmatprep.subr.mxu0 0.0
  %1464 = vmatpush1.xpose.msra.mxu0 0.0
  %1465 = vmatprep.subr.mxu0 0.0
  %1466 = vmatpush1.xpose.msra.mxu0 0.0
  %1467 = vmatprep.subr.mxu0 0.0
  %1468 = vmatpush1.xpose.msra.mxu0 0.0
  %1469 = vmatprep.subr.mxu0 0.0
  %1470 = vmatpush1.xpose.msra.mxu0 0.0
  %1471 = vmatprep.subr.mxu0 0.0
  %1472 = vmatpush1.xpose.msra.mxu0 0.0
  %1473 = vmatprep.subr.mxu0 0.0
  %1474 = vmatpush1.xpose.msra.mxu0 0.0
  %1475 = vmatprep.subr.mxu0 0.0
  %1476 = vmatpush1.xpose.msra.mxu0 0.0
  %1477 = vmatprep.subr.mxu0 0.0
  %1478 = vmatpush1.xpose.msra.mxu0 0.0
  %1479 = vmatprep.subr.mxu0 0.0
  %1480 = vmatpush1.xpose.msra.mxu0 0.0
  %1481 = vmatprep.subr.mxu0 0.0
  %1482 = vmatpush1.xpose.msra.mxu0 0.0
  %1483 = vmatprep.subr.mxu0 0.0
  %1484 = vmatpush1.xpose.msra.mxu0 0.0
  %1485 = vmatprep.subr.mxu0 0.0
  %1486 = vmatpush1.xpose.msra.mxu0 0.0
  %1487 = vmatprep.subr.mxu0 0.0
  %1488 = vmatpush1.xpose.msra.mxu0 0.0
  %1489 = vmatprep.subr.mxu0 0.0
  %1490 = vmatpush1.xpose.msra.mxu0 0.0
  %1491 = vmatprep.subr.mxu0 0.0
  %1492 = vmatpush1.xpose.msra.mxu0 0.0
  %1493 = vmatprep.subr.mxu0 0.0
  %1494 = vmatpush1.xpose.msra.mxu0 %v1461
  %1495 = vmatprep.subr.mxu0 0.0
  %1496 = vmatpush2.xpose.msra.mxu0 0.0
  %1497 = vmatprep.subr.mxu0 0.0
  %1498 = vmatpush2.xpose.msra.mxu0 0.0
  %1499 = vmatprep.subr.mxu0 0.0
  %1500 = vmatpush2.xpose.msra.mxu0 0.0
  %1501 = vmatprep.subr.mxu0 0.0
  %1502 = vmatpush2.xpose.msra.mxu0 0.0
  %1503 = vmatprep.subr.mxu0 0.0
  %1504 = vmatpush2.xpose.msra.mxu0 0.0
  %1505 = vmatprep.subr.mxu0 0.0
  %1506 = vmatpush2.xpose.msra.mxu0 0.0
  %1507 = vmatprep.subr.mxu0 0.0
  %1508 = vmatpush2.xpose.msra.mxu0 0.0
  %1509 = vmatprep.subr.mxu0 0.0
  %1510 = vmatpush2.xpose.msra.mxu0 0.0
  %1511 = vmatprep.subr.mxu0 0.0
  %1512 = vmatpush2.xpose.msra.mxu0 0.0
  %1513 = vmatprep.subr.mxu0 0.0
  %1514 = vmatpush2.xpose.msra.mxu0 0.0
  %1515 = vmatprep.subr.mxu0 0.0
  %1516 = vmatpush2.xpose.msra.mxu0 0.0
  %1517 = vmatprep.subr.mxu0 0.0
  %1518 = vmatpush2.xpose.msra.mxu0 0.0
  %1519 = vmatprep.subr.mxu0 0.0
  %1520 = vmatpush2.xpose.msra.mxu0 0.0
  %1521 = vmatprep.subr.mxu0 0.0
  %1522 = vmatpush2.xpose.msra.mxu0 0.0
  %1523 = vmatprep.subr.mxu0 0.0
  %1524 = vmatpush2.xpose.msra.mxu0 0.0
  %1525 = vmatprep.subr.mxu0 0.0
  %1526 = vmatpush2.xpose.msra.mxu0 0.0
  %1527 = vmatprep.mubr.f32.mxu0 0.0
  %1528 = vmatmul.mubr.f32.gmra.mxu0 %v1459
  %v1529 = vpop.f32.mrf.mxu0
  %v1530 = vadd.f32 0.0, %v1529
  %v1531 = vpop.f32.mrf.mxu0
  %1532 = vdwg.mxu0
  %v1533 = vmul.f32 %v1453, 0.25
  %v1534 = vmul.f32 %v1530, 0.25
  %v1535 = vadd.f32 %v1533, %v366
  %v1536 = vadd.f32 %v1534, %v370
  %v1537 = vsel %vm375, %v1535, -inf
  %1538 = vmax.xlane.f32.xlu0 %v1537
  %v1539 = vpop.xlane.xlu0 %1538
  %v1540 = vsel %vm375, %v1536, -inf
  %1541 = vmax.xlane.f32.xlu0 %v1540
  %v1542 = vpop.xlane.xlu0 %1541
  %v1543 = vsub.f32 %v1535, %v1539
  %v1544 = vsub.f32 %v1536, %v1542
  %v1545 = vmul.f32 %v1543, 1.442695
  %v1546 = vpow.pop %v1545
  %v1547 = vmul.f32 %v1544, 1.442695
  %v1548 = vpow.pop %v1547
  %v1549 = vsel %vm375, %v1546, 0.0
  %1550 = vadd.xlane.f32.xlu0 %v1549
  %v1551 = vpop.xlane.xlu0 %1550
  %v1552 = vsel %vm375, %v1548, 0.0
  %1553 = vadd.xlane.f32.xlu0 %v1552
  %v1554 = vpop.xlane.xlu0 %1553
  %v1555 = vrcp.pop %v1551
  %v1556 = vmul.f32 %v1546, %v1555
  %v1557 = vrcp.pop %v1554
  %v1558 = vmul.f32 %v1548, %v1557
  %1559 = vrot.lane.b32.xlu0 %v1371, 64
  %v1560 = vpop.permute.xlu0 %1559
  %v1563 = vsel %vm375, %v1556, 0
  %1565 = vmatprep.subr.mxu0 0.0
  %1566 = vmatpush1.msra.mxu0 0.0
  %1567 = vmatprep.subr.mxu0 0.0
  %1568 = vmatpush1.msra.mxu0 0.0
  %1569 = vmatprep.subr.mxu0 0.0
  %1570 = vmatpush1.msra.mxu0 0.0
  %1571 = vmatprep.subr.mxu0 0.0
  %1572 = vmatpush1.msra.mxu0 0.0
  %1573 = vmatprep.subr.mxu0 0.0
  %1574 = vmatpush1.msra.mxu0 0.0
  %1575 = vmatprep.subr.mxu0 0.0
  %1576 = vmatpush1.msra.mxu0 0.0
  %1577 = vmatprep.subr.mxu0 0.0
  %1578 = vmatpush1.msra.mxu0 0.0
  %1579 = vmatprep.subr.mxu0 0.0
  %1580 = vmatpush1.msra.mxu0 0.0
  %1581 = vmatprep.subr.mxu0 0.0
  %1582 = vmatpush1.msra.mxu0 0.0
  %1583 = vmatprep.subr.mxu0 0.0
  %1584 = vmatpush1.msra.mxu0 0.0
  %1585 = vmatprep.subr.mxu0 0.0
  %1586 = vmatpush1.msra.mxu0 0.0
  %1587 = vmatprep.subr.mxu0 0.0
  %1588 = vmatpush1.msra.mxu0 0.0
  %1589 = vmatprep.subr.mxu0 0.0
  %1590 = vmatpush1.msra.mxu0 0.0
  %1591 = vmatprep.subr.mxu0 0.0
  %1592 = vmatpush1.msra.mxu0 0.0
  %1593 = vmatprep.subr.mxu0 0.0
  %1594 = vmatpush1.msra.mxu0 0.0
  %1595 = vmatprep.subr.mxu0 0.0
  %1596 = vmatpush1.msra.mxu0 %v1560
  %1597 = vmatprep.subr.mxu0 0.0
  %1598 = vmatpush2.msra.mxu0 0.0
  %1599 = vmatprep.subr.mxu0 0.0
  %1600 = vmatpush2.msra.mxu0 0.0
  %1601 = vmatprep.subr.mxu0 0.0
  %1602 = vmatpush2.msra.mxu0 0.0
  %1603 = vmatprep.subr.mxu0 0.0
  %1604 = vmatpush2.msra.mxu0 0.0
  %1605 = vmatprep.subr.mxu0 0.0
  %1606 = vmatpush2.msra.mxu0 0.0
  %1607 = vmatprep.subr.mxu0 0.0
  %1608 = vmatpush2.msra.mxu0 0.0
  %1609 = vmatprep.subr.mxu0 0.0
  %1610 = vmatpush2.msra.mxu0 0.0
  %1611 = vmatprep.subr.mxu0 0.0
  %1612 = vmatpush2.msra.mxu0 0.0
  %1613 = vmatprep.subr.mxu0 0.0
  %1614 = vmatpush2.msra.mxu0 0.0
  %1615 = vmatprep.subr.mxu0 0.0
  %1616 = vmatpush2.msra.mxu0 0.0
  %1617 = vmatprep.subr.mxu0 0.0
  %1618 = vmatpush2.msra.mxu0 0.0
  %1619 = vmatprep.subr.mxu0 0.0
  %1620 = vmatpush2.msra.mxu0 0.0
  %1621 = vmatprep.subr.mxu0 0.0
  %1622 = vmatpush2.msra.mxu0 0.0
  %1623 = vmatprep.subr.mxu0 0.0
  %1624 = vmatpush2.msra.mxu0 0.0
  %1625 = vmatprep.subr.mxu0 0.0
  %1626 = vmatpush2.msra.mxu0 0.0
  %1627 = vmatprep.subr.mxu0 0.0
  %1628 = vmatpush2.msra.mxu0 0.0
  %1629 = vmatprep.mubr.f32.mxu0 0.0
  %1630 = vmatmul.mubr.f32.gmra.mxu0 %v1563
  %v1631 = vpop.f32.mrf.mxu0
  %v1632 = vadd.f32 0.0, %v1631
  %v1633 = vpop.f32.mrf.mxu0
  %1634 = vdwg.mxu0
  %1635 = vrot.lane.b32.xlu0 %v1376, 64
  %v1636 = vpop.permute.xlu0 %1635
  %v1639 = vsel %vm375, %v1558, 0
  %1641 = vmatprep.subr.mxu0 0.0
  %1642 = vmatpush1.msra.mxu0 0.0
  %1643 = vmatprep.subr.mxu0 0.0
  %1644 = vmatpush1.msra.mxu0 0.0
  %1645 = vmatprep.subr.mxu0 0.0
  %1646 = vmatpush1.msra.mxu0 0.0
  %1647 = vmatprep.subr.mxu0 0.0
  %1648 = vmatpush1.msra.mxu0 0.0
  %1649 = vmatprep.subr.mxu0 0.0
  %1650 = vmatpush1.msra.mxu0 0.0
  %1651 = vmatprep.subr.mxu0 0.0
  %1652 = vmatpush1.msra.mxu0 0.0
  %1653 = vmatprep.subr.mxu0 0.0
  %1654 = vmatpush1.msra.mxu0 0.0
  %1655 = vmatprep.subr.mxu0 0.0
  %1656 = vmatpush1.msra.mxu0 0.0
  %1657 = vmatprep.subr.mxu0 0.0
  %1658 = vmatpush1.msra.mxu0 0.0
  %1659 = vmatprep.subr.mxu0 0.0
  %1660 = vmatpush1.msra.mxu0 0.0
  %1661 = vmatprep.subr.mxu0 0.0
  %1662 = vmatpush1.msra.mxu0 0.0
  %1663 = vmatprep.subr.mxu0 0.0
  %1664 = vmatpush1.msra.mxu0 0.0
  %1665 = vmatprep.subr.mxu0 0.0
  %1666 = vmatpush1.msra.mxu0 0.0
  %1667 = vmatprep.subr.mxu0 0.0
  %1668 = vmatpush1.msra.mxu0 0.0
  %1669 = vmatprep.subr.mxu0 0.0
  %1670 = vmatpush1.msra.mxu0 0.0
  %1671 = vmatprep.subr.mxu0 0.0
  %1672 = vmatpush1.msra.mxu0 %v1636
  %1673 = vmatprep.subr.mxu0 0.0
  %1674 = vmatpush2.msra.mxu0 0.0
  %1675 = vmatprep.subr.mxu0 0.0
  %1676 = vmatpush2.msra.mxu0 0.0
  %1677 = vmatprep.subr.mxu0 0.0
  %1678 = vmatpush2.msra.mxu0 0.0
  %1679 = vmatprep.subr.mxu0 0.0
  %1680 = vmatpush2.msra.mxu0 0.0
  %1681 = vmatprep.subr.mxu0 0.0
  %1682 = vmatpush2.msra.mxu0 0.0
  %1683 = vmatprep.subr.mxu0 0.0
  %1684 = vmatpush2.msra.mxu0 0.0
  %1685 = vmatprep.subr.mxu0 0.0
  %1686 = vmatpush2.msra.mxu0 0.0
  %1687 = vmatprep.subr.mxu0 0.0
  %1688 = vmatpush2.msra.mxu0 0.0
  %1689 = vmatprep.subr.mxu0 0.0
  %1690 = vmatpush2.msra.mxu0 0.0
  %1691 = vmatprep.subr.mxu0 0.0
  %1692 = vmatpush2.msra.mxu0 0.0
  %1693 = vmatprep.subr.mxu0 0.0
  %1694 = vmatpush2.msra.mxu0 0.0
  %1695 = vmatprep.subr.mxu0 0.0
  %1696 = vmatpush2.msra.mxu0 0.0
  %1697 = vmatprep.subr.mxu0 0.0
  %1698 = vmatpush2.msra.mxu0 0.0
  %1699 = vmatprep.subr.mxu0 0.0
  %1700 = vmatpush2.msra.mxu0 0.0
  %1701 = vmatprep.subr.mxu0 0.0
  %1702 = vmatpush2.msra.mxu0 0.0
  %1703 = vmatprep.subr.mxu0 0.0
  %1704 = vmatpush2.msra.mxu0 0.0
  %1705 = vmatprep.mubr.f32.mxu0 0.0
  %1706 = vmatmul.mubr.f32.gmra.mxu0 %v1639
  %v1707 = vpop.f32.mrf.mxu0
  %v1708 = vadd.f32 0.0, %v1707
  %v1709 = vpop.f32.mrf.mxu0
  %1710 = vdwg.mxu0
  %1711 = vrot.lane.b32.xlu0 %v1371, 112
  %v1712 = vpop.permute.xlu0 %1711
  %1713 = vrot.lane.b32.xlu0 %v1371, 80
  %v1714 = vpop.permute.xlu0 %1713
  %v1715 = vsel %vm207, %v1712, 0
  %v1717 = vsel %vm207, %v1714, 0
  %1719 = vmatprep.subr.mxu0 0.0
  %1720 = vmatpush1.xpose.msra.mxu0 0.0
  %1721 = vmatprep.subr.mxu0 0.0
  %1722 = vmatpush1.xpose.msra.mxu0 0.0
  %1723 = vmatprep.subr.mxu0 0.0
  %1724 = vmatpush1.xpose.msra.mxu0 0.0
  %1725 = vmatprep.subr.mxu0 0.0
  %1726 = vmatpush1.xpose.msra.mxu0 0.0
  %1727 = vmatprep.subr.mxu0 0.0
  %1728 = vmatpush1.xpose.msra.mxu0 0.0
  %1729 = vmatprep.subr.mxu0 0.0
  %1730 = vmatpush1.xpose.msra.mxu0 0.0
  %1731 = vmatprep.subr.mxu0 0.0
  %1732 = vmatpush1.xpose.msra.mxu0 0.0
  %1733 = vmatprep.subr.mxu0 0.0
  %1734 = vmatpush1.xpose.msra.mxu0 0.0
  %1735 = vmatprep.subr.mxu0 0.0
  %1736 = vmatpush1.xpose.msra.mxu0 0.0
  %1737 = vmatprep.subr.mxu0 0.0
  %1738 = vmatpush1.xpose.msra.mxu0 0.0
  %1739 = vmatprep.subr.mxu0 0.0
  %1740 = vmatpush1.xpose.msra.mxu0 0.0
  %1741 = vmatprep.subr.mxu0 0.0
  %1742 = vmatpush1.xpose.msra.mxu0 0.0
  %1743 = vmatprep.subr.mxu0 0.0
  %1744 = vmatpush1.xpose.msra.mxu0 0.0
  %1745 = vmatprep.subr.mxu0 0.0
  %1746 = vmatpush1.xpose.msra.mxu0 0.0
  %1747 = vmatprep.subr.mxu0 0.0
  %1748 = vmatpush1.xpose.msra.mxu0 0.0
  %1749 = vmatprep.subr.mxu0 0.0
  %1750 = vmatpush1.xpose.msra.mxu0 %v1717
  %1751 = vmatprep.subr.mxu0 0.0
  %1752 = vmatpush2.xpose.msra.mxu0 0.0
  %1753 = vmatprep.subr.mxu0 0.0
  %1754 = vmatpush2.xpose.msra.mxu0 0.0
  %1755 = vmatprep.subr.mxu0 0.0
  %1756 = vmatpush2.xpose.msra.mxu0 0.0
  %1757 = vmatprep.subr.mxu0 0.0
  %1758 = vmatpush2.xpose.msra.mxu0 0.0
  %1759 = vmatprep.subr.mxu0 0.0
  %1760 = vmatpush2.xpose.msra.mxu0 0.0
  %1761 = vmatprep.subr.mxu0 0.0
  %1762 = vmatpush2.xpose.msra.mxu0 0.0
  %1763 = vmatprep.subr.mxu0 0.0
  %1764 = vmatpush2.xpose.msra.mxu0 0.0
  %1765 = vmatprep.subr.mxu0 0.0
  %1766 = vmatpush2.xpose.msra.mxu0 0.0
  %1767 = vmatprep.subr.mxu0 0.0
  %1768 = vmatpush2.xpose.msra.mxu0 0.0
  %1769 = vmatprep.subr.mxu0 0.0
  %1770 = vmatpush2.xpose.msra.mxu0 0.0
  %1771 = vmatprep.subr.mxu0 0.0
  %1772 = vmatpush2.xpose.msra.mxu0 0.0
  %1773 = vmatprep.subr.mxu0 0.0
  %1774 = vmatpush2.xpose.msra.mxu0 0.0
  %1775 = vmatprep.subr.mxu0 0.0
  %1776 = vmatpush2.xpose.msra.mxu0 0.0
  %1777 = vmatprep.subr.mxu0 0.0
  %1778 = vmatpush2.xpose.msra.mxu0 0.0
  %1779 = vmatprep.subr.mxu0 0.0
  %1780 = vmatpush2.xpose.msra.mxu0 0.0
  %1781 = vmatprep.subr.mxu0 0.0
  %1782 = vmatpush2.xpose.msra.mxu0 0.0
  %1783 = vmatprep.mubr.f32.mxu0 0.0
  %1784 = vmatmul.mubr.f32.gmra.mxu0 %v1715
  %v1785 = vpop.f32.mrf.mxu0
  %v1786 = vadd.f32 0.0, %v1785
  %v1787 = vpop.f32.mrf.mxu0
  %1788 = vdwg.mxu0
  %1789 = vrot.lane.b32.xlu0 %v1376, 112
  %v1790 = vpop.permute.xlu0 %1789
  %1791 = vrot.lane.b32.xlu0 %v1376, 80
  %v1792 = vpop.permute.xlu0 %1791
  %v1793 = vsel %vm207, %v1790, 0
  %v1795 = vsel %vm207, %v1792, 0
  %1797 = vmatprep.subr.mxu0 0.0
  %1798 = vmatpush1.xpose.msra.mxu0 0.0
  %1799 = vmatprep.subr.mxu0 0.0
  %1800 = vmatpush1.xpose.msra.mxu0 0.0
  %1801 = vmatprep.subr.mxu0 0.0
  %1802 = vmatpush1.xpose.msra.mxu0 0.0
  %1803 = vmatprep.subr.mxu0 0.0
  %1804 = vmatpush1.xpose.msra.mxu0 0.0
  %1805 = vmatprep.subr.mxu0 0.0
  %1806 = vmatpush1.xpose.msra.mxu0 0.0
  %1807 = vmatprep.subr.mxu0 0.0
  %1808 = vmatpush1.xpose.msra.mxu0 0.0
  %1809 = vmatprep.subr.mxu0 0.0
  %1810 = vmatpush1.xpose.msra.mxu0 0.0
  %1811 = vmatprep.subr.mxu0 0.0
  %1812 = vmatpush1.xpose.msra.mxu0 0.0
  %1813 = vmatprep.subr.mxu0 0.0
  %1814 = vmatpush1.xpose.msra.mxu0 0.0
  %1815 = vmatprep.subr.mxu0 0.0
  %1816 = vmatpush1.xpose.msra.mxu0 0.0
  %1817 = vmatprep.subr.mxu0 0.0
  %1818 = vmatpush1.xpose.msra.mxu0 0.0
  %1819 = vmatprep.subr.mxu0 0.0
  %1820 = vmatpush1.xpose.msra.mxu0 0.0
  %1821 = vmatprep.subr.mxu0 0.0
  %1822 = vmatpush1.xpose.msra.mxu0 0.0
  %1823 = vmatprep.subr.mxu0 0.0
  %1824 = vmatpush1.xpose.msra.mxu0 0.0
  %1825 = vmatprep.subr.mxu0 0.0
  %1826 = vmatpush1.xpose.msra.mxu0 0.0
  %1827 = vmatprep.subr.mxu0 0.0
  %1828 = vmatpush1.xpose.msra.mxu0 %v1795
  %1829 = vmatprep.subr.mxu0 0.0
  %1830 = vmatpush2.xpose.msra.mxu0 0.0
  %1831 = vmatprep.subr.mxu0 0.0
  %1832 = vmatpush2.xpose.msra.mxu0 0.0
  %1833 = vmatprep.subr.mxu0 0.0
  %1834 = vmatpush2.xpose.msra.mxu0 0.0
  %1835 = vmatprep.subr.mxu0 0.0
  %1836 = vmatpush2.xpose.msra.mxu0 0.0
  %1837 = vmatprep.subr.mxu0 0.0
  %1838 = vmatpush2.xpose.msra.mxu0 0.0
  %1839 = vmatprep.subr.mxu0 0.0
  %1840 = vmatpush2.xpose.msra.mxu0 0.0
  %1841 = vmatprep.subr.mxu0 0.0
  %1842 = vmatpush2.xpose.msra.mxu0 0.0
  %1843 = vmatprep.subr.mxu0 0.0
  %1844 = vmatpush2.xpose.msra.mxu0 0.0
  %1845 = vmatprep.subr.mxu0 0.0
  %1846 = vmatpush2.xpose.msra.mxu0 0.0
  %1847 = vmatprep.subr.mxu0 0.0
  %1848 = vmatpush2.xpose.msra.mxu0 0.0
  %1849 = vmatprep.subr.mxu0 0.0
  %1850 = vmatpush2.xpose.msra.mxu0 0.0
  %1851 = vmatprep.subr.mxu0 0.0
  %1852 = vmatpush2.xpose.msra.mxu0 0.0
  %1853 = vmatprep.subr.mxu0 0.0
  %1854 = vmatpush2.xpose.msra.mxu0 0.0
  %1855 = vmatprep.subr.mxu0 0.0
  %1856 = vmatpush2.xpose.msra.mxu0 0.0
  %1857 = vmatprep.subr.mxu0 0.0
  %1858 = vmatpush2.xpose.msra.mxu0 0.0
  %1859 = vmatprep.subr.mxu0 0.0
  %1860 = vmatpush2.xpose.msra.mxu0 0.0
  %1861 = vmatprep.mubr.f32.mxu0 0.0
  %1862 = vmatmul.mubr.f32.gmra.mxu0 %v1793
  %v1863 = vpop.f32.mrf.mxu0
  %v1864 = vadd.f32 0.0, %v1863
  %v1865 = vpop.f32.mrf.mxu0
  %1866 = vdwg.mxu0
  %v1867 = vmul.f32 %v1786, 0.25
  %v1868 = vmul.f32 %v1864, 0.25
  %v1869 = vadd.f32 %v1867, %v366
  %v1870 = vadd.f32 %v1868, %v370
  %v1871 = vsel %vm375, %v1869, -inf
  %1872 = vmax.xlane.f32.xlu0 %v1871
  %v1873 = vpop.xlane.xlu0 %1872
  %v1874 = vsel %vm375, %v1870, -inf
  %1875 = vmax.xlane.f32.xlu0 %v1874
  %v1876 = vpop.xlane.xlu0 %1875
  %v1877 = vsub.f32 %v1869, %v1873
  %v1878 = vsub.f32 %v1870, %v1876
  %v1879 = vmul.f32 %v1877, 1.442695
  %v1880 = vpow.pop %v1879
  %v1881 = vmul.f32 %v1878, 1.442695
  %v1882 = vpow.pop %v1881
  %v1883 = vsel %vm375, %v1880, 0.0
  %1884 = vadd.xlane.f32.xlu0 %v1883
  %v1885 = vpop.xlane.xlu0 %1884
  %v1886 = vsel %vm375, %v1882, 0.0
  %1887 = vadd.xlane.f32.xlu0 %v1886
  %v1888 = vpop.xlane.xlu0 %1887
  %v1889 = vrcp.pop %v1885
  %v1890 = vmul.f32 %v1880, %v1889
  %v1891 = vrcp.pop %v1888
  %v1892 = vmul.f32 %v1882, %v1891
  %1893 = vrot.lane.b32.xlu0 %v1371, 48
  %v1894 = vpop.permute.xlu0 %1893
  %v1897 = vsel %vm375, %v1890, 0
  %1899 = vmatprep.subr.mxu0 0.0
  %1900 = vmatpush1.msra.mxu0 0.0
  %1901 = vmatprep.subr.mxu0 0.0
  %1902 = vmatpush1.msra.mxu0 0.0
  %1903 = vmatprep.subr.mxu0 0.0
  %1904 = vmatpush1.msra.mxu0 0.0
  %1905 = vmatprep.subr.mxu0 0.0
  %1906 = vmatpush1.msra.mxu0 0.0
  %1907 = vmatprep.subr.mxu0 0.0
  %1908 = vmatpush1.msra.mxu0 0.0
  %1909 = vmatprep.subr.mxu0 0.0
  %1910 = vmatpush1.msra.mxu0 0.0
  %1911 = vmatprep.subr.mxu0 0.0
  %1912 = vmatpush1.msra.mxu0 0.0
  %1913 = vmatprep.subr.mxu0 0.0
  %1914 = vmatpush1.msra.mxu0 0.0
  %1915 = vmatprep.subr.mxu0 0.0
  %1916 = vmatpush1.msra.mxu0 0.0
  %1917 = vmatprep.subr.mxu0 0.0
  %1918 = vmatpush1.msra.mxu0 0.0
  %1919 = vmatprep.subr.mxu0 0.0
  %1920 = vmatpush1.msra.mxu0 0.0
  %1921 = vmatprep.subr.mxu0 0.0
  %1922 = vmatpush1.msra.mxu0 0.0
  %1923 = vmatprep.subr.mxu0 0.0
  %1924 = vmatpush1.msra.mxu0 0.0
  %1925 = vmatprep.subr.mxu0 0.0
  %1926 = vmatpush1.msra.mxu0 0.0
  %1927 = vmatprep.subr.mxu0 0.0
  %1928 = vmatpush1.msra.mxu0 0.0
  %1929 = vmatprep.subr.mxu0 0.0
  %1930 = vmatpush1.msra.mxu0 %v1894
  %1931 = vmatprep.subr.mxu0 0.0
  %1932 = vmatpush2.msra.mxu0 0.0
  %1933 = vmatprep.subr.mxu0 0.0
  %1934 = vmatpush2.msra.mxu0 0.0
  %1935 = vmatprep.subr.mxu0 0.0
  %1936 = vmatpush2.msra.mxu0 0.0
  %1937 = vmatprep.subr.mxu0 0.0
  %1938 = vmatpush2.msra.mxu0 0.0
  %1939 = vmatprep.subr.mxu0 0.0
  %1940 = vmatpush2.msra.mxu0 0.0
  %1941 = vmatprep.subr.mxu0 0.0
  %1942 = vmatpush2.msra.mxu0 0.0
  %1943 = vmatprep.subr.mxu0 0.0
  %1944 = vmatpush2.msra.mxu0 0.0
  %1945 = vmatprep.subr.mxu0 0.0
  %1946 = vmatpush2.msra.mxu0 0.0
  %1947 = vmatprep.subr.mxu0 0.0
  %1948 = vmatpush2.msra.mxu0 0.0
  %1949 = vmatprep.subr.mxu0 0.0
  %1950 = vmatpush2.msra.mxu0 0.0
  %1951 = vmatprep.subr.mxu0 0.0
  %1952 = vmatpush2.msra.mxu0 0.0
  %1953 = vmatprep.subr.mxu0 0.0
  %1954 = vmatpush2.msra.mxu0 0.0
  %1955 = vmatprep.subr.mxu0 0.0
  %1956 = vmatpush2.msra.mxu0 0.0
  %1957 = vmatprep.subr.mxu0 0.0
  %1958 = vmatpush2.msra.mxu0 0.0
  %1959 = vmatprep.subr.mxu0 0.0
  %1960 = vmatpush2.msra.mxu0 0.0
  %1961 = vmatprep.subr.mxu0 0.0
  %1962 = vmatpush2.msra.mxu0 0.0
  %1963 = vmatprep.mubr.f32.mxu0 0.0
  %1964 = vmatmul.mubr.f32.gmra.mxu0 %v1897
  %v1965 = vpop.f32.mrf.mxu0
  %v1966 = vadd.f32 0.0, %v1965
  %v1967 = vpop.f32.mrf.mxu0
  %1968 = vdwg.mxu0
  %1969 = vrot.lane.b32.xlu0 %v1376, 48
  %v1970 = vpop.permute.xlu0 %1969
  %v1973 = vsel %vm375, %v1892, 0
  %1975 = vmatprep.subr.mxu0 0.0
  %1976 = vmatpush1.msra.mxu0 0.0
  %1977 = vmatprep.subr.mxu0 0.0
  %1978 = vmatpush1.msra.mxu0 0.0
  %1979 = vmatprep.subr.mxu0 0.0
  %1980 = vmatpush1.msra.mxu0 0.0
  %1981 = vmatprep.subr.mxu0 0.0
  %1982 = vmatpush1.msra.mxu0 0.0
  %1983 = vmatprep.subr.mxu0 0.0
  %1984 = vmatpush1.msra.mxu0 0.0
  %1985 = vmatprep.subr.mxu0 0.0
  %1986 = vmatpush1.msra.mxu0 0.0
  %1987 = vmatprep.subr.mxu0 0.0
  %1988 = vmatpush1.msra.mxu0 0.0
  %1989 = vmatprep.subr.mxu0 0.0
  %1990 = vmatpush1.msra.mxu0 0.0
  %1991 = vmatprep.subr.mxu0 0.0
  %1992 = vmatpush1.msra.mxu0 0.0
  %1993 = vmatprep.subr.mxu0 0.0
  %1994 = vmatpush1.msra.mxu0 0.0
  %1995 = vmatprep.subr.mxu0 0.0
  %1996 = vmatpush1.msra.mxu0 0.0
  %1997 = vmatprep.subr.mxu0 0.0
  %1998 = vmatpush1.msra.mxu0 0.0
  %1999 = vmatprep.subr.mxu0 0.0
  %2000 = vmatpush1.msra.mxu0 0.0
  %2001 = vmatprep.subr.mxu0 0.0
  %2002 = vmatpush1.msra.mxu0 0.0
  %2003 = vmatprep.subr.mxu0 0.0
  %2004 = vmatpush1.msra.mxu0 0.0
  %2005 = vmatprep.subr.mxu0 0.0
  %2006 = vmatpush1.msra.mxu0 %v1970
  %2007 = vmatprep.subr.mxu0 0.0
  %2008 = vmatpush2.msra.mxu0 0.0
  %2009 = vmatprep.subr.mxu0 0.0
  %2010 = vmatpush2.msra.mxu0 0.0
  %2011 = vmatprep.subr.mxu0 0.0
  %2012 = vmatpush2.msra.mxu0 0.0
  %2013 = vmatprep.subr.mxu0 0.0
  %2014 = vmatpush2.msra.mxu0 0.0
  %2015 = vmatprep.subr.mxu0 0.0
  %2016 = vmatpush2.msra.mxu0 0.0
  %2017 = vmatprep.subr.mxu0 0.0
  %2018 = vmatpush2.msra.mxu0 0.0
  %2019 = vmatprep.subr.mxu0 0.0
  %2020 = vmatpush2.msra.mxu0 0.0
  %2021 = vmatprep.subr.mxu0 0.0
  %2022 = vmatpush2.msra.mxu0 0.0
  %2023 = vmatprep.subr.mxu0 0.0
  %2024 = vmatpush2.msra.mxu0 0.0
  %2025 = vmatprep.subr.mxu0 0.0
  %2026 = vmatpush2.msra.mxu0 0.0
  %2027 = vmatprep.subr.mxu0 0.0
  %2028 = vmatpush2.msra.mxu0 0.0
  %2029 = vmatprep.subr.mxu0 0.0
  %2030 = vmatpush2.msra.mxu0 0.0
  %2031 = vmatprep.subr.mxu0 0.0
  %2032 = vmatpush2.msra.mxu0 0.0
  %2033 = vmatprep.subr.mxu0 0.0
  %2034 = vmatpush2.msra.mxu0 0.0
  %2035 = vmatprep.subr.mxu0 0.0
  %2036 = vmatpush2.msra.mxu0 0.0
  %2037 = vmatprep.subr.mxu0 0.0
  %2038 = vmatpush2.msra.mxu0 0.0
  %2039 = vmatprep.mubr.f32.mxu0 0.0
  %2040 = vmatmul.mubr.f32.gmra.mxu0 %v1973
  %v2041 = vpop.f32.mrf.mxu0
  %v2042 = vadd.f32 0.0, %v2041
  %v2043 = vpop.f32.mrf.mxu0
  %2044 = vdwg.mxu0
  %2047 = vrot.lane.b32.xlu0 %v1966, 16
  %v2048 = vpop.permute.xlu0 %2047
  %2049 = vrot.lane.b32.xlu0 %v2042, 16
  %v2050 = vpop.permute.xlu0 %2049
  %v2053 = vsel %vm207, %v1632, %v2048
  %v2054 = vsel %vm207, %v1708, %v2050
  %s2055 = scalar_lea.vmem %s7, 32
  %v2056 = vld [vmem:[%s2055] sm:$0xff]
  %v2057 = vld [vmem:[%s2055 + $0x8] sm:$0xff]
  %v2058 = vld [vmem:[%s2055 + $0x10] sm:$0xff]
  %v2059 = vld [vmem:[%s2055 + $0x18] sm:$0xff]
  %s2060 = scalar_lea.vmem %s8, 1
  %v2061 = vld [vmem:[%s2060] sm:$0x1]
  %v2063 = vlaneseq
  %v2064 = vshrl.u32 %v2063, 7
  %v2065 = vsub.s32 0, %v2064
  %v2066 = vrot.slane %v2061, %v2065
  %v2069 = vsel %vm66, %v2053, 0
  %v2072 = vsel %vm66, %v2054, 0
  %2074 = vmatprep.subr.mxu0 0.0
  %2075 = vmatpush1.msra.mxu0 0.0
  %2076 = vmatprep.subr.mxu0 0.0
  %2077 = vmatpush1.msra.mxu0 0.0
  %2078 = vmatprep.subr.mxu0 0.0
  %2079 = vmatpush1.msra.mxu0 0.0
  %2080 = vmatprep.subr.mxu0 0.0
  %2081 = vmatpush1.msra.mxu0 0.0
  %2082 = vmatprep.subr.mxu0 0.0
  %2083 = vmatpush1.msra.mxu0 0.0
  %2084 = vmatprep.subr.mxu0 0.0
  %2085 = vmatpush1.msra.mxu0 0.0
  %2086 = vmatprep.subr.mxu0 0.0
  %2087 = vmatpush1.msra.mxu0 0.0
  %2088 = vmatprep.subr.mxu0 0.0
  %2089 = vmatpush1.msra.mxu0 0.0
  %2090 = vmatprep.subr.mxu0 0.0
  %2091 = vmatpush1.msra.mxu0 0.0
  %2092 = vmatprep.subr.mxu0 0.0
  %2093 = vmatpush1.msra.mxu0 0.0
  %2094 = vmatprep.subr.mxu0 0.0
  %2095 = vmatpush1.msra.mxu0 0.0
  %2096 = vmatprep.subr.mxu0 0.0
  %2097 = vmatpush1.msra.mxu0 0.0
  %2098 = vmatprep.subr.mxu0 0.0
  %2099 = vmatpush1.msra.mxu0 %v2059
  %2100 = vmatprep.subr.mxu0 0.0
  %2101 = vmatpush1.msra.mxu0 %v2058
  %2102 = vmatprep.subr.mxu0 0.0
  %2103 = vmatpush1.msra.mxu0 %v2057
  %2104 = vmatprep.subr.mxu0 0.0
  %2105 = vmatpush1.msra.mxu0 %v2056
  %2106 = vmatprep.subr.mxu0 0.0
  %2107 = vmatpush2.msra.mxu0 0.0
  %2108 = vmatprep.subr.mxu0 0.0
  %2109 = vmatpush2.msra.mxu0 0.0
  %2110 = vmatprep.subr.mxu0 0.0
  %2111 = vmatpush2.msra.mxu0 0.0
  %2112 = vmatprep.subr.mxu0 0.0
  %2113 = vmatpush2.msra.mxu0 0.0
  %2114 = vmatprep.subr.mxu0 0.0
  %2115 = vmatpush2.msra.mxu0 0.0
  %2116 = vmatprep.subr.mxu0 0.0
  %2117 = vmatpush2.msra.mxu0 0.0
  %2118 = vmatprep.subr.mxu0 0.0
  %2119 = vmatpush2.msra.mxu0 0.0
  %2120 = vmatprep.subr.mxu0 0.0
  %2121 = vmatpush2.msra.mxu0 0.0
  %2122 = vmatprep.subr.mxu0 0.0
  %2123 = vmatpush2.msra.mxu0 0.0
  %2124 = vmatprep.subr.mxu0 0.0
  %2125 = vmatpush2.msra.mxu0 0.0
  %2126 = vmatprep.subr.mxu0 0.0
  %2127 = vmatpush2.msra.mxu0 0.0
  %2128 = vmatprep.subr.mxu0 0.0
  %2129 = vmatpush2.msra.mxu0 0.0
  %2130 = vmatprep.subr.mxu0 0.0
  %2131 = vmatpush2.msra.mxu0 0.0
  %2132 = vmatprep.subr.mxu0 0.0
  %2133 = vmatpush2.msra.mxu0 0.0
  %2134 = vmatprep.subr.mxu0 0.0
  %2135 = vmatpush2.msra.mxu0 0.0
  %2136 = vmatprep.subr.mxu0 0.0
  %2137 = vmatpush2.msra.mxu0 0.0
  %2138 = vmatprep.mubr.f32.mxu0 0.0
  %2139 = vmatmul.mubr.f32.gmra.mxu0 %v2069
  %v2140 = vpop.f32.mrf.mxu0
  %v2141 = vadd.f32 %v2066, %v2140
  %v2142 = vpop.f32.mrf.mxu0
  %2143 = vmatprep.mubr.f32.mxu0 0.0
  %2144 = vmatmul.mubr.f32.gmra.mxu0 %v2072
  %v2145 = vpop.f32.mrf.mxu0
  %v2146 = vadd.f32 %v2066, %v2145
  %v2147 = vpop.f32.mrf.mxu0
  %2148 = vdwg.mxu0
  %v2149 = vadd.f32 %v1283, %v2141
  %v2150 = vadd.f32 %v1284, %v2146
  %s2151 = scalar_lea.vmem %s9, 1
  %v2152 = vld [vmem:[%s2151] sm:$0x1]
  %s2153 = scalar_lea.vmem %s10, 1
  %v2154 = vld [vmem:[%s2153] sm:$0x1]
  %v2155 = vsel %vm66, %v2149, 0.0
  %2156 = vadd.xlane.f32.xlu0 %v2155
  %v2157 = vpop.xlane.xlu0 %2156
  %v2158 = vsel %vm66, %v2150, 0.0
  %2159 = vadd.xlane.f32.xlu0 %v2158
  %v2160 = vpop.xlane.xlu0 %2159
  %v2161 = vmul.f32 %v2157, %v73
  %v2162 = vmul.f32 %v2160, %v73
  %v2163 = vsub.f32 %v2149, %v2161
  %v2164 = vsub.f32 %v2150, %v2162
  %v2165 = vmul.f32 %v2163, %v2163
  %v2166 = vmul.f32 %v2164, %v2164
  %v2167 = vsel %vm66, %v2165, 0.0
  %2168 = vadd.xlane.f32.xlu0 %v2167
  %v2169 = vpop.xlane.xlu0 %2168
  %v2170 = vsel %vm66, %v2166, 0.0
  %2171 = vadd.xlane.f32.xlu0 %v2170
  %v2172 = vpop.xlane.xlu0 %2171
  %v2173 = vmul.f32 %v2169, %v73
  %v2174 = vmul.f32 %v2172, %v73
  %v2175 = vadd.f32 %v2173, 1e-12
  %v2176 = vadd.f32 %v2174, 1e-12
  %v2177 = vrsqrt.pop %v2175
  %v2178 = vrsqrt.pop %v2176
  %v2179 = vmul.f32 %v2163, %v2177
  %v2180 = vmul.f32 %v2164, %v2178
  %v2182 = vlaneseq
  %v2183 = vshrl.u32 %v2182, 7
  %v2184 = vsub.s32 0, %v2183
  %v2185 = vrot.slane %v2152, %v2184
  %v2187 = vmul.f32 %v2179, %v2185
  %v2188 = vmul.f32 %v2180, %v2185
  %v2190 = vlaneseq
  %v2191 = vshrl.u32 %v2190, 7
  %v2192 = vsub.s32 0, %v2191
  %v2193 = vrot.slane %v2154, %v2192
  %v2195 = vadd.f32 %v2187, %v2193
  %v2196 = vadd.f32 %v2188, %v2193
  %s2197 = scalar_lea.vmem %s11, 32
  %v2198 = vld [vmem:[%s2197] sm:$0xff]
  %v2199 = vld [vmem:[%s2197 + $0x8] sm:$0xff]
  %v2200 = vld [vmem:[%s2197 + $0x10] sm:$0xff]
  %v2201 = vld [vmem:[%s2197 + $0x18] sm:$0xff]
  %s2202 = scalar_lea.vmem %s12, 1
  %v2203 = vld [vmem:[%s2202] sm:$0x1]
  %v2205 = vlaneseq
  %v2206 = vshrl.u32 %v2205, 7
  %v2207 = vsub.s32 0, %v2206
  %v2208 = vrot.slane %v2203, %v2207
  %v2211 = vsel %vm66, %v2195, 0
  %v2214 = vsel %vm66, %v2196, 0
  %2216 = vmatprep.subr.mxu0 0.0
  %2217 = vmatpush1.msra.mxu0 0.0
  %2218 = vmatprep.subr.mxu0 0.0
  %2219 = vmatpush1.msra.mxu0 0.0
  %2220 = vmatprep.subr.mxu0 0.0
  %2221 = vmatpush1.msra.mxu0 0.0
  %2222 = vmatprep.subr.mxu0 0.0
  %2223 = vmatpush1.msra.mxu0 0.0
  %2224 = vmatprep.subr.mxu0 0.0
  %2225 = vmatpush1.msra.mxu0 0.0
  %2226 = vmatprep.subr.mxu0 0.0
  %2227 = vmatpush1.msra.mxu0 0.0
  %2228 = vmatprep.subr.mxu0 0.0
  %2229 = vmatpush1.msra.mxu0 0.0
  %2230 = vmatprep.subr.mxu0 0.0
  %2231 = vmatpush1.msra.mxu0 0.0
  %2232 = vmatprep.subr.mxu0 0.0
  %2233 = vmatpush1.msra.mxu0 0.0
  %2234 = vmatprep.subr.mxu0 0.0
  %2235 = vmatpush1.msra.mxu0 0.0
  %2236 = vmatprep.subr.mxu0 0.0
  %2237 = vmatpush1.msra.mxu0 0.0
  %2238 = vmatprep.subr.mxu0 0.0
  %2239 = vmatpush1.msra.mxu0 0.0
  %2240 = vmatprep.subr.mxu0 0.0
  %2241 = vmatpush1.msra.mxu0 %v2201
  %2242 = vmatprep.subr.mxu0 0.0
  %2243 = vmatpush1.msra.mxu0 %v2200
  %2244 = vmatprep.subr.mxu0 0.0
  %2245 = vmatpush1.msra.mxu0 %v2199
  %2246 = vmatprep.subr.mxu0 0.0
  %2247 = vmatpush1.msra.mxu0 %v2198
  %2248 = vmatprep.subr.mxu0 0.0
  %2249 = vmatpush2.msra.mxu0 0.0
  %2250 = vmatprep.subr.mxu0 0.0
  %2251 = vmatpush2.msra.mxu0 0.0
  %2252 = vmatprep.subr.mxu0 0.0
  %2253 = vmatpush2.msra.mxu0 0.0
  %2254 = vmatprep.subr.mxu0 0.0
  %2255 = vmatpush2.msra.mxu0 0.0
  %2256 = vmatprep.subr.mxu0 0.0
  %2257 = vmatpush2.msra.mxu0 0.0
  %2258 = vmatprep.subr.mxu0 0.0
  %2259 = vmatpush2.msra.mxu0 0.0
  %2260 = vmatprep.subr.mxu0 0.0
  %2261 = vmatpush2.msra.mxu0 0.0
  %2262 = vmatprep.subr.mxu0 0.0
  %2263 = vmatpush2.msra.mxu0 0.0
  %2264 = vmatprep.subr.mxu0 0.0
  %2265 = vmatpush2.msra.mxu0 0.0
  %2266 = vmatprep.subr.mxu0 0.0
  %2267 = vmatpush2.msra.mxu0 0.0
  %2268 = vmatprep.subr.mxu0 0.0
  %2269 = vmatpush2.msra.mxu0 0.0
  %2270 = vmatprep.subr.mxu0 0.0
  %2271 = vmatpush2.msra.mxu0 0.0
  %2272 = vmatprep.subr.mxu0 0.0
  %2273 = vmatpush2.msra.mxu0 0.0
  %2274 = vmatprep.subr.mxu0 0.0
  %2275 = vmatpush2.msra.mxu0 0.0
  %2276 = vmatprep.subr.mxu0 0.0
  %2277 = vmatpush2.msra.mxu0 0.0
  %2278 = vmatprep.subr.mxu0 0.0
  %2279 = vmatpush2.msra.mxu0 0.0
  %2280 = vmatprep.mubr.f32.mxu0 0.0
  %2281 = vmatmul.mubr.f32.gmra.mxu0 %v2211
  %v2282 = vpop.f32.mrf.mxu0
  %v2283 = vadd.f32 %v2208, %v2282
  %v2284 = vpop.f32.mrf.mxu0
  %2285 = vmatprep.mubr.f32.mxu0 0.0
  %2286 = vmatmul.mubr.f32.gmra.mxu0 %v2214
  %v2287 = vpop.f32.mrf.mxu0
  %v2288 = vadd.f32 %v2208, %v2287
  %v2289 = vpop.f32.mrf.mxu0
  %2290 = vdwg.mxu0
  %v2291 = vmul.f32 %v2283, %v2283
  %v2292 = vmul.f32 %v2288, %v2288
  %v2293 = vmul.f32 %v2283, %v2291
  %v2294 = vmul.f32 %v2288, %v2292
  %v2295 = vmul.f32 %v2293, 0.044715
  %v2296 = vmul.f32 %v2294, 0.044715
  %v2297 = vadd.f32 %v2283, %v2295
  %v2298 = vadd.f32 %v2288, %v2296
  %v2299 = vmul.f32 %v2297, 0.7978846
  %v2300 = vmul.f32 %v2298, 0.7978846
  %v2301 = vtanh.pop %v2299
  %v2302 = vtanh.pop %v2300
  %v2303 = vadd.f32 %v2301, 1.0
  %v2304 = vadd.f32 %v2302, 1.0
  %v2305 = vmul.f32 %v2303, 0.5
  %v2306 = vmul.f32 %v2304, 0.5
  %v2307 = vmul.f32 %v2283, %v2305
  %v2308 = vmul.f32 %v2288, %v2306
  %s2309 = scalar_lea.vmem %s13, 64
  %v2310 = vld [vmem:[%s2309] sm:$0xff]
  %v2311 = vld [vmem:[%s2309 + $0x8] sm:$0xff]
  %v2312 = vld [vmem:[%s2309 + $0x10] sm:$0xff]
  %v2313 = vld [vmem:[%s2309 + $0x18] sm:$0xff]
  %v2314 = vld [vmem:[%s2309 + $0x20] sm:$0xff]
  %v2315 = vld [vmem:[%s2309 + $0x28] sm:$0xff]
  %v2316 = vld [vmem:[%s2309 + $0x30] sm:$0xff]
  %v2317 = vld [vmem:[%s2309 + $0x38] sm:$0xff]
  %s2318 = scalar_lea.vmem %s14, 1
  %v2319 = vld [vmem:[%s2318] sm:$0x1]
  %v2321 = vlaneseq
  %v2322 = vshrl.u32 %v2321, 7
  %v2323 = vsub.s32 0, %v2322
  %v2324 = vrot.slane %v2319, %v2323
  %v2327 = vsel %vm1157, %v2307, 0
  %v2330 = vsel %vm1157, %v2308, 0
  %2332 = vmatprep.subr.mxu0 0.0
  %2333 = vmatpush1.msra.mxu0 0.0
  %2334 = vmatprep.subr.mxu0 0.0
  %2335 = vmatpush1.msra.mxu0 0.0
  %2336 = vmatprep.subr.mxu0 0.0
  %2337 = vmatpush1.msra.mxu0 0.0
  %2338 = vmatprep.subr.mxu0 0.0
  %2339 = vmatpush1.msra.mxu0 0.0
  %2340 = vmatprep.subr.mxu0 0.0
  %2341 = vmatpush1.msra.mxu0 0.0
  %2342 = vmatprep.subr.mxu0 0.0
  %2343 = vmatpush1.msra.mxu0 0.0
  %2344 = vmatprep.subr.mxu0 0.0
  %2345 = vmatpush1.msra.mxu0 0.0
  %2346 = vmatprep.subr.mxu0 0.0
  %2347 = vmatpush1.msra.mxu0 0.0
  %2348 = vmatprep.subr.mxu0 0.0
  %2349 = vmatpush1.msra.mxu0 %v2317
  %2350 = vmatprep.subr.mxu0 0.0
  %2351 = vmatpush1.msra.mxu0 %v2316
  %2352 = vmatprep.subr.mxu0 0.0
  %2353 = vmatpush1.msra.mxu0 %v2315
  %2354 = vmatprep.subr.mxu0 0.0
  %2355 = vmatpush1.msra.mxu0 %v2314
  %2356 = vmatprep.subr.mxu0 0.0
  %2357 = vmatpush1.msra.mxu0 %v2313
  %2358 = vmatprep.subr.mxu0 0.0
  %2359 = vmatpush1.msra.mxu0 %v2312
  %2360 = vmatprep.subr.mxu0 0.0
  %2361 = vmatpush1.msra.mxu0 %v2311
  %2362 = vmatprep.subr.mxu0 0.0
  %2363 = vmatpush1.msra.mxu0 %v2310
  %2364 = vmatprep.subr.mxu0 0.0
  %2365 = vmatpush2.msra.mxu0 0.0
  %2366 = vmatprep.subr.mxu0 0.0
  %2367 = vmatpush2.msra.mxu0 0.0
  %2368 = vmatprep.subr.mxu0 0.0
  %2369 = vmatpush2.msra.mxu0 0.0
  %2370 = vmatprep.subr.mxu0 0.0
  %2371 = vmatpush2.msra.mxu0 0.0
  %2372 = vmatprep.subr.mxu0 0.0
  %2373 = vmatpush2.msra.mxu0 0.0
  %2374 = vmatprep.subr.mxu0 0.0
  %2375 = vmatpush2.msra.mxu0 0.0
  %2376 = vmatprep.subr.mxu0 0.0
  %2377 = vmatpush2.msra.mxu0 0.0
  %2378 = vmatprep.subr.mxu0 0.0
  %2379 = vmatpush2.msra.mxu0 0.0
  %2380 = vmatprep.subr.mxu0 0.0
  %2381 = vmatpush2.msra.mxu0 0.0
  %2382 = vmatprep.subr.mxu0 0.0
  %2383 = vmatpush2.msra.mxu0 0.0
  %2384 = vmatprep.subr.mxu0 0.0
  %2385 = vmatpush2.msra.mxu0 0.0
  %2386 = vmatprep.subr.mxu0 0.0
  %2387 = vmatpush2.msra.mxu0 0.0
  %2388 = vmatprep.subr.mxu0 0.0
  %2389 = vmatpush2.msra.mxu0 0.0
  %2390 = vmatprep.subr.mxu0 0.0
  %2391 = vmatpush2.msra.mxu0 0.0
  %2392 = vmatprep.subr.mxu0 0.0
  %2393 = vmatpush2.msra.mxu0 0.0
  %2394 = vmatprep.subr.mxu0 0.0
  %2395 = vmatpush2.msra.mxu0 0.0
  %2396 = vmatprep.mubr.f32.mxu0 0.0
  %2397 = vmatmul.mubr.f32.gmra.mxu0 %v2327
  %v2398 = vpop.f32.mrf.mxu0
  %v2399 = vadd.f32 %v2324, %v2398
  %v2400 = vpop.f32.mrf.mxu0
  %2401 = vmatprep.mubr.f32.mxu0 0.0
  %2402 = vmatmul.mubr.f32.gmra.mxu0 %v2330
  %v2403 = vpop.f32.mrf.mxu0
  %v2404 = vadd.f32 %v2324, %v2403
  %v2405 = vpop.f32.mrf.mxu0
  %2406 = vdwg.mxu0
  %v2407 = vadd.f32 %v2195, %v2399
  %v2408 = vadd.f32 %v2196, %v2404
  %s2409 = scalar_lea.vmem %s15, 1
  %v2410 = vld [vmem:[%s2409] sm:$0x1]
  %s2411 = scalar_lea.vmem %s16, 1
  %v2412 = vld [vmem:[%s2411] sm:$0x1]
  %v2413 = vsel %vm66, %v2407, 0.0
  %2414 = vadd.xlane.f32.xlu0 %v2413
  %v2415 = vpop.xlane.xlu0 %2414
  %v2416 = vsel %vm66, %v2408, 0.0
  %2417 = vadd.xlane.f32.xlu0 %v2416
  %v2418 = vpop.xlane.xlu0 %2417
  %v2419 = vmul.f32 %v2415, %v73
  %v2420 = vmul.f32 %v2418, %v73
  %v2421 = vsub.f32 %v2407, %v2419
  %v2422 = vsub.f32 %v2408, %v2420
  %v2423 = vmul.f32 %v2421, %v2421
  %v2424 = vmul.f32 %v2422, %v2422
  %v2425 = vsel %vm66, %v2423, 0.0
  %2426 = vadd.xlane.f32.xlu0 %v2425
  %v2427 = vpop.xlane.xlu0 %2426
  %v2428 = vsel %vm66, %v2424, 0.0
  %2429 = vadd.xlane.f32.xlu0 %v2428
  %v2430 = vpop.xlane.xlu0 %2429
  %v2431 = vmul.f32 %v2427, %v73
  %v2432 = vmul.f32 %v2430, %v73
  %v2433 = vadd.f32 %v2431, 1e-12
  %v2434 = vadd.f32 %v2432, 1e-12
  %v2435 = vrsqrt.pop %v2433
  %v2436 = vrsqrt.pop %v2434
  %v2437 = vmul.f32 %v2421, %v2435
  %v2438 = vmul.f32 %v2422, %v2436
  %v2440 = vlaneseq
  %v2441 = vshrl.u32 %v2440, 7
  %v2442 = vsub.s32 0, %v2441
  %v2443 = vrot.slane %v2410, %v2442
  %v2445 = vmul.f32 %v2437, %v2443
  %v2446 = vmul.f32 %v2438, %v2443
  %v2448 = vlaneseq
  %v2449 = vshrl.u32 %v2448, 7
  %v2450 = vsub.s32 0, %v2449
  %v2451 = vrot.slane %v2412, %v2450
  %v2453 = vadd.f32 %v2445, %v2451
  %v2454 = vadd.f32 %v2446, %v2451
  %v2455 = vld [vmem:[%s2] sm:$0x3]
  %v2456 = vlaneseq
  %v2457 = vshrl.u32 %v2456, 7
  %v2458 = vsub.s32 0, %v2457
  %v2459 = vrot.slane %v2455, %v2458
  %2461 = vbcast.lane.b32.xlu0 %v2459, 256
  %v2462 = vpop.permute.xlu0 %2461
  %v2463 = vlaneseq
  %v2464 = vshrl.u32 %v2463, 7
  %v2465 = vsub.s32 1, %v2464
  %v2466 = vrot.slane %v2455, %v2465
  %2468 = vbcast.lane.b32.xlu0 %v2466, 256
  %v2469 = vpop.permute.xlu0 %2468
  %v2470 = vmul.f32 %v2453, %v2462
  %v2471 = vmul.f32 %v2454, %v2469
  %v2472 = vsel %vm66, %v2470, 0.0
  %v2473 = vrot.slane %v2472, 4
  %v2474 = vadd.f32 %v2472, %v2473
  %v2475 = vrot.slane %v2474, 2
  %v2476 = vadd.f32 %v2474, %v2475
  %v2477 = vrot.slane %v2476, 1
  %v2478 = vadd.f32 %v2476, %v2477
  %v2479 = vsel %vm66, %v2471, 0.0
  %v2480 = vrot.slane %v2479, 4
  %v2481 = vadd.f32 %v2479, %v2480
  %v2482 = vrot.slane %v2481, 2
  %v2483 = vadd.f32 %v2481, %v2482
  %v2484 = vrot.slane %v2483, 1
  %v2485 = vadd.f32 %v2483, %v2484
  %vm2486 = vcmask 58368
  %v2487 = vsel %vm2486, %v2455, 0.0
  %2488 = vadd.xlane.f32.xlu0 %v2487
  %v2489 = vpop.xlane.xlu0 %2488
  %vm2490 = vcmp.eq.f32.partialorder %v2489, 0.0
  %v2491 = vsel %vm2490, 1.0, %v2489
  %v2493 = vrot.slane %v2491, 1
  %v2496 = vrcp.pop %v2491
  %v2497 = vmul.f32 %v2478, %v2496
  %v2498 = vrcp.pop %v2493
  %v2499 = vmul.f32 %v2485, %v2498
  %v2500 = vld [vmem:[%s17] sm:$0xff]
  %v2501 = vld [vmem:[%s17 + $0x8] sm:$0xff]
  %v2502 = vld [vmem:[%s17 + $0x10] sm:$0xff]
  %v2503 = vld [vmem:[%s17 + $0x18] sm:$0xff]
  %v2504 = vld [vmem:[%s18] sm:$0x1]
  %v2506 = vlaneseq
  %v2507 = vshrl.u32 %v2506, 7
  %v2508 = vsub.s32 0, %v2507
  %v2509 = vrot.slane %v2504, %v2508
  %v2513 = vrot.slane %v2499, 7
  %vm2514 = vcmask 1041409
  %v2515 = vsel %vm2514, %v2513, %v2497
  %v2516 = vsel %vm66, %v2515, 0
  %2518 = vmatprep.subr.mxu0 0.0
  %2519 = vmatpush1.msra.mxu0 0.0
  %2520 = vmatprep.subr.mxu0 0.0
  %2521 = vmatpush1.msra.mxu0 0.0
  %2522 = vmatprep.subr.mxu0 0.0
  %2523 = vmatpush1.msra.mxu0 0.0
  %2524 = vmatprep.subr.mxu0 0.0
  %2525 = vmatpush1.msra.mxu0 0.0
  %2526 = vmatprep.subr.mxu0 0.0
  %2527 = vmatpush1.msra.mxu0 0.0
  %2528 = vmatprep.subr.mxu0 0.0
  %2529 = vmatpush1.msra.mxu0 0.0
  %2530 = vmatprep.subr.mxu0 0.0
  %2531 = vmatpush1.msra.mxu0 0.0
  %2532 = vmatprep.subr.mxu0 0.0
  %2533 = vmatpush1.msra.mxu0 0.0
  %2534 = vmatprep.subr.mxu0 0.0
  %2535 = vmatpush1.msra.mxu0 0.0
  %2536 = vmatprep.subr.mxu0 0.0
  %2537 = vmatpush1.msra.mxu0 0.0
  %2538 = vmatprep.subr.mxu0 0.0
  %2539 = vmatpush1.msra.mxu0 0.0
  %2540 = vmatprep.subr.mxu0 0.0
  %2541 = vmatpush1.msra.mxu0 0.0
  %2542 = vmatprep.subr.mxu0 0.0
  %2543 = vmatpush1.msra.mxu0 %v2503
  %2544 = vmatprep.subr.mxu0 0.0
  %2545 = vmatpush1.msra.mxu0 %v2502
  %2546 = vmatprep.subr.mxu0 0.0
  %2547 = vmatpush1.msra.mxu0 %v2501
  %2548 = vmatprep.subr.mxu0 0.0
  %2549 = vmatpush1.msra.mxu0 %v2500
  %2550 = vmatprep.subr.mxu0 0.0
  %2551 = vmatpush2.msra.mxu0 0.0
  %2552 = vmatprep.subr.mxu0 0.0
  %2553 = vmatpush2.msra.mxu0 0.0
  %2554 = vmatprep.subr.mxu0 0.0
  %2555 = vmatpush2.msra.mxu0 0.0
  %2556 = vmatprep.subr.mxu0 0.0
  %2557 = vmatpush2.msra.mxu0 0.0
  %2558 = vmatprep.subr.mxu0 0.0
  %2559 = vmatpush2.msra.mxu0 0.0
  %2560 = vmatprep.subr.mxu0 0.0
  %2561 = vmatpush2.msra.mxu0 0.0
  %2562 = vmatprep.subr.mxu0 0.0
  %2563 = vmatpush2.msra.mxu0 0.0
  %2564 = vmatprep.subr.mxu0 0.0
  %2565 = vmatpush2.msra.mxu0 0.0
  %2566 = vmatprep.subr.mxu0 0.0
  %2567 = vmatpush2.msra.mxu0 0.0
  %2568 = vmatprep.subr.mxu0 0.0
  %2569 = vmatpush2.msra.mxu0 0.0
  %2570 = vmatprep.subr.mxu0 0.0
  %2571 = vmatpush2.msra.mxu0 0.0
  %2572 = vmatprep.subr.mxu0 0.0
  %2573 = vmatpush2.msra.mxu0 0.0
  %2574 = vmatprep.subr.mxu0 0.0
  %2575 = vmatpush2.msra.mxu0 0.0
  %2576 = vmatprep.subr.mxu0 0.0
  %2577 = vmatpush2.msra.mxu0 0.0
  %2578 = vmatprep.subr.mxu0 0.0
  %2579 = vmatpush2.msra.mxu0 0.0
  %2580 = vmatprep.subr.mxu0 0.0
  %2581 = vmatpush2.msra.mxu0 0.0
  %2582 = vmatprep.mubr.f32.mxu0 0.0
  %2583 = vmatmul.mubr.f32.gmra.mxu0 %v2516
  %v2584 = vpop.f32.mrf.mxu0
  %v2585 = vadd.f32 %v2509, %v2584
  %v2586 = vpop.f32.mrf.mxu0
  %2587 = vdwg.mxu0
  %2588 = vst [vmem:[%s19] sm:$0x3] %v2585
  // Predicated region
  $region78: #{bert_classification_forward.1} parent=0 // pred_check
    _
  $region79: #{bert_classification_forward.1} parent=0 // pred_check_branch
    %2590 = sbr.rel (0) target = $region81
  $region80: #{bert_classification_forward.1} parent=0 // pred_region
    _
  $region81: #{bert_classification_forward.1} parent=0 // pred_fallthru
    _
  // Predicated region
  $region82: #{bert_classification_forward.1} parent=0 // pred_check
    _
  $region83: #{bert_classification_forward.1} parent=0 // pred_check_branch
    %2592 = sbr.rel (0) target = $region85
  $region84: #{bert_classification_forward.1} parent=0 // pred_region
    _
  $region85: #{bert_classification_forward.1} parent=0 // pred_fallthru
    _

</llo_original>
